<compile_context>
chip_gen: v5e
topology: v5e:2x2
jax: 0.10.0
libtpu: 0.0.40
codegen_flags: <defaults>
</compile_context>

<pallas_src>
import functools
import math

import jax
import jax.numpy as jnp
from jax import lax
from jax.experimental import pallas as pl
from jax.experimental.pallas import tpu as pltpu


# ----------------------------- shared math helpers -----------------------------
def _layernorm(x, g, b, eps=1e-5):
    mu = jnp.mean(x, axis=-1, keepdims=True)
    var = jnp.mean((x - mu) ** 2, axis=-1, keepdims=True)
    return (x - mu) * lax.rsqrt(var + eps) * g + b


def _gelu_new(x):
    # GPT-2 "gelu_new" (tanh approximation), f32
    return 0.5 * x * (1.0 + jnp.tanh(math.sqrt(2.0 / math.pi) * (x + 0.044715 * x * x * x)))


# ----------------------------- kernel 1: GPT-2 stack -----------------------------
def gpt2_stack_kernel(num_heads,
                      h0_ref, ln1g, ln1b, wqkv, bqkv, wo, bo,
                      ln2g, ln2b, wfc, bfc, wpr, bpr, lnfg, lnfb,
                      out_ref, h_sc):
    l = pl.program_id(0)

    @pl.when(l == 0)
    def _():
        # one-time HBM -> VMEM copy of the embedding output (residual stream init);
        # h0 is NOT a streamed block, so it does not occupy VMEM for l > 0.
        pltpu.sync_copy(h0_ref, h_sc)

    h = h_sc[...]                       # (B, S, H) f32 residual stream
    B, S, H = h.shape
    nh = num_heads
    dh = H // nh
    BS = B * S

    # ---------------- attention ----------------
    a = _layernorm(h, ln1g[0], ln1b[0])                               # f32
    qkv = jnp.dot(a.reshape(BS, H).astype(jnp.bfloat16), wqkv[0],
                  preferred_element_type=jnp.float32) + bqkv[0]       # (BS, 3H) f32
    qkv = qkv.reshape(B, S, 3 * H)

    # Head-major (nh*B, S, dh) views built with static lane slices + a leading-dim
    # stack; all heads then run as ONE batched einsum (single jaxpr op).
    def split_heads(base, scale=None):
        parts = [qkv[:, :, base + hh * dh: base + (hh + 1) * dh] for hh in range(nh)]
        x = jnp.stack(parts, axis=0).reshape(nh * B, S, dh)
        if scale is not None:
            x = x * scale                                             # f32 pre-scale
        return x.astype(jnp.bfloat16)

    scale = jnp.float32(1.0 / math.sqrt(dh))
    q = split_heads(0, scale)            # q pre-scaled -> no mul on the score tensor
    k = split_heads(H)
    v = split_heads(2 * H)

    row = lax.broadcasted_iota(jnp.int32, (S, S), 0)
    col = lax.broadcasted_iota(jnp.int32, (S, S), 1)
    causal = (col <= row)[None, :, :]

    sc = jnp.einsum('bsd,btd->bst', q, k,
                    preferred_element_type=jnp.float32)               # (nh*B, S, S) f32
    sc = jnp.where(causal, sc, jnp.float32(-1e30))
    m = jnp.max(sc, axis=-1, keepdims=True)
    e = jnp.exp(sc - m)                                               # f32 softmax (EUP)
    p = e * pl.reciprocal(jnp.sum(e, axis=-1, keepdims=True), approx=True)
    o = jnp.einsum('bst,btd->bsd', p.astype(jnp.bfloat16), v,
                   preferred_element_type=jnp.float32)                # (nh*B, S, dh) f32
    o = o.reshape(nh, B, S, dh)
    attn = jnp.concatenate([o[hh] for hh in range(nh)], axis=-1)      # (B, S, H) f32

    # single H-wide output projection (full MXU contraction) instead of per-head sums
    proj = jnp.dot(attn.reshape(BS, H).astype(jnp.bfloat16), wo[0],
                   preferred_element_type=jnp.float32) + bo[0]
    h = h + proj.reshape(B, S, H)

    # ---------------- MLP ----------------
    mi = _layernorm(h, ln2g[0], ln2b[0]).reshape(BS, H).astype(jnp.bfloat16)
    f = jnp.dot(mi, wfc[0], preferred_element_type=jnp.float32) + bfc[0]
    f = _gelu_new(f).astype(jnp.bfloat16)
    f = jnp.dot(f, wpr[0], preferred_element_type=jnp.float32) + bpr[0]
    h = h + f.reshape(B, S, H)

    h_sc[...] = h

    @pl.when(l == pl.num_programs(0) - 1)
    def _():
        out_ref[...] = _layernorm(h, lnfg[0], lnfb[0])


def gpt2_backbone(h0, p, num_heads):
    B, S, H = h0.shape
    L = p['ln1g'].shape[0]
    BS = B * S
    dh = H // num_heads

    def per_layer(shape):
        return pl.BlockSpec((1,) + shape, lambda l: (l, 0, 0))

    def fixed(shape):
        return pl.BlockSpec(shape, lambda l: (0, 0, 0))

    flops_layer = (2 * BS * H * 3 * H + 4 * num_heads * B * S * S * dh
                   + 2 * BS * H * H + 16 * BS * H * H)
    bytes_layer = 24 * H * H            # bf16 weight blocks per layer
    cost = pl.CostEstimate(
        flops=int(L * flops_layer),
        transcendentals=int(L * (num_heads * B * S * S + BS * 4 * H)),
        bytes_accessed=int(L * bytes_layer + 2 * 4 * B * S * H),
    )

    kernel = functools.partial(gpt2_stack_kernel, num_heads)
    return pl.pallas_call(
        kernel,
        out_shape=jax.ShapeDtypeStruct((B, S, H), jnp.float32),
        grid_spec=pltpu.PrefetchScalarGridSpec(
            num_scalar_prefetch=0,
            grid=(L,),
            in_specs=[
                pl.BlockSpec(memory_space=pl.ANY),   # h0 (raw HBM; copied once at l==0)
                per_layer((1, H)),                   # ln1 gamma
                per_layer((1, H)),                   # ln1 beta
                per_layer((H, 3 * H)),               # W_qkv (bf16)
                per_layer((1, 3 * H)),               # b_qkv
                per_layer((H, H)),                   # W_o (bf16)
                per_layer((1, H)),                   # b_o
                per_layer((1, H)),                   # ln2 gamma
                per_layer((1, H)),                   # ln2 beta
                per_layer((H, 4 * H)),               # W_fc (bf16)
                per_layer((1, 4 * H)),               # b_fc
                per_layer((4 * H, H)),               # W_proj (bf16)
                per_layer((1, H)),                   # b_proj
                fixed((1, 1, H)),                    # ln_f gamma (fetched once)
                fixed((1, 1, H)),                    # ln_f beta  (fetched once)
            ],
            out_specs=fixed((B, S, H)),
            scratch_shapes=[pltpu.VMEM((B, S, H), jnp.float32)],
        ),
        compiler_params=pltpu.CompilerParams(
            dimension_semantics=("arbitrary",),
            vmem_limit_bytes=32 * 1024 * 1024,       # explicit scoped-VMEM budget (v7x-safe)
        ),
        cost_estimate=cost,
    )(h0, p['ln1g'], p['ln1b'], p['wqkv'], p['bqkv'], p['wo'], p['bo'],
      p['ln2g'], p['ln2b'], p['wfc'], p['bfc'], p['wpr'], p['bpr'],
      p['lnfg'], p['lnfb'])


# --------------- kernel 2: linear head + masked cross-entropy loss ---------------
def head_loss_kernel(h_ref, w_ref, b_ref, mask_ref, labels_ref,
                     logits_ref, loss_ref, sum_sc, cnt_sc):
    t = pl.program_id(0)

    @pl.when(t == 0)
    def _():
        sum_sc[0] = jnp.float32(0.0)
        cnt_sc[0] = jnp.float32(0.0)

    h = h_ref[...]                                   # (TBS, H) f32
    # b_ref already carries -1e30 on zero-padded class columns, so the padded
    # logits are ~-inf and no per-tile class-validity select is needed.
    logits = jnp.dot(h.astype(jnp.bfloat16), w_ref[...],
                     preferred_element_type=jnp.float32) + b_ref[...]   # (TBS, CPAD) f32
    logits_ref[...] = logits                         # lane-dense (CPAD = 128k) store

    TBS, CPAD = logits.shape
    cls_ids = lax.broadcasted_iota(jnp.int32, (TBS, CPAD), 1)

    mask = mask_ref[...]                             # (TBS, 1) int32
    labels = labels_ref[...]                         # (TBS, 1) int32
    # torch: labels replaced by ignore_index (-100) where attention_mask != 1
    labels_eff = jnp.where(mask == 1, labels, jnp.int32(-100))
    valid = labels_eff != jnp.int32(-100)            # (TBS, 1) bool

    m = jnp.max(logits, axis=-1, keepdims=True)
    lse = m + jnp.log(jnp.sum(jnp.exp(logits - m), axis=-1, keepdims=True))
    picked = jnp.sum(jnp.where(cls_ids == labels_eff, logits, 0.0),
                     axis=-1, keepdims=True)
    per_tok = jnp.where(valid, lse - picked, 0.0)

    sum_sc[0] += jnp.sum(per_tok)
    cnt_sc[0] += jnp.sum(valid.astype(jnp.float32))

    @pl.when(t == pl.num_programs(0) - 1)
    def _():
        cnt = cnt_sc[0]
        # all tokens masked -> NaN (same as torch CrossEntropyLoss mean reduction)
        loss_ref[0] = jnp.where(cnt > 0.0, sum_sc[0] / jnp.maximum(cnt, 1.0),
                                jnp.float32(jnp.nan))


def _pick_head_tile(bs, cap=512):
    best = bs
    for t in range(8, min(bs, cap) + 1, 8):
        if bs % t == 0:
            best = t
    return best


def classification_head_and_loss(h, w_cls, b_cls, mask, labels, num_classes,
                                 tile_bs=None):
    B, S, H = h.shape
    BS = B * S
    C = num_classes
    CPAD = ((C + 127) // 128) * 128                  # lane-dense class dim

    w_pad = jnp.zeros((H, CPAD), jnp.bfloat16).at[:, :C].set(
        w_cls.astype(jnp.bfloat16))
    # -1e30 bias on padded class columns -> padded logits never win softmax / LSE
    b_pad = jnp.full((1, CPAD), -1e30, jnp.float32).at[:, :C].set(
        b_cls.reshape(1, C).astype(jnp.float32))

    h2 = h.reshape(BS, H)
    mask2 = mask.reshape(BS, 1).astype(jnp.int32)
    labels2 = labels.reshape(BS, 1).astype(jnp.int32)

    if tile_bs is None:
        tile_bs = _pick_head_tile(BS)
    assert BS % tile_bs == 0
    grid = (BS // tile_bs,)

    logits_pad, loss = pl.pallas_call(
        head_loss_kernel,
        out_shape=(jax.ShapeDtypeStruct((BS, CPAD), jnp.float32),
                   jax.ShapeDtypeStruct((1,), jnp.float32)),
        grid_spec=pltpu.PrefetchScalarGridSpec(
            num_scalar_prefetch=0,
            grid=grid,
            in_specs=[
                pl.BlockSpec((tile_bs, H), lambda t: (t, 0)),
                pl.BlockSpec((H, CPAD), lambda t: (0, 0)),
                pl.BlockSpec((1, CPAD), lambda t: (0, 0)),
                pl.BlockSpec((tile_bs, 1), lambda t: (t, 0)),
                pl.BlockSpec((tile_bs, 1), lambda t: (t, 0)),
            ],
            out_specs=(
                pl.BlockSpec((tile_bs, CPAD), lambda t: (t, 0)),
                pl.BlockSpec((1,), lambda t: (0,),
                             memory_space=pltpu.MemorySpace.SMEM),
            ),
            scratch_shapes=[pltpu.SMEM((1,), jnp.float32),
                            pltpu.SMEM((1,), jnp.float32)],
        ),
        compiler_params=pltpu.CompilerParams(dimension_semantics=("arbitrary",)),
        cost_estimate=pl.CostEstimate(
            flops=int(2 * BS * H * CPAD),
            transcendentals=int(BS * CPAD),
            bytes_accessed=int(4 * BS * H + 2 * H * CPAD + 4 * BS * CPAD),
        ),
    )(h2, w_pad, b_pad, mask2, labels2)

    logits = logits_pad[:, :C].reshape(B, S, C)
    return loss[0], logits


# ----------------------------- full module forward -----------------------------
def gpt2_for_token_classification(x_in, attention_mask, labels, params, num_heads,
                                  head_tile=None):
    S = x_in.shape[1]
    # embedding gather (glue, plain JAX outside the kernels)
    h0 = params['wte'][x_in] + params['wpe'][jnp.arange(S)][None, :, :]
    gpt_out = gpt2_backbone(h0, params, num_heads)              # gpt2model(x_in)[0]
    loss, logits = classification_head_and_loss(
        gpt_out, params['w_cls'], params['b_cls'], attention_mask, labels,
        num_classes=params['w_cls'].shape[1], tile_bs=head_tile)
    return loss, logits                                         # (loss, logits)


# ----------------------------- params / reference -----------------------------
def init_params(key, L, H, C, vocab, n_pos):
    ks = jax.random.split(key, 8)

    def n(k, shape, scale=0.02, dtype=jnp.float32):
        return (scale * jax.random.normal(k, shape, jnp.float32)).astype(dtype)

    bf = jnp.bfloat16
    return {
        'wte': n(ks[0], (vocab, H)),
        'wpe': n(ks[1], (n_pos, H), 0.01),
        'ln1g': jnp.ones((L, 1, H), jnp.float32),
        'ln1b': jnp.zeros((L, 1, H), jnp.float32),
        'wqkv': n(ks[2], (L, H, 3 * H), dtype=bf),
        'bqkv': jnp.zeros((L, 1, 3 * H), jnp.float32),
        'wo': n(ks[3], (L, H, H), dtype=bf),
        'bo': jnp.zeros((L, 1, H), jnp.float32),
        'ln2g': jnp.ones((L, 1, H), jnp.float32),
        'ln2b': jnp.zeros((L, 1, H), jnp.float32),
        'wfc': n(ks[4], (L, H, 4 * H), dtype=bf),
        'bfc': jnp.zeros((L, 1, 4 * H), jnp.float32),
        'wpr': n(ks[5], (L, 4 * H, H), dtype=bf),
        'bpr': jnp.zeros((L, 1, H), jnp.float32),
        'lnfg': jnp.ones((1, 1, H), jnp.float32),
        'lnfb': jnp.zeros((1, 1, H), jnp.float32),
        'w_cls': n(ks[6], (H, C), dtype=bf),
        'b_cls': jnp.zeros((1, C), jnp.float32),
    }


def reference_forward(x_in, mask, labels, p, num_heads):
    f = lambda a: a.astype(jnp.float32)
    B, S = x_in.shape
    H = p['wte'].shape[1]
    dh = H // num_heads
    L = p['ln1g'].shape[0]
    h = p['wte'][x_in] + p['wpe'][jnp.arange(S)][None]
    causal = (jnp.arange(S)[None, :] <= jnp.arange(S)[:, None])[None]
    for l in range(L):
        a = _layernorm(h, p['ln1g'][l, 0], p['ln1b'][l, 0])
        qkv = a @ f(p['wqkv'][l]) + p['bqkv'][l, 0]
        q, k, v = qkv[..., :H], qkv[..., H:2 * H], qkv[..., 2 * H:]
        outs = []
        for hh in range(num_heads):
            sl = slice(hh * dh, (hh + 1) * dh)
            sc = jnp.einsum('bsd,btd->bst', q[..., sl], k[..., sl]) / math.sqrt(dh)
            sc = jnp.where(causal, sc, -1e30)
            pr = jax.nn.softmax(sc, axis=-1)
            outs.append(jnp.einsum('bst,btd->bsd', pr, v[..., sl]))
        h = h + jnp.concatenate(outs, -1) @ f(p['wo'][l]) + p['bo'][l, 0]
        m = _layernorm(h, p['ln2g'][l, 0], p['ln2b'][l, 0])
        h = h + _gelu_new(m @ f(p['wfc'][l]) + p['bfc'][l, 0]) @ f(p['wpr'][l]) + p['bpr'][l, 0]
    h = _layernorm(h, p['lnfg'][0, 0], p['lnfb'][0, 0])
    logits = h @ f(p['w_cls']) + p['b_cls'][0]
    C = logits.shape[-1]
    labels_eff = jnp.where(mask.reshape(-1) == 1, labels.reshape(-1), -100)
    lg = logits.reshape(-1, C)
    valid = (labels_eff != -100).astype(jnp.float32)
    lse = jax.scipy.special.logsumexp(lg, axis=-1)
    picked = jnp.take_along_axis(lg, jnp.maximum(labels_eff, 0)[:, None], axis=-1)[:, 0]
    loss = jnp.sum((lse - picked) * valid) / jnp.sum(valid)
    return loss, logits


if __name__ == "__main__":
    # small but tile-friendly shapes: dh = 64 matches real GPT-2 head dim
    B, S, H, C = 2, 16, 128, 5
    L, NH = 2, 2
    VOCAB, NPOS = 64, 32

    key = jax.random.PRNGKey(0)
    kp, kx, km, kl = jax.random.split(key, 4)
    params = init_params(kp, L, H, C, VOCAB, NPOS)

    x_in = jax.random.randint(kx, (B, S), 0, VOCAB, dtype=jnp.int32)
    attention_mask = (jax.random.uniform(km, (B, S)) > 0.3).astype(jnp.int32)
    attention_mask = attention_mask.at[:, 0].set(1)   # at least one active token
    labels = jax.random.randint(kl, (B, S), 0, C, dtype=jnp.int32)

    loss, logits = gpt2_for_token_classification(x_in, attention_mask, labels, params, NH)
    jax.block_until_ready((loss, logits))

    # also exercise the multi-tile head/loss path (grid over B*S tiles)
    loss_t, logits_t = gpt2_for_token_classification(
        x_in, attention_mask, labels, params, NH, head_tile=8)
    jax.block_until_ready((loss_t, logits_t))

    ref_loss, ref_logits = reference_forward(x_in, attention_mask, labels, params, NH)
    assert logits.shape == (B, S, C)
    assert bool(jnp.isfinite(loss))
    # bf16 matmuls vs f32 reference: allow bf16-level tolerance
    assert jnp.allclose(logits, ref_logits, atol=2e-2, rtol=2e-2)
    assert jnp.allclose(loss, ref_loss, atol=2e-2, rtol=2e-2)
    # tiled head path must agree with the single-tile path
    assert jnp.allclose(logits_t, logits, atol=1e-4, rtol=1e-4)
    assert jnp.allclose(loss_t, loss, atol=1e-4, rtol=1e-4)

    print("KERNEL_OK")
</pallas_src>

<mosaic_0001>
module attributes {stable_mosaic.version = 11 : i64} {
  func.func @gpt2_stack_kernel(%arg0: i32, %arg1: memref<2x16x128xf32, #tpu.memory_space<any>>, %arg2: memref<1x1x128xf32, #tpu.memory_space<vmem>>, %arg3: memref<1x1x128xf32, #tpu.memory_space<vmem>>, %arg4: memref<1x128x384xbf16, #tpu.memory_space<vmem>>, %arg5: memref<1x1x384xf32, #tpu.memory_space<vmem>>, %arg6: memref<1x128x128xbf16, #tpu.memory_space<vmem>>, %arg7: memref<1x1x128xf32, #tpu.memory_space<vmem>>, %arg8: memref<1x1x128xf32, #tpu.memory_space<vmem>>, %arg9: memref<1x1x128xf32, #tpu.memory_space<vmem>>, %arg10: memref<1x128x512xbf16, #tpu.memory_space<vmem>>, %arg11: memref<1x1x512xf32, #tpu.memory_space<vmem>>, %arg12: memref<1x512x128xbf16, #tpu.memory_space<vmem>>, %arg13: memref<1x1x128xf32, #tpu.memory_space<vmem>>, %arg14: memref<1x1x128xf32, #tpu.memory_space<vmem>>, %arg15: memref<1x1x128xf32, #tpu.memory_space<vmem>>, %arg16: memref<2x16x128xf32, #tpu.memory_space<vmem>>, %arg17: memref<2x16x128xf32, #tpu.memory_space<vmem>>) attributes {dimension_semantics = [#tpu.dimension_semantics<arbitrary>], iteration_bounds = array<i64: 2>, scalar_prefetch = 0 : i64, scratch_operands = 1 : i64, tpu.core_type = #tpu.core_type<tc>, window_params = [{}, {transform_indices = @transform_1, window_bounds = array<i64: 1, 1, 128>}, {transform_indices = @transform_2, window_bounds = array<i64: 1, 1, 128>}, {transform_indices = @transform_3, window_bounds = array<i64: 1, 128, 384>}, {transform_indices = @transform_4, window_bounds = array<i64: 1, 1, 384>}, {transform_indices = @transform_5, window_bounds = array<i64: 1, 128, 128>}, {transform_indices = @transform_6, window_bounds = array<i64: 1, 1, 128>}, {transform_indices = @transform_7, window_bounds = array<i64: 1, 1, 128>}, {transform_indices = @transform_8, window_bounds = array<i64: 1, 1, 128>}, {transform_indices = @transform_9, window_bounds = array<i64: 1, 128, 512>}, {transform_indices = @transform_10, window_bounds = array<i64: 1, 1, 512>}, {transform_indices = @transform_11, window_bounds = array<i64: 1, 512, 128>}, {transform_indices = @transform_12, window_bounds = array<i64: 1, 1, 128>}, {pipeline_mode = #tpu.pipeline_mode<synchronous>, transform_indices = @transform_13, window_bounds = array<i64: 1, 1, 128>}, {pipeline_mode = #tpu.pipeline_mode<synchronous>, transform_indices = @transform_14, window_bounds = array<i64: 1, 1, 128>}, {pipeline_mode = #tpu.pipeline_mode<synchronous>, transform_indices = @transform_15, window_bounds = array<i64: 2, 16, 128>}]} {
    %c0_i32 = arith.constant 0 : i32
    %0 = arith.cmpi eq, %arg0, %c0_i32 : i32
    %1 = arith.extui %0 : i1 to i32
    %c0_i32_0 = arith.constant 0 : i32
    %2 = arith.cmpi ne, %1, %c0_i32_0 : i32
    scf.if %2 {
      "tpu.region"() ({
        %167 = tpu.sem_alloc : memref<!tpu.dma_semaphore, #tpu.memory_space<semaphore_mem>>
        tpu.enqueue_dma source(%arg1 : memref<2x16x128xf32, #tpu.memory_space<any>>) target(%arg17 : memref<2x16x128xf32, #tpu.memory_space<vmem>>) target_semaphore(%167 : memref<!tpu.dma_semaphore, #tpu.memory_space<semaphore_mem>>)
        tpu.wait_dma2 semaphore(%167 : memref<!tpu.dma_semaphore, #tpu.memory_space<semaphore_mem>>) src(%arg1 : memref<2x16x128xf32, #tpu.memory_space<any>>) dst(%arg17 : memref<2x16x128xf32, #tpu.memory_space<vmem>>)
        tpu.yield
      }) : () -> ()
    } else {
    }
    %c0 = arith.constant 0 : index
    %c0_1 = arith.constant 0 : index
    %c0_2 = arith.constant 0 : index
    %3 = vector.load %arg17[%c0, %c0_1, %c0_2] : memref<2x16x128xf32, #tpu.memory_space<vmem>>, vector<2x16x128xf32>
    %c0_3 = arith.constant 0 : index
    %c0_4 = arith.constant 0 : index
    %c0_5 = arith.constant 0 : index
    %4 = vector.load %arg2[%c0_3, %c0_4, %c0_5] : memref<1x1x128xf32, #tpu.memory_space<vmem>>, vector<1x1x128xf32>
    %5 = vector.shape_cast %4 : vector<1x1x128xf32> to vector<1x128xf32>
    %c0_6 = arith.constant 0 : index
    %c0_7 = arith.constant 0 : index
    %c0_8 = arith.constant 0 : index
    %6 = vector.load %arg3[%c0_6, %c0_7, %c0_8] : memref<1x1x128xf32, #tpu.memory_space<vmem>>, vector<1x1x128xf32>
    %7 = vector.shape_cast %6 : vector<1x1x128xf32> to vector<1x128xf32>
    %cst = arith.constant dense<0.000000e+00> : vector<2x16xf32>
    %8 = vector.multi_reduction <add>, %3, %cst [2] : vector<2x16x128xf32> to vector<2x16xf32>
    %9 = vector.shape_cast %8 : vector<2x16xf32> to vector<2x16x1xf32>
    %cst_9 = arith.constant 1.280000e+02 : f32
    %10 = vector.broadcast %cst_9 : f32 to vector<2x16x1xf32>
    %11 = arith.divf %9, %10 : vector<2x16x1xf32>
    %12 = vector.broadcast %11 : vector<2x16x1xf32> to vector<2x16x128xf32>
    %13 = arith.subf %3, %12 : vector<2x16x128xf32>
    %14 = arith.mulf %13, %13 : vector<2x16x128xf32>
    %cst_10 = arith.constant dense<0.000000e+00> : vector<2x16xf32>
    %15 = vector.multi_reduction <add>, %14, %cst_10 [2] : vector<2x16x128xf32> to vector<2x16xf32>
    %16 = vector.shape_cast %15 : vector<2x16xf32> to vector<2x16x1xf32>
    %cst_11 = arith.constant 1.280000e+02 : f32
    %17 = vector.broadcast %cst_11 : f32 to vector<2x16x1xf32>
    %18 = arith.divf %16, %17 : vector<2x16x1xf32>
    %19 = vector.broadcast %11 : vector<2x16x1xf32> to vector<2x16x128xf32>
    %20 = arith.subf %3, %19 : vector<2x16x128xf32>
    %cst_12 = arith.constant 9.99999974E-6 : f32
    %21 = vector.broadcast %cst_12 : f32 to vector<2x16x1xf32>
    %22 = arith.addf %18, %21 : vector<2x16x1xf32>
    %23 = math.rsqrt %22 : vector<2x16x1xf32>
    %24 = vector.broadcast %23 : vector<2x16x1xf32> to vector<2x16x128xf32>
    %25 = arith.mulf %20, %24 : vector<2x16x128xf32>
    %26 = vector.shape_cast %5 : vector<1x128xf32> to vector<1x1x128xf32>
    %27 = vector.broadcast %26 : vector<1x1x128xf32> to vector<2x16x128xf32>
    %28 = arith.mulf %25, %27 : vector<2x16x128xf32>
    %29 = vector.shape_cast %7 : vector<1x128xf32> to vector<1x1x128xf32>
    %30 = vector.broadcast %29 : vector<1x1x128xf32> to vector<2x16x128xf32>
    %31 = arith.addf %28, %30 : vector<2x16x128xf32>
    %32 = vector.shape_cast %31 : vector<2x16x128xf32> to vector<32x128xf32>
    %33 = arith.truncf %32 : vector<32x128xf32> to vector<32x128xbf16>
    %c0_13 = arith.constant 0 : index
    %c0_14 = arith.constant 0 : index
    %c0_15 = arith.constant 0 : index
    %34 = vector.load %arg4[%c0_13, %c0_14, %c0_15] : memref<1x128x384xbf16, #tpu.memory_space<vmem>>, vector<1x128x384xbf16>
    %35 = vector.shape_cast %34 : vector<1x128x384xbf16> to vector<128x384xbf16>
    %cst_16 = arith.constant dense<0.000000e+00> : vector<32x384xf32>
    %36 = tpu.matmul %33, %35, %cst_16 {dimension_numbers = #tpu.dot_dimension_numbers<[1], [0], [0], [1], [0, 0, 1, 1], [], []>} : vector<32x128xbf16>, vector<128x384xbf16>, vector<32x384xf32> -> vector<32x384xf32>
    %c0_17 = arith.constant 0 : index
    %c0_18 = arith.constant 0 : index
    %c0_19 = arith.constant 0 : index
    %37 = vector.load %arg5[%c0_17, %c0_18, %c0_19] : memref<1x1x384xf32, #tpu.memory_space<vmem>>, vector<1x1x384xf32>
    %38 = vector.shape_cast %37 : vector<1x1x384xf32> to vector<1x384xf32>
    %39 = vector.broadcast %38 : vector<1x384xf32> to vector<32x384xf32>
    %40 = arith.addf %36, %39 : vector<32x384xf32>
    %41 = vector.shape_cast %40 : vector<32x384xf32> to vector<2x16x384xf32>
    %42 = vector.extract_strided_slice %41 {offsets = [0, 0, 0], sizes = [2, 16, 64], strides = [1, 1, 1]} : vector<2x16x384xf32> to vector<2x16x64xf32>
    %43 = vector.extract_strided_slice %41 {offsets = [0, 0, 64], sizes = [2, 16, 64], strides = [1, 1, 1]} : vector<2x16x384xf32> to vector<2x16x64xf32>
    %44 = vector.shape_cast %42 : vector<2x16x64xf32> to vector<1x2x16x64xf32>
    %45 = vector.shape_cast %43 : vector<2x16x64xf32> to vector<1x2x16x64xf32>
    %46 = tpu.concatenate %44, %45 in 0 : vector<1x2x16x64xf32>, vector<1x2x16x64xf32> -> vector<2x2x16x64xf32>
    %47 = vector.shape_cast %46 : vector<2x2x16x64xf32> to vector<4x16x64xf32>
    %cst_20 = arith.constant 1.250000e-01 : f32
    %48 = vector.broadcast %cst_20 : f32 to vector<4x16x64xf32>
    %49 = arith.mulf %47, %48 : vector<4x16x64xf32>
    %50 = arith.truncf %49 : vector<4x16x64xf32> to vector<4x16x64xbf16>
    %51 = vector.extract_strided_slice %41 {offsets = [0, 0, 128], sizes = [2, 16, 64], strides = [1, 1, 1]} : vector<2x16x384xf32> to vector<2x16x64xf32>
    %52 = vector.extract_strided_slice %41 {offsets = [0, 0, 192], sizes = [2, 16, 64], strides = [1, 1, 1]} : vector<2x16x384xf32> to vector<2x16x64xf32>
    %53 = vector.shape_cast %51 : vector<2x16x64xf32> to vector<1x2x16x64xf32>
    %54 = vector.shape_cast %52 : vector<2x16x64xf32> to vector<1x2x16x64xf32>
    %55 = tpu.concatenate %53, %54 in 0 : vector<1x2x16x64xf32>, vector<1x2x16x64xf32> -> vector<2x2x16x64xf32>
    %56 = vector.shape_cast %55 : vector<2x2x16x64xf32> to vector<4x16x64xf32>
    %57 = arith.truncf %56 : vector<4x16x64xf32> to vector<4x16x64xbf16>
    %58 = vector.extract_strided_slice %41 {offsets = [0, 0, 256], sizes = [2, 16, 64], strides = [1, 1, 1]} : vector<2x16x384xf32> to vector<2x16x64xf32>
    %59 = vector.extract_strided_slice %41 {offsets = [0, 0, 320], sizes = [2, 16, 64], strides = [1, 1, 1]} : vector<2x16x384xf32> to vector<2x16x64xf32>
    %60 = vector.shape_cast %58 : vector<2x16x64xf32> to vector<1x2x16x64xf32>
    %61 = vector.shape_cast %59 : vector<2x16x64xf32> to vector<1x2x16x64xf32>
    %62 = tpu.concatenate %60, %61 in 0 : vector<1x2x16x64xf32>, vector<1x2x16x64xf32> -> vector<2x2x16x64xf32>
    %63 = vector.shape_cast %62 : vector<2x2x16x64xf32> to vector<4x16x64xf32>
    %64 = arith.truncf %63 : vector<4x16x64xf32> to vector<4x16x64xbf16>
    %65 = tpu.iota {dimensions = array<i32: 0>} : vector<16x16xi32>
    %66 = tpu.iota {dimensions = array<i32: 1>} : vector<16x16xi32>
    %67 = arith.cmpi sle, %66, %65 : vector<16x16xi32>
    %68 = vector.shape_cast %67 : vector<16x16xi1> to vector<1x16x16xi1>
    "tpu.trace_start"() <{level = 10 : i32, message = "bsd,btd->bst"}> : () -> ()
    %cst_21 = arith.constant dense<0.000000e+00> : vector<4x16x16xf32>
    %69 = tpu.matmul %50, %57, %cst_21 {dimension_numbers = #tpu.dot_dimension_numbers<[2], [2], [1], [1], [0, 0, 0, 1, 1, 1], [0], [0]>} : vector<4x16x64xbf16>, vector<4x16x64xbf16>, vector<4x16x16xf32> -> vector<4x16x16xf32>
    %cst_22 = arith.constant -1.000000e+30 : f32
    "tpu.trace_stop"() : () -> ()
    %70 = vector.shape_cast %68 : vector<1x16x16xi1> to vector<1x16x16xi1>
    %71 = vector.broadcast %70 : vector<1x16x16xi1> to vector<4x16x16xi1>
    %72 = vector.broadcast %cst_22 : f32 to vector<4x16x16xf32>
    %73 = arith.select %71, %69, %72 : vector<4x16x16xi1>, vector<4x16x16xf32>
    %cst_23 = arith.constant dense<0xFF800000> : vector<4x16xf32>
    %74 = vector.multi_reduction <maximumf>, %73, %cst_23 [2] : vector<4x16x16xf32> to vector<4x16xf32>
    %75 = vector.shape_cast %74 : vector<4x16xf32> to vector<4x16x1xf32>
    %76 = vector.broadcast %75 : vector<4x16x1xf32> to vector<4x16x16xf32>
    %77 = arith.subf %73, %76 : vector<4x16x16xf32>
    %78 = math.exp %77 : vector<4x16x16xf32>
    %cst_24 = arith.constant dense<0.000000e+00> : vector<4x16xf32>
    %79 = vector.multi_reduction <add>, %78, %cst_24 [2] : vector<4x16x16xf32> to vector<4x16xf32>
    %80 = vector.shape_cast %79 : vector<4x16xf32> to vector<4x16x1xf32>
    %81 = tpu.reciprocal %80 {approx = true} : vector<4x16x1xf32> -> vector<4x16x1xf32>
    %82 = vector.broadcast %81 : vector<4x16x1xf32> to vector<4x16x16xf32>
    %83 = arith.mulf %78, %82 : vector<4x16x16xf32>
    %84 = arith.truncf %83 : vector<4x16x16xf32> to vector<4x16x16xbf16>
    "tpu.trace_start"() <{level = 10 : i32, message = "bst,btd->bsd"}> : () -> ()
    %cst_25 = arith.constant dense<0.000000e+00> : vector<4x16x64xf32>
    %85 = tpu.matmul %84, %64, %cst_25 {dimension_numbers = #tpu.dot_dimension_numbers<[2], [1], [1], [2], [0, 0, 0, 1, 1, 2], [0], [0]>} : vector<4x16x16xbf16>, vector<4x16x64xbf16>, vector<4x16x64xf32> -> vector<4x16x64xf32>
    "tpu.trace_stop"() : () -> ()
    %86 = vector.shape_cast %85 : vector<4x16x64xf32> to vector<2x2x16x64xf32>
    %87 = vector.extract_strided_slice %86 {offsets = [0, 0, 0, 0], sizes = [1, 2, 16, 64], strides = [1, 1, 1, 1]} : vector<2x2x16x64xf32> to vector<1x2x16x64xf32>
    %88 = vector.shape_cast %87 : vector<1x2x16x64xf32> to vector<2x16x64xf32>
    %89 = vector.extract_strided_slice %86 {offsets = [1, 0, 0, 0], sizes = [1, 2, 16, 64], strides = [1, 1, 1, 1]} : vector<2x2x16x64xf32> to vector<1x2x16x64xf32>
    %90 = vector.shape_cast %89 : vector<1x2x16x64xf32> to vector<2x16x64xf32>
    %91 = tpu.concatenate %88, %90 in 2 : vector<2x16x64xf32>, vector<2x16x64xf32> -> vector<2x16x128xf32>
    %92 = vector.shape_cast %91 : vector<2x16x128xf32> to vector<32x128xf32>
    %93 = arith.truncf %92 : vector<32x128xf32> to vector<32x128xbf16>
    %c0_26 = arith.constant 0 : index
    %c0_27 = arith.constant 0 : index
    %c0_28 = arith.constant 0 : index
    %94 = vector.load %arg6[%c0_26, %c0_27, %c0_28] : memref<1x128x128xbf16, #tpu.memory_space<vmem>>, vector<1x128x128xbf16>
    %95 = vector.shape_cast %94 : vector<1x128x128xbf16> to vector<128x128xbf16>
    %cst_29 = arith.constant dense<0.000000e+00> : vector<32x128xf32>
    %96 = tpu.matmul %93, %95, %cst_29 {dimension_numbers = #tpu.dot_dimension_numbers<[1], [0], [0], [1], [0, 0, 1, 1], [], []>} : vector<32x128xbf16>, vector<128x128xbf16>, vector<32x128xf32> -> vector<32x128xf32>
    %c0_30 = arith.constant 0 : index
    %c0_31 = arith.constant 0 : index
    %c0_32 = arith.constant 0 : index
    %97 = vector.load %arg7[%c0_30, %c0_31, %c0_32] : memref<1x1x128xf32, #tpu.memory_space<vmem>>, vector<1x1x128xf32>
    %98 = vector.shape_cast %97 : vector<1x1x128xf32> to vector<1x128xf32>
    %99 = vector.broadcast %98 : vector<1x128xf32> to vector<32x128xf32>
    %100 = arith.addf %96, %99 : vector<32x128xf32>
    %101 = vector.shape_cast %100 : vector<32x128xf32> to vector<2x16x128xf32>
    %102 = arith.addf %3, %101 : vector<2x16x128xf32>
    %c0_33 = arith.constant 0 : index
    %c0_34 = arith.constant 0 : index
    %c0_35 = arith.constant 0 : index
    %103 = vector.load %arg8[%c0_33, %c0_34, %c0_35] : memref<1x1x128xf32, #tpu.memory_space<vmem>>, vector<1x1x128xf32>
    %104 = vector.shape_cast %103 : vector<1x1x128xf32> to vector<1x128xf32>
    %c0_36 = arith.constant 0 : index
    %c0_37 = arith.constant 0 : index
    %c0_38 = arith.constant 0 : index
    %105 = vector.load %arg9[%c0_36, %c0_37, %c0_38] : memref<1x1x128xf32, #tpu.memory_space<vmem>>, vector<1x1x128xf32>
    %106 = vector.shape_cast %105 : vector<1x1x128xf32> to vector<1x128xf32>
    %cst_39 = arith.constant dense<0.000000e+00> : vector<2x16xf32>
    %107 = vector.multi_reduction <add>, %102, %cst_39 [2] : vector<2x16x128xf32> to vector<2x16xf32>
    %108 = vector.shape_cast %107 : vector<2x16xf32> to vector<2x16x1xf32>
    %cst_40 = arith.constant 1.280000e+02 : f32
    %109 = vector.broadcast %cst_40 : f32 to vector<2x16x1xf32>
    %110 = arith.divf %108, %109 : vector<2x16x1xf32>
    %111 = vector.broadcast %110 : vector<2x16x1xf32> to vector<2x16x128xf32>
    %112 = arith.subf %102, %111 : vector<2x16x128xf32>
    %113 = arith.mulf %112, %112 : vector<2x16x128xf32>
    %cst_41 = arith.constant dense<0.000000e+00> : vector<2x16xf32>
    %114 = vector.multi_reduction <add>, %113, %cst_41 [2] : vector<2x16x128xf32> to vector<2x16xf32>
    %115 = vector.shape_cast %114 : vector<2x16xf32> to vector<2x16x1xf32>
    %cst_42 = arith.constant 1.280000e+02 : f32
    %116 = vector.broadcast %cst_42 : f32 to vector<2x16x1xf32>
    %117 = arith.divf %115, %116 : vector<2x16x1xf32>
    %118 = vector.broadcast %110 : vector<2x16x1xf32> to vector<2x16x128xf32>
    %119 = arith.subf %102, %118 : vector<2x16x128xf32>
    %cst_43 = arith.constant 9.99999974E-6 : f32
    %120 = vector.broadcast %cst_43 : f32 to vector<2x16x1xf32>
    %121 = arith.addf %117, %120 : vector<2x16x1xf32>
    %122 = math.rsqrt %121 : vector<2x16x1xf32>
    %123 = vector.broadcast %122 : vector<2x16x1xf32> to vector<2x16x128xf32>
    %124 = arith.mulf %119, %123 : vector<2x16x128xf32>
    %125 = vector.shape_cast %104 : vector<1x128xf32> to vector<1x1x128xf32>
    %126 = vector.broadcast %125 : vector<1x1x128xf32> to vector<2x16x128xf32>
    %127 = arith.mulf %124, %126 : vector<2x16x128xf32>
    %128 = vector.shape_cast %106 : vector<1x128xf32> to vector<1x1x128xf32>
    %129 = vector.broadcast %128 : vector<1x1x128xf32> to vector<2x16x128xf32>
    %130 = arith.addf %127, %129 : vector<2x16x128xf32>
    %131 = vector.shape_cast %130 : vector<2x16x128xf32> to vector<32x128xf32>
    %132 = arith.truncf %131 : vector<32x128xf32> to vector<32x128xbf16>
    %c0_44 = arith.constant 0 : index
    %c0_45 = arith.constant 0 : index
    %c0_46 = arith.constant 0 : index
    %133 = vector.load %arg10[%c0_44, %c0_45, %c0_46] : memref<1x128x512xbf16, #tpu.memory_space<vmem>>, vector<1x128x512xbf16>
    %134 = vector.shape_cast %133 : vector<1x128x512xbf16> to vector<128x512xbf16>
    %cst_47 = arith.constant dense<0.000000e+00> : vector<32x512xf32>
    %135 = tpu.matmul %132, %134, %cst_47 {dimension_numbers = #tpu.dot_dimension_numbers<[1], [0], [0], [1], [0, 0, 1, 1], [], []>} : vector<32x128xbf16>, vector<128x512xbf16>, vector<32x512xf32> -> vector<32x512xf32>
    %c0_48 = arith.constant 0 : index
    %c0_49 = arith.constant 0 : index
    %c0_50 = arith.constant 0 : index
    %136 = vector.load %arg11[%c0_48, %c0_49, %c0_50] : memref<1x1x512xf32, #tpu.memory_space<vmem>>, vector<1x1x512xf32>
    %137 = vector.shape_cast %136 : vector<1x1x512xf32> to vector<1x512xf32>
    %138 = vector.broadcast %137 : vector<1x512xf32> to vector<32x512xf32>
    %139 = arith.addf %135, %138 : vector<32x512xf32>
    %cst_51 = arith.constant 5.000000e-01 : f32
    %140 = vector.broadcast %cst_51 : f32 to vector<32x512xf32>
    %141 = arith.mulf %140, %139 : vector<32x512xf32>
    %cst_52 = arith.constant 4.471500e-02 : f32
    %142 = vector.broadcast %cst_52 : f32 to vector<32x512xf32>
    %143 = arith.mulf %142, %139 : vector<32x512xf32>
    %144 = arith.mulf %143, %139 : vector<32x512xf32>
    %145 = arith.mulf %144, %139 : vector<32x512xf32>
    %146 = arith.addf %139, %145 : vector<32x512xf32>
    %cst_53 = arith.constant 0.797884583 : f32
    %147 = vector.broadcast %cst_53 : f32 to vector<32x512xf32>
    %148 = arith.mulf %147, %146 : vector<32x512xf32>
    %149 = math.tanh %148 : vector<32x512xf32>
    %cst_54 = arith.constant 1.000000e+00 : f32
    %150 = vector.broadcast %cst_54 : f32 to vector<32x512xf32>
    %151 = arith.addf %150, %149 : vector<32x512xf32>
    %152 = arith.mulf %141, %151 : vector<32x512xf32>
    %153 = arith.truncf %152 : vector<32x512xf32> to vector<32x512xbf16>
    %c0_55 = arith.constant 0 : index
    %c0_56 = arith.constant 0 : index
    %c0_57 = arith.constant 0 : index
    %154 = vector.load %arg12[%c0_55, %c0_56, %c0_57] : memref<1x512x128xbf16, #tpu.memory_space<vmem>>, vector<1x512x128xbf16>
    %155 = vector.shape_cast %154 : vector<1x512x128xbf16> to vector<512x128xbf16>
    %cst_58 = arith.constant dense<0.000000e+00> : vector<32x128xf32>
    %156 = tpu.matmul %153, %155, %cst_58 {dimension_numbers = #tpu.dot_dimension_numbers<[1], [0], [0], [1], [0, 0, 1, 1], [], []>} : vector<32x512xbf16>, vector<512x128xbf16>, vector<32x128xf32> -> vector<32x128xf32>
    %c0_59 = arith.constant 0 : index
    %c0_60 = arith.constant 0 : index
    %c0_61 = arith.constant 0 : index
    %157 = vector.load %arg13[%c0_59, %c0_60, %c0_61] : memref<1x1x128xf32, #tpu.memory_space<vmem>>, vector<1x1x128xf32>
    %158 = vector.shape_cast %157 : vector<1x1x128xf32> to vector<1x128xf32>
    %159 = vector.broadcast %158 : vector<1x128xf32> to vector<32x128xf32>
    %160 = arith.addf %156, %159 : vector<32x128xf32>
    %161 = vector.shape_cast %160 : vector<32x128xf32> to vector<2x16x128xf32>
    %162 = arith.addf %102, %161 : vector<2x16x128xf32>
    %c0_62 = arith.constant 0 : index
    %c0_63 = arith.constant 0 : index
    %c0_64 = arith.constant 0 : index
    %163 = vector.load %arg17[%c0_62, %c0_63, %c0_64] : memref<2x16x128xf32, #tpu.memory_space<vmem>>, vector<2x16x128xf32>
    tpu.vector_store %arg17[%c0_62, %c0_63, %c0_64], %162 {strides = array<i32>} : memref<2x16x128xf32, #tpu.memory_space<vmem>>, vector<2x16x128xf32>,
    %c1_i32 = arith.constant 1 : i32
    %164 = arith.cmpi eq, %arg0, %c1_i32 : i32
    %165 = arith.extui %164 : i1 to i32
    %c0_i32_65 = arith.constant 0 : i32
    %166 = arith.cmpi ne, %165, %c0_i32_65 : i32
    scf.if %166 {
      %c0_66 = arith.constant 0 : index
      %c0_67 = arith.constant 0 : index
      %c0_68 = arith.constant 0 : index
      %167 = vector.load %arg14[%c0_66, %c0_67, %c0_68] : memref<1x1x128xf32, #tpu.memory_space<vmem>>, vector<1x1x128xf32>
      %168 = vector.shape_cast %167 : vector<1x1x128xf32> to vector<1x128xf32>
      %c0_69 = arith.constant 0 : index
      %c0_70 = arith.constant 0 : index
      %c0_71 = arith.constant 0 : index
      %169 = vector.load %arg15[%c0_69, %c0_70, %c0_71] : memref<1x1x128xf32, #tpu.memory_space<vmem>>, vector<1x1x128xf32>
      %170 = vector.shape_cast %169 : vector<1x1x128xf32> to vector<1x128xf32>
      %cst_72 = arith.constant dense<0.000000e+00> : vector<2x16xf32>
      %171 = vector.multi_reduction <add>, %162, %cst_72 [2] : vector<2x16x128xf32> to vector<2x16xf32>
      %172 = vector.shape_cast %171 : vector<2x16xf32> to vector<2x16x1xf32>
      %cst_73 = arith.constant 1.280000e+02 : f32
      %173 = vector.broadcast %cst_73 : f32 to vector<2x16x1xf32>
      %174 = arith.divf %172, %173 : vector<2x16x1xf32>
      %175 = vector.broadcast %174 : vector<2x16x1xf32> to vector<2x16x128xf32>
      %176 = arith.subf %162, %175 : vector<2x16x128xf32>
      %177 = arith.mulf %176, %176 : vector<2x16x128xf32>
      %cst_74 = arith.constant dense<0.000000e+00> : vector<2x16xf32>
      %178 = vector.multi_reduction <add>, %177, %cst_74 [2] : vector<2x16x128xf32> to vector<2x16xf32>
      %179 = vector.shape_cast %178 : vector<2x16xf32> to vector<2x16x1xf32>
      %cst_75 = arith.constant 1.280000e+02 : f32
      %180 = vector.broadcast %cst_75 : f32 to vector<2x16x1xf32>
      %181 = arith.divf %179, %180 : vector<2x16x1xf32>
      %182 = vector.broadcast %174 : vector<2x16x1xf32> to vector<2x16x128xf32>
      %183 = arith.subf %162, %182 : vector<2x16x128xf32>
      %cst_76 = arith.constant 9.99999974E-6 : f32
      %184 = vector.broadcast %cst_76 : f32 to vector<2x16x1xf32>
      %185 = arith.addf %181, %184 : vector<2x16x1xf32>
      %186 = math.rsqrt %185 : vector<2x16x1xf32>
      %187 = vector.broadcast %186 : vector<2x16x1xf32> to vector<2x16x128xf32>
      %188 = arith.mulf %183, %187 : vector<2x16x128xf32>
      %189 = vector.shape_cast %168 : vector<1x128xf32> to vector<1x1x128xf32>
      %190 = vector.broadcast %189 : vector<1x1x128xf32> to vector<2x16x128xf32>
      %191 = arith.mulf %188, %190 : vector<2x16x128xf32>
      %192 = vector.shape_cast %170 : vector<1x128xf32> to vector<1x1x128xf32>
      %193 = vector.broadcast %192 : vector<1x1x128xf32> to vector<2x16x128xf32>
      %194 = arith.addf %191, %193 : vector<2x16x128xf32>
      %c0_77 = arith.constant 0 : index
      %c0_78 = arith.constant 0 : index
      %c0_79 = arith.constant 0 : index
      %195 = vector.load %arg16[%c0_77, %c0_78, %c0_79] : memref<2x16x128xf32, #tpu.memory_space<vmem>>, vector<2x16x128xf32>
      tpu.vector_store %arg16[%c0_77, %c0_78, %c0_79], %194 {strides = array<i32>} : memref<2x16x128xf32, #tpu.memory_space<vmem>>, vector<2x16x128xf32>,
    } else {
    }
    return
  }
  func.func @transform_1(%arg0: i32) -> (i32, i32, i32) {
    %c0_i32 = arith.constant 0 : i32
    %c0_i32_0 = arith.constant 0 : i32
    %c0_i32_1 = arith.constant 0 : i32
    return %arg0, %c0_i32, %c0_i32_0 : i32, i32, i32
  }
  func.func @transform_2(%arg0: i32) -> (i32, i32, i32) {
    %c0_i32 = arith.constant 0 : i32
    %c0_i32_0 = arith.constant 0 : i32
    %c0_i32_1 = arith.constant 0 : i32
    return %arg0, %c0_i32, %c0_i32_0 : i32, i32, i32
  }
  func.func @transform_3(%arg0: i32) -> (i32, i32, i32) {
    %c0_i32 = arith.constant 0 : i32
    %c0_i32_0 = arith.constant 0 : i32
    %c0_i32_1 = arith.constant 0 : i32
    return %arg0, %c0_i32, %c0_i32_0 : i32, i32, i32
  }
  func.func @transform_4(%arg0: i32) -> (i32, i32, i32) {
    %c0_i32 = arith.constant 0 : i32
    %c0_i32_0 = arith.constant 0 : i32
    %c0_i32_1 = arith.constant 0 : i32
    return %arg0, %c0_i32, %c0_i32_0 : i32, i32, i32
  }
  func.func @transform_5(%arg0: i32) -> (i32, i32, i32) {
    %c0_i32 = arith.constant 0 : i32
    %c0_i32_0 = arith.constant 0 : i32
    %c0_i32_1 = arith.constant 0 : i32
    return %arg0, %c0_i32, %c0_i32_0 : i32, i32, i32
  }
  func.func @transform_6(%arg0: i32) -> (i32, i32, i32) {
    %c0_i32 = arith.constant 0 : i32
    %c0_i32_0 = arith.constant 0 : i32
    %c0_i32_1 = arith.constant 0 : i32
    return %arg0, %c0_i32, %c0_i32_0 : i32, i32, i32
  }
  func.func @transform_7(%arg0: i32) -> (i32, i32, i32) {
    %c0_i32 = arith.constant 0 : i32
    %c0_i32_0 = arith.constant 0 : i32
    %c0_i32_1 = arith.constant 0 : i32
    return %arg0, %c0_i32, %c0_i32_0 : i32, i32, i32
  }
  func.func @transform_8(%arg0: i32) -> (i32, i32, i32) {
    %c0_i32 = arith.constant 0 : i32
    %c0_i32_0 = arith.constant 0 : i32
    %c0_i32_1 = arith.constant 0 : i32
    return %arg0, %c0_i32, %c0_i32_0 : i32, i32, i32
  }
  func.func @transform_9(%arg0: i32) -> (i32, i32, i32) {
    %c0_i32 = arith.constant 0 : i32
    %c0_i32_0 = arith.constant 0 : i32
    %c0_i32_1 = arith.constant 0 : i32
    return %arg0, %c0_i32, %c0_i32_0 : i32, i32, i32
  }
  func.func @transform_10(%arg0: i32) -> (i32, i32, i32) {
    %c0_i32 = arith.constant 0 : i32
    %c0_i32_0 = arith.constant 0 : i32
    %c0_i32_1 = arith.constant 0 : i32
    return %arg0, %c0_i32, %c0_i32_0 : i32, i32, i32
  }
  func.func @transform_11(%arg0: i32) -> (i32, i32, i32) {
    %c0_i32 = arith.constant 0 : i32
    %c0_i32_0 = arith.constant 0 : i32
    %c0_i32_1 = arith.constant 0 : i32
    return %arg0, %c0_i32, %c0_i32_0 : i32, i32, i32
  }
  func.func @transform_12(%arg0: i32) -> (i32, i32, i32) {
    %c0_i32 = arith.constant 0 : i32
    %c0_i32_0 = arith.constant 0 : i32
    %c0_i32_1 = arith.constant 0 : i32
    return %arg0, %c0_i32, %c0_i32_0 : i32, i32, i32
  }
  func.func @transform_13(%arg0: i32) -> (i32, i32, i32) {
    %c0_i32 = arith.constant 0 : i32
    %c0_i32_0 = arith.constant 0 : i32
    %c0_i32_1 = arith.constant 0 : i32
    %c0_i32_2 = arith.constant 0 : i32
    return %c0_i32, %c0_i32_0, %c0_i32_1 : i32, i32, i32
  }
  func.func @transform_14(%arg0: i32) -> (i32, i32, i32) {
    %c0_i32 = arith.constant 0 : i32
    %c0_i32_0 = arith.constant 0 : i32
    %c0_i32_1 = arith.constant 0 : i32
    %c0_i32_2 = arith.constant 0 : i32
    return %c0_i32, %c0_i32_0, %c0_i32_1 : i32, i32, i32
  }
  func.func @transform_15(%arg0: i32) -> (i32, i32, i32) {
    %c0_i32 = arith.constant 0 : i32
    %c0_i32_0 = arith.constant 0 : i32
    %c0_i32_1 = arith.constant 0 : i32
    %c0_i32_2 = arith.constant 0 : i32
    return %c0_i32, %c0_i32_0, %c0_i32_1 : i32, i32, i32
  }
}

</mosaic_0001>

<llo_original>
// kernel: tpu_custom_call.1
$region0: #{tpu_custom_call.1}
  #allocation0 [shape = 'u32[]', space=smem, size = 0x4, offset = 0x4, fixed_abs, tag = 'smem constant byte address 0x4 - core index']
  #allocation1 [shape = 'u32[72,128]{1,0:T(1,128)}', space=vmem, size = 0x9000, scoped, tag = 'internal scratch']
  #allocation2 [shape = 'f32[2,16,128]{2,1,0:T(8,128)}', space=vmem, size = 0x4000, scoped, tag = 'scratch operand']
  #allocation22 [shape = 's32[]', space=sflag, size = 0x4, offset = 0, fixed_abs, tag = 'sflag constant byte address 0x0 - dummy sync flag']
  #allocation23 [shape = 's32[]', space=sflag, size = 0x4, offset = 0, fixed_abs, tag = 'sflag constant byte address 0x0 - dummy sync flag']
  #allocation24 [shape = 'u32[]', space=smem, size = 0x4, offset = 0x44, fixed_abs, tag = 'smem constant byte address 0x44 - assertion arg 0']
  #allocation25 [shape = 'u32[]', space=smem, size = 0x4, offset = 0x48, fixed_abs, tag = 'smem constant byte address 0x48 - assertion arg 1']
  %s0 = inlined_call_operand.hbm [shape: f32[2,16,128], index: 0, kind: input, shape index: {}]
  %s1 = inlined_call_operand.hbm [shape: f32[2,1,128], index: 1, kind: input, shape index: {}]
  %s2 = inlined_call_operand.hbm [shape: f32[2,1,128], index: 2, kind: input, shape index: {}]
  %s3 = inlined_call_operand.hbm [shape: bf16[2,128,384], index: 3, kind: input, shape index: {}]
  %s4 = inlined_call_operand.hbm [shape: f32[2,1,384], index: 4, kind: input, shape index: {}]
  %s5 = inlined_call_operand.hbm [shape: bf16[2,128,128], index: 5, kind: input, shape index: {}]
  %s6 = inlined_call_operand.hbm [shape: f32[2,1,128], index: 6, kind: input, shape index: {}]
  %s7 = inlined_call_operand.hbm [shape: f32[2,1,128], index: 7, kind: input, shape index: {}]
  %s8 = inlined_call_operand.hbm [shape: f32[2,1,128], index: 8, kind: input, shape index: {}]
  %s9 = inlined_call_operand.hbm [shape: bf16[2,128,512], index: 9, kind: input, shape index: {}]
  %s10 = inlined_call_operand.vmem [shape: f32[2,1,512], index: 10, kind: input, shape index: {}]
  %s11 = inlined_call_operand.hbm [shape: bf16[2,512,128], index: 11, kind: input, shape index: {}]
  %s12 = inlined_call_operand.vmem [shape: f32[2,1,128], index: 12, kind: input, shape index: {}]
  %s13 = inlined_call_operand.vmem [shape: f32[1,1,128], index: 13, kind: input, shape index: {}]
  %s14 = inlined_call_operand.vmem [shape: f32[1,1,128], index: 14, kind: input, shape index: {}]
  %s15 = inlined_call_operand.hbm [shape: f32[2,16,128], index: 15, kind: output, shape index: {}]
  %s16 = sld [smem:[#allocation0]]
  $region142: #{tpu_custom_call.1} parent=0
    _
  %s18 = ssub.s32 1, %s16
  %s19 = scalar_select 0, %s18, %s16
  $region1: #{tpu_custom_call.1} parent=0
    #allocation3 [shape = 'u8[1024]{0}', space=vmem, size = 0x400, scoped, tag = 'input window, operand 1']
    #allocation4 [shape = 's32[2]{0}', space=sflag, size = 0x8, scoped, tag = 'scoped memory for tpu_custom_call.1']
    #allocation5 [shape = 's32[2]{0}', space=sflag, size = 0x8, scoped, tag = 'scoped memory for tpu_custom_call.1']
    #allocation6 [shape = 'u8[1024]{0}', space=vmem, size = 0x400, scoped, tag = 'input window, operand 2']
    #allocation7 [shape = 's32[2]{0}', space=sflag, size = 0x8, scoped, tag = 'scoped memory for tpu_custom_call.1']
    #allocation8 [shape = 'u8[196608]{0}', space=vmem, size = 0x30000, scoped, tag = 'input window, operand 3']
    #allocation9 [shape = 'u8[3072]{0}', space=vmem, size = 0xc00, scoped, tag = 'input window, operand 4']
    #allocation10 [shape = 's32[2]{0}', space=sflag, size = 0x8, scoped, tag = 'scoped memory for tpu_custom_call.1']
    #allocation11 [shape = 'u8[65536]{0}', space=vmem, size = 0x10000, scoped, tag = 'input window, operand 5']
    #allocation12 [shape = 'u8[1024]{0}', space=vmem, size = 0x400, scoped, tag = 'input window, operand 6']
    #allocation13 [shape = 's32[2]{0}', space=sflag, size = 0x8, scoped, tag = 'scoped memory for tpu_custom_call.1']
    #allocation14 [shape = 'u8[1024]{0}', space=vmem, size = 0x400, scoped, tag = 'input window, operand 7']
    #allocation15 [shape = 'u8[1024]{0}', space=vmem, size = 0x400, scoped, tag = 'input window, operand 8']
    #allocation16 [shape = 's32[2]{0}', space=sflag, size = 0x8, scoped, tag = 'scoped memory for tpu_custom_call.1']
    #allocation17 [shape = 'u8[262144]{0}', space=vmem, size = 0x40000, scoped, tag = 'input window, operand 9']
    #allocation18 [shape = 'u8[262144]{0}', space=vmem, size = 0x40000, scoped, tag = 'input window, operand 11']
    #allocation19 [shape = 's32[2]{0}', space=sflag, size = 0x8, scoped, tag = 'scoped memory for tpu_custom_call.1']
    #allocation20 [shape = 'u8[16384]{0}', space=vmem, size = 0x4000, scoped, tag = 'output window, operand 0, single buffered']
    %20 = vsyncpa [#allocation4], 0
    %s21 = scalar_lea.sflag [#allocation4], 1
    %22 = vsyncpa %s21, 0
    %23 = vsyncpa [#allocation7], 0
    %s24 = scalar_lea.sflag [#allocation7], 1
    %25 = vsyncpa %s24, 0
    %26 = vsyncpa [#allocation10], 0
    %s27 = scalar_lea.sflag [#allocation10], 1
    %28 = vsyncpa %s27, 0
    %29 = vsyncpa [#allocation13], 0
    %s30 = scalar_lea.sflag [#allocation13], 1
    %31 = vsyncpa %s30, 0
    %32 = vsyncpa [#allocation16], 0
    %s33 = scalar_lea.sflag [#allocation16], 1
    %34 = vsyncpa %s33, 0
    %35 = vsyncpa [#allocation19], 0
    %s36 = scalar_lea.sflag [#allocation19], 1
    %37 = vsyncpa %s36, 0
    %38 = vsyncpa [#allocation5], 0
    loop: start=0, step=1, limit=4
    $region2: #{tpu_custom_call.1} parent=1 // loop_pre_header
      _
    $region3: #{tpu_custom_call.1} parent=1 // loop_header
      %s40 = sphi 0, %s44
      %p41 = scmp.ge.s32.totalorder %s40, 4
      %s50 = sphi 0, %s52
      %s53 = sphi 0, %s50
      %s54 = sphi 0, %s53
      %s70 = sphi 0, %s54
      %s76 = sphi 0, %s78
      %s79 = sphi 0, %s76
      %s80 = sphi 0, %s79
      %s96 = sphi 0, %s80
      %s102 = sphi 0, %s104
      %s105 = sphi 0, %s102
      %s106 = sphi 0, %s105
      %s122 = sphi 0, %s106
      %s128 = sphi 0, %s130
      %s131 = sphi 0, %s128
      %s132 = sphi 0, %s131
      %s148 = sphi 0, %s132
      %s154 = sphi 0, %s156
      %s157 = sphi 0, %s154
      %s158 = sphi 0, %s157
      %s174 = sphi 0, %s158
      %s180 = sphi 0, %s182
      %s183 = sphi 0, %s180
      %s184 = sphi 0, %s183
      %s200 = sphi 0, %s184
      %s206 = sphi 0, %s208
      %s209 = sphi 0, %s206
      %s210 = sphi 0, %s209
      %s226 = sphi 0, %s210
      %s232 = sphi 0, %s234
      %s235 = sphi 0, %s232
      %s236 = sphi 0, %s235
      %s252 = sphi 0, %s236
      %s258 = sphi 0, %s260
      %s261 = sphi 0, %s258
      %s262 = sphi 0, %s261
      %s278 = sphi 0, %s262
      %s284 = sphi 0, %s286
      %s287 = sphi 0, %s284
      %s288 = sphi 0, %s287
      %s304 = sphi 0, %s288
      %s310 = sphi 0, %s312
      %s313 = sphi 0, %s310
      %s314 = sphi 0, %s313
      %s330 = sphi 0, %s314
      %s336 = sphi 0, %s338
      %s339 = sphi 0, %s336
      %s340 = sphi 0, %s339
      %s356 = sphi 0, %s340
      %s360 = sphi 0, %s360
      %s362 = sphi 0, %s360
      %s363 = sphi 0, %s362
      %s377 = sphi 0, %s363
      %s381 = sphi 0, %s381
      %s383 = sphi 0, %s381
      %s384 = sphi 0, %s383
      %s398 = sphi 0, %s384
      %s402 = sphi 0, %s402
      %s404 = sphi 0, %s402
      %s405 = sphi 0, %s404
      %s419 = sphi 0, %s405
    $region4: #{tpu_custom_call.1} parent=1 // loop_header_branch
      %43 = sbr.rel (%p41) target = $region8
    $region5: #{tpu_custom_call.1} parent=1 // loop_body
      %s45 = ssub.s32 %s40, 1
      %s46 = ssub.s32 %s40, 2
      %s47 = sadd.s32 %s40, 1
      %s48 = ssub.s32 %s40, %s47
      %p49 = scmp.eq.s32.totalorder %s48, 0
      %s51 = sadd.s32 %s50, 1
      %s52 = scalar_select %p49, %s50, %s51
      %p55 = pneg %p49
      %p56 = scmp.eq.s32.totalorder %s40, 1
      %p57 = por %p55, %p56
      %p58 = scmp.ne.s32.totalorder %s50, %s53
      %p59 = scmp.eq.s32.totalorder %s40, 0
      %p60 = por %p58, %p59
      %p61 = scmp.ne.s32.totalorder %s50, %s53
      %p62 = scmp.eq.s32.totalorder %s45, 1
      %p63 = por %p61, %p62
      %p64 = scmp.ne.s32.totalorder %s53, %s54
      %p65 = scmp.eq.s32.totalorder %s45, 0
      %p66 = por %p64, %p65
      %p67 = scmp.ne.s32.totalorder %s53, %s54
      %p68 = scmp.eq.s32.totalorder %s46, 1
      %p69 = por %p67, %p68
      %p71 = scmp.ne.s32.totalorder %s54, %s70
      %p72 = scmp.eq.s32.totalorder %s46, 0
      %p73 = por %p71, %p72
      %s74 = ssub.s32 %s40, %s47
      %p75 = scmp.eq.s32.totalorder %s74, 0
      %s77 = sadd.s32 %s76, 1
      %s78 = scalar_select %p75, %s76, %s77
      %p81 = pneg %p75
      %p82 = scmp.eq.s32.totalorder %s40, 1
      %p83 = por %p81, %p82
      %p84 = scmp.ne.s32.totalorder %s76, %s79
      %p85 = scmp.eq.s32.totalorder %s40, 0
      %p86 = por %p84, %p85
      %p87 = scmp.ne.s32.totalorder %s76, %s79
      %p88 = scmp.eq.s32.totalorder %s45, 1
      %p89 = por %p87, %p88
      %p90 = scmp.ne.s32.totalorder %s79, %s80
      %p91 = scmp.eq.s32.totalorder %s45, 0
      %p92 = por %p90, %p91
      %p93 = scmp.ne.s32.totalorder %s79, %s80
      %p94 = scmp.eq.s32.totalorder %s46, 1
      %p95 = por %p93, %p94
      %p97 = scmp.ne.s32.totalorder %s80, %s96
      %p98 = scmp.eq.s32.totalorder %s46, 0
      %p99 = por %p97, %p98
      %s100 = ssub.s32 %s40, %s47
      %p101 = scmp.eq.s32.totalorder %s100, 0
      %s103 = sadd.s32 %s102, 1
      %s104 = scalar_select %p101, %s102, %s103
      %p107 = pneg %p101
      %p108 = scmp.eq.s32.totalorder %s40, 1
      %p109 = por %p107, %p108
      %p110 = scmp.ne.s32.totalorder %s102, %s105
      %p111 = scmp.eq.s32.totalorder %s40, 0
      %p112 = por %p110, %p111
      %p113 = scmp.ne.s32.totalorder %s102, %s105
      %p114 = scmp.eq.s32.totalorder %s45, 1
      %p115 = por %p113, %p114
      %p116 = scmp.ne.s32.totalorder %s105, %s106
      %p117 = scmp.eq.s32.totalorder %s45, 0
      %p118 = por %p116, %p117
      %p119 = scmp.ne.s32.totalorder %s105, %s106
      %p120 = scmp.eq.s32.totalorder %s46, 1
      %p121 = por %p119, %p120
      %p123 = scmp.ne.s32.totalorder %s106, %s122
      %p124 = scmp.eq.s32.totalorder %s46, 0
      %p125 = por %p123, %p124
      %s126 = ssub.s32 %s40, %s47
      %p127 = scmp.eq.s32.totalorder %s126, 0
      %s129 = sadd.s32 %s128, 1
      %s130 = scalar_select %p127, %s128, %s129
      %p133 = pneg %p127
      %p134 = scmp.eq.s32.totalorder %s40, 1
      %p135 = por %p133, %p134
      %p136 = scmp.ne.s32.totalorder %s128, %s131
      %p137 = scmp.eq.s32.totalorder %s40, 0
      %p138 = por %p136, %p137
      %p139 = scmp.ne.s32.totalorder %s128, %s131
      %p140 = scmp.eq.s32.totalorder %s45, 1
      %p141 = por %p139, %p140
      %p142 = scmp.ne.s32.totalorder %s131, %s132
      %p143 = scmp.eq.s32.totalorder %s45, 0
      %p144 = por %p142, %p143
      %p145 = scmp.ne.s32.totalorder %s131, %s132
      %p146 = scmp.eq.s32.totalorder %s46, 1
      %p147 = por %p145, %p146
      %p149 = scmp.ne.s32.totalorder %s132, %s148
      %p150 = scmp.eq.s32.totalorder %s46, 0
      %p151 = por %p149, %p150
      %s152 = ssub.s32 %s40, %s47
      %p153 = scmp.eq.s32.totalorder %s152, 0
      %s155 = sadd.s32 %s154, 1
      %s156 = scalar_select %p153, %s154, %s155
      %p159 = pneg %p153
      %p160 = scmp.eq.s32.totalorder %s40, 1
      %p161 = por %p159, %p160
      %p162 = scmp.ne.s32.totalorder %s154, %s157
      %p163 = scmp.eq.s32.totalorder %s40, 0
      %p164 = por %p162, %p163
      %p165 = scmp.ne.s32.totalorder %s154, %s157
      %p166 = scmp.eq.s32.totalorder %s45, 1
      %p167 = por %p165, %p166
      %p168 = scmp.ne.s32.totalorder %s157, %s158
      %p169 = scmp.eq.s32.totalorder %s45, 0
      %p170 = por %p168, %p169
      %p171 = scmp.ne.s32.totalorder %s157, %s158
      %p172 = scmp.eq.s32.totalorder %s46, 1
      %p173 = por %p171, %p172
      %p175 = scmp.ne.s32.totalorder %s158, %s174
      %p176 = scmp.eq.s32.totalorder %s46, 0
      %p177 = por %p175, %p176
      %s178 = ssub.s32 %s40, %s47
      %p179 = scmp.eq.s32.totalorder %s178, 0
      %s181 = sadd.s32 %s180, 1
      %s182 = scalar_select %p179, %s180, %s181
      %p185 = pneg %p179
      %p186 = scmp.eq.s32.totalorder %s40, 1
      %p187 = por %p185, %p186
      %p188 = scmp.ne.s32.totalorder %s180, %s183
      %p189 = scmp.eq.s32.totalorder %s40, 0
      %p190 = por %p188, %p189
      %p191 = scmp.ne.s32.totalorder %s180, %s183
      %p192 = scmp.eq.s32.totalorder %s45, 1
      %p193 = por %p191, %p192
      %p194 = scmp.ne.s32.totalorder %s183, %s184
      %p195 = scmp.eq.s32.totalorder %s45, 0
      %p196 = por %p194, %p195
      %p197 = scmp.ne.s32.totalorder %s183, %s184
      %p198 = scmp.eq.s32.totalorder %s46, 1
      %p199 = por %p197, %p198
      %p201 = scmp.ne.s32.totalorder %s184, %s200
      %p202 = scmp.eq.s32.totalorder %s46, 0
      %p203 = por %p201, %p202
      %s204 = ssub.s32 %s40, %s47
      %p205 = scmp.eq.s32.totalorder %s204, 0
      %s207 = sadd.s32 %s206, 1
      %s208 = scalar_select %p205, %s206, %s207
      %p211 = pneg %p205
      %p212 = scmp.eq.s32.totalorder %s40, 1
      %p213 = por %p211, %p212
      %p214 = scmp.ne.s32.totalorder %s206, %s209
      %p215 = scmp.eq.s32.totalorder %s40, 0
      %p216 = por %p214, %p215
      %p217 = scmp.ne.s32.totalorder %s206, %s209
      %p218 = scmp.eq.s32.totalorder %s45, 1
      %p219 = por %p217, %p218
      %p220 = scmp.ne.s32.totalorder %s209, %s210
      %p221 = scmp.eq.s32.totalorder %s45, 0
      %p222 = por %p220, %p221
      %p223 = scmp.ne.s32.totalorder %s209, %s210
      %p224 = scmp.eq.s32.totalorder %s46, 1
      %p225 = por %p223, %p224
      %p227 = scmp.ne.s32.totalorder %s210, %s226
      %p228 = scmp.eq.s32.totalorder %s46, 0
      %p229 = por %p227, %p228
      %s230 = ssub.s32 %s40, %s47
      %p231 = scmp.eq.s32.totalorder %s230, 0
      %s233 = sadd.s32 %s232, 1
      %s234 = scalar_select %p231, %s232, %s233
      %p237 = pneg %p231
      %p238 = scmp.eq.s32.totalorder %s40, 1
      %p239 = por %p237, %p238
      %p240 = scmp.ne.s32.totalorder %s232, %s235
      %p241 = scmp.eq.s32.totalorder %s40, 0
      %p242 = por %p240, %p241
      %p243 = scmp.ne.s32.totalorder %s232, %s235
      %p244 = scmp.eq.s32.totalorder %s45, 1
      %p245 = por %p243, %p244
      %p246 = scmp.ne.s32.totalorder %s235, %s236
      %p247 = scmp.eq.s32.totalorder %s45, 0
      %p248 = por %p246, %p247
      %p249 = scmp.ne.s32.totalorder %s235, %s236
      %p250 = scmp.eq.s32.totalorder %s46, 1
      %p251 = por %p249, %p250
      %p253 = scmp.ne.s32.totalorder %s236, %s252
      %p254 = scmp.eq.s32.totalorder %s46, 0
      %p255 = por %p253, %p254
      %s256 = ssub.s32 %s40, %s47
      %p257 = scmp.eq.s32.totalorder %s256, 0
      %s259 = sadd.s32 %s258, 1
      %s260 = scalar_select %p257, %s258, %s259
      %p263 = pneg %p257
      %p264 = scmp.eq.s32.totalorder %s40, 1
      %p265 = por %p263, %p264
      %p266 = scmp.ne.s32.totalorder %s258, %s261
      %p267 = scmp.eq.s32.totalorder %s40, 0
      %p268 = por %p266, %p267
      %p269 = scmp.ne.s32.totalorder %s258, %s261
      %p270 = scmp.eq.s32.totalorder %s45, 1
      %p271 = por %p269, %p270
      %p272 = scmp.ne.s32.totalorder %s261, %s262
      %p273 = scmp.eq.s32.totalorder %s45, 0
      %p274 = por %p272, %p273
      %p275 = scmp.ne.s32.totalorder %s261, %s262
      %p276 = scmp.eq.s32.totalorder %s46, 1
      %p277 = por %p275, %p276
      %p279 = scmp.ne.s32.totalorder %s262, %s278
      %p280 = scmp.eq.s32.totalorder %s46, 0
      %p281 = por %p279, %p280
      %s282 = ssub.s32 %s40, %s47
      %p283 = scmp.eq.s32.totalorder %s282, 0
      %s285 = sadd.s32 %s284, 1
      %s286 = scalar_select %p283, %s284, %s285
      %p289 = pneg %p283
      %p290 = scmp.eq.s32.totalorder %s40, 1
      %p291 = por %p289, %p290
      %p292 = scmp.ne.s32.totalorder %s284, %s287
      %p293 = scmp.eq.s32.totalorder %s40, 0
      %p294 = por %p292, %p293
      %p295 = scmp.ne.s32.totalorder %s284, %s287
      %p296 = scmp.eq.s32.totalorder %s45, 1
      %p297 = por %p295, %p296
      %p298 = scmp.ne.s32.totalorder %s287, %s288
      %p299 = scmp.eq.s32.totalorder %s45, 0
      %p300 = por %p298, %p299
      %p301 = scmp.ne.s32.totalorder %s287, %s288
      %p302 = scmp.eq.s32.totalorder %s46, 1
      %p303 = por %p301, %p302
      %p305 = scmp.ne.s32.totalorder %s288, %s304
      %p306 = scmp.eq.s32.totalorder %s46, 0
      %p307 = por %p305, %p306
      %s308 = ssub.s32 %s40, %s47
      %p309 = scmp.eq.s32.totalorder %s308, 0
      %s311 = sadd.s32 %s310, 1
      %s312 = scalar_select %p309, %s310, %s311
      %p315 = pneg %p309
      %p316 = scmp.eq.s32.totalorder %s40, 1
      %p317 = por %p315, %p316
      %p318 = scmp.ne.s32.totalorder %s310, %s313
      %p319 = scmp.eq.s32.totalorder %s40, 0
      %p320 = por %p318, %p319
      %p321 = scmp.ne.s32.totalorder %s310, %s313
      %p322 = scmp.eq.s32.totalorder %s45, 1
      %p323 = por %p321, %p322
      %p324 = scmp.ne.s32.totalorder %s313, %s314
      %p325 = scmp.eq.s32.totalorder %s45, 0
      %p326 = por %p324, %p325
      %p327 = scmp.ne.s32.totalorder %s313, %s314
      %p328 = scmp.eq.s32.totalorder %s46, 1
      %p329 = por %p327, %p328
      %p331 = scmp.ne.s32.totalorder %s314, %s330
      %p332 = scmp.eq.s32.totalorder %s46, 0
      %p333 = por %p331, %p332
      %s334 = ssub.s32 %s40, %s47
      %p335 = scmp.eq.s32.totalorder %s334, 0
      %s337 = sadd.s32 %s336, 1
      %s338 = scalar_select %p335, %s336, %s337
      %p341 = pneg %p335
      %p342 = scmp.eq.s32.totalorder %s40, 1
      %p343 = por %p341, %p342
      %p344 = scmp.ne.s32.totalorder %s336, %s339
      %p345 = scmp.eq.s32.totalorder %s40, 0
      %p346 = por %p344, %p345
      %p347 = scmp.ne.s32.totalorder %s336, %s339
      %p348 = scmp.eq.s32.totalorder %s45, 1
      %p349 = por %p347, %p348
      %p350 = scmp.ne.s32.totalorder %s339, %s340
      %p351 = scmp.eq.s32.totalorder %s45, 0
      %p352 = por %p350, %p351
      %p353 = scmp.ne.s32.totalorder %s339, %s340
      %p354 = scmp.eq.s32.totalorder %s46, 1
      %p355 = por %p353, %p354
      %p357 = scmp.ne.s32.totalorder %s340, %s356
      %p358 = scmp.eq.s32.totalorder %s46, 0
      %p359 = por %p357, %p358
      %s361 = sadd.s32 %s360, 1
      %p364 = scmp.eq.s32.totalorder %s40, 1
      %p365 = scmp.ne.s32.totalorder %s360, %s362
      %p366 = scmp.eq.s32.totalorder %s40, 0
      %p367 = por %p365, %p366
      %p368 = scmp.ne.s32.totalorder %s360, %s362
      %p369 = scmp.eq.s32.totalorder %s45, 1
      %p370 = por %p368, %p369
      %p371 = scmp.ne.s32.totalorder %s362, %s363
      %p372 = scmp.eq.s32.totalorder %s45, 0
      %p373 = por %p371, %p372
      %p374 = scmp.ne.s32.totalorder %s362, %s363
      %p375 = scmp.eq.s32.totalorder %s46, 1
      %p376 = por %p374, %p375
      %p378 = scmp.ne.s32.totalorder %s363, %s377
      %p379 = scmp.eq.s32.totalorder %s46, 0
      %p380 = por %p378, %p379
      %s382 = sadd.s32 %s381, 1
      %p385 = scmp.eq.s32.totalorder %s40, 1
      %p386 = scmp.ne.s32.totalorder %s381, %s383
      %p387 = scmp.eq.s32.totalorder %s40, 0
      %p388 = por %p386, %p387
      %p389 = scmp.ne.s32.totalorder %s381, %s383
      %p390 = scmp.eq.s32.totalorder %s45, 1
      %p391 = por %p389, %p390
      %p392 = scmp.ne.s32.totalorder %s383, %s384
      %p393 = scmp.eq.s32.totalorder %s45, 0
      %p394 = por %p392, %p393
      %p395 = scmp.ne.s32.totalorder %s383, %s384
      %p396 = scmp.eq.s32.totalorder %s46, 1
      %p397 = por %p395, %p396
      %p399 = scmp.ne.s32.totalorder %s384, %s398
      %p400 = scmp.eq.s32.totalorder %s46, 0
      %p401 = por %p399, %p400
      %s403 = sadd.s32 %s402, 1
      %p406 = scmp.eq.s32.totalorder %s40, 1
      %p407 = scmp.ne.s32.totalorder %s402, %s404
      %p408 = scmp.eq.s32.totalorder %s40, 0
      %p409 = por %p407, %p408
      %p410 = scmp.ne.s32.totalorder %s402, %s404
      %p411 = scmp.eq.s32.totalorder %s45, 1
      %p412 = por %p410, %p411
      %p413 = scmp.ne.s32.totalorder %s404, %s405
      %p414 = scmp.eq.s32.totalorder %s45, 0
      %p415 = por %p413, %p414
      %p416 = scmp.ne.s32.totalorder %s404, %s405
      %p417 = scmp.eq.s32.totalorder %s46, 1
      %p418 = por %p416, %p417
      %p420 = scmp.ne.s32.totalorder %s405, %s419
      %p421 = scmp.eq.s32.totalorder %s46, 0
      %p422 = por %p420, %p421
      %p423 = scmp.le.s32.totalorder 1, %s40
      %p424 = scmp.lt.s32.totalorder %s40, 3
      %p425 = pnand %p423, %p424
      %p426 = pneg %p425
      // Predicated region
      $region9: #{tpu_custom_call.1} parent=5 // pred_check
        _
      $region10: #{tpu_custom_call.1} parent=5 // pred_check_branch
        %428 = sbr.rel (%p425) target = $region12
      $region11: #{tpu_custom_call.1} parent=5 // pred_region
        %s429 = ssub.s32 %s40, 1
        // Predicated region
        $region13: #{tpu_custom_call.1} parent=11 // pred_check
          %p430 = pneg %p373
        $region14: #{tpu_custom_call.1} parent=11 // pred_check_branch
          %432 = sbr.rel (%p430) target = $region16
        $region15: #{tpu_custom_call.1} parent=11 // pred_region
          _
        $region16: #{tpu_custom_call.1} parent=11 // pred_fallthru
          _
        // Predicated region
        $region17: #{tpu_custom_call.1} parent=11 // pred_check
          %p433 = pneg %p394
        $region18: #{tpu_custom_call.1} parent=11 // pred_check_branch
          %435 = sbr.rel (%p433) target = $region20
        $region19: #{tpu_custom_call.1} parent=11 // pred_region
          _
        $region20: #{tpu_custom_call.1} parent=11 // pred_fallthru
          _
      $region12: #{tpu_custom_call.1} parent=5 // pred_fallthru
        _
      %p436 = scmp.lt.s32.totalorder %s40, 2
      // Predicated region
      $region21: #{tpu_custom_call.1} parent=5 // pred_check
        %p437 = pneg %p436
      $region22: #{tpu_custom_call.1} parent=5 // pred_check_branch
        %439 = sbr.rel (%p437) target = $region24
      $region23: #{tpu_custom_call.1} parent=5 // pred_region
        // Predicated region
        $region25: #{tpu_custom_call.1} parent=23 // pred_check
          %p440 = pneg %p60
        $region26: #{tpu_custom_call.1} parent=23 // pred_check_branch
          %442 = sbr.rel (%p440) target = $region28
        $region27: #{tpu_custom_call.1} parent=23 // pred_region
          %s443 = sand.u32 %s50, 1
          %s444 = scalar_lea.sflag [#allocation4], %s443
          %s445 = sand.u32 %s50, 1
          %s446 = scalar_lea.vmem [#allocation3], %s445
          %448 = vsyncadd %s444, 0
          %s449 = scalar_lea.hbm %s1, %s40
          %s451 = sshll.u32 %s449, 4
          %s452 = int_to_ptr.hbm [resolvable:$true] %s451
          %s453 = sshll.u32 %s446, 4
          %s454 = int_to_ptr.vmem [resolvable:$true] %s453
          %456 = dma.hbm_to_vmem [thread:$0]  %s452, 16, %s454, %s444
        $region28: #{tpu_custom_call.1} parent=23 // pred_fallthru
          _
        // Predicated region
        $region29: #{tpu_custom_call.1} parent=23 // pred_check
          %p457 = pneg %p86
        $region30: #{tpu_custom_call.1} parent=23 // pred_check_branch
          %459 = sbr.rel (%p457) target = $region32
        $region31: #{tpu_custom_call.1} parent=23 // pred_region
          %s460 = sand.u32 %s40, 1
          %s461 = scalar_lea.sflag [#allocation7], %s460
          %s462 = sand.u32 %s76, 1
          %s463 = scalar_lea.vmem [#allocation6], %s462
          %465 = vsyncadd %s461, 0
          %s466 = scalar_lea.hbm %s2, %s40
          %s468 = sshll.u32 %s466, 4
          %s469 = int_to_ptr.hbm [resolvable:$true] %s468
          %s470 = sshll.u32 %s463, 4
          %s471 = int_to_ptr.vmem [resolvable:$true] %s470
          %473 = dma.hbm_to_vmem [thread:$0]  %s469, 16, %s471, %s461
        $region32: #{tpu_custom_call.1} parent=23 // pred_fallthru
          _
        // Predicated region
        $region33: #{tpu_custom_call.1} parent=23 // pred_check
          %p474 = pneg %p112
        $region34: #{tpu_custom_call.1} parent=23 // pred_check_branch
          %476 = sbr.rel (%p474) target = $region36
        $region35: #{tpu_custom_call.1} parent=23 // pred_region
          %s477 = sand.u32 %s40, 1
          %s478 = scalar_lea.sflag [#allocation7], %s477
          %s479 = sand.u32 %s102, 1
          %s480 = smul.addr %s479, 192
          %s481 = scalar_lea.vmem [#allocation8], %s480
          %483 = vsyncadd %s478, 0
          %s484 = smul.addr %s40, 48
          %s485 = smul.addr %s484, 4
          %s486 = scalar_lea.hbm %s3, %s485
          %s487 = sshll.u32 %s486, 4
          %s488 = int_to_ptr.hbm [resolvable:$true] %s487
          %s489 = sshll.u32 %s481, 4
          %s490 = int_to_ptr.vmem [resolvable:$true] %s489
          %495 = dma.hbm_to_vmem [thread:$0]  %s488, 3072, %s490, %s478, 192, 192, 12
        $region36: #{tpu_custom_call.1} parent=23 // pred_fallthru
          _
        // Predicated region
        $region37: #{tpu_custom_call.1} parent=23 // pred_check
          %p496 = pneg %p138
        $region38: #{tpu_custom_call.1} parent=23 // pred_check_branch
          %498 = sbr.rel (%p496) target = $region40
        $region39: #{tpu_custom_call.1} parent=23 // pred_region
          %s499 = sand.u32 %s40, 1
          %s500 = scalar_lea.sflag [#allocation10], %s499
          %s501 = sand.u32 %s128, 1
          %s502 = smul.addr %s501, 3
          %s503 = scalar_lea.vmem [#allocation9], %s502
          %505 = vsyncadd %s500, 0
          %s506 = smul.addr %s40, 3
          %s507 = scalar_lea.hbm %s4, %s506
          %s509 = sshll.u32 %s507, 4
          %s510 = int_to_ptr.hbm [resolvable:$true] %s509
          %s511 = sshll.u32 %s503, 4
          %s512 = int_to_ptr.vmem [resolvable:$true] %s511
          %514 = dma.hbm_to_vmem [thread:$0]  %s510, 48, %s512, %s500
        $region40: #{tpu_custom_call.1} parent=23 // pred_fallthru
          _
        // Predicated region
        $region41: #{tpu_custom_call.1} parent=23 // pred_check
          %p515 = pneg %p164
        $region42: #{tpu_custom_call.1} parent=23 // pred_check_branch
          %517 = sbr.rel (%p515) target = $region44
        $region43: #{tpu_custom_call.1} parent=23 // pred_region
          %s518 = sand.u32 %s40, 1
          %s519 = scalar_lea.sflag [#allocation10], %s518
          %s520 = sand.u32 %s154, 1
          %s521 = smul.addr %s520, 64
          %s522 = scalar_lea.vmem [#allocation11], %s521
          %524 = vsyncadd %s519, 0
          %s525 = smul.addr %s40, 16
          %s526 = smul.addr %s525, 4
          %s527 = scalar_lea.hbm %s5, %s526
          %s528 = sshll.u32 %s527, 4
          %s529 = int_to_ptr.hbm [resolvable:$true] %s528
          %s530 = sshll.u32 %s522, 4
          %s531 = int_to_ptr.vmem [resolvable:$true] %s530
          %536 = dma.hbm_to_vmem [thread:$0]  %s529, 1024, %s531, %s519, 64, 64, 4
        $region44: #{tpu_custom_call.1} parent=23 // pred_fallthru
          _
        // Predicated region
        $region45: #{tpu_custom_call.1} parent=23 // pred_check
          %p537 = pneg %p190
        $region46: #{tpu_custom_call.1} parent=23 // pred_check_branch
          %539 = sbr.rel (%p537) target = $region48
        $region47: #{tpu_custom_call.1} parent=23 // pred_region
          %s540 = sand.u32 %s40, 1
          %s541 = scalar_lea.sflag [#allocation13], %s540
          %s542 = sand.u32 %s180, 1
          %s543 = scalar_lea.vmem [#allocation12], %s542
          %545 = vsyncadd %s541, 0
          %s546 = scalar_lea.hbm %s6, %s40
          %s548 = sshll.u32 %s546, 4
          %s549 = int_to_ptr.hbm [resolvable:$true] %s548
          %s550 = sshll.u32 %s543, 4
          %s551 = int_to_ptr.vmem [resolvable:$true] %s550
          %553 = dma.hbm_to_vmem [thread:$0]  %s549, 16, %s551, %s541
        $region48: #{tpu_custom_call.1} parent=23 // pred_fallthru
          _
        // Predicated region
        $region49: #{tpu_custom_call.1} parent=23 // pred_check
          %p554 = pneg %p216
        $region50: #{tpu_custom_call.1} parent=23 // pred_check_branch
          %556 = sbr.rel (%p554) target = $region52
        $region51: #{tpu_custom_call.1} parent=23 // pred_region
          %s557 = sand.u32 %s40, 1
          %s558 = scalar_lea.sflag [#allocation13], %s557
          %s559 = sand.u32 %s206, 1
          %s560 = scalar_lea.vmem [#allocation14], %s559
          %562 = vsyncadd %s558, 0
          %s563 = scalar_lea.hbm %s7, %s40
          %s565 = sshll.u32 %s563, 4
          %s566 = int_to_ptr.hbm [resolvable:$true] %s565
          %s567 = sshll.u32 %s560, 4
          %s568 = int_to_ptr.vmem [resolvable:$true] %s567
          %570 = dma.hbm_to_vmem [thread:$0]  %s566, 16, %s568, %s558
        $region52: #{tpu_custom_call.1} parent=23 // pred_fallthru
          _
        // Predicated region
        $region53: #{tpu_custom_call.1} parent=23 // pred_check
          %p571 = pneg %p242
        $region54: #{tpu_custom_call.1} parent=23 // pred_check_branch
          %573 = sbr.rel (%p571) target = $region56
        $region55: #{tpu_custom_call.1} parent=23 // pred_region
          %s574 = sand.u32 %s40, 1
          %s575 = scalar_lea.sflag [#allocation16], %s574
          %s576 = sand.u32 %s232, 1
          %s577 = scalar_lea.vmem [#allocation15], %s576
          %579 = vsyncadd %s575, 0
          %s580 = scalar_lea.hbm %s8, %s40
          %s582 = sshll.u32 %s580, 4
          %s583 = int_to_ptr.hbm [resolvable:$true] %s582
          %s584 = sshll.u32 %s577, 4
          %s585 = int_to_ptr.vmem [resolvable:$true] %s584
          %587 = dma.hbm_to_vmem [thread:$0]  %s583, 16, %s585, %s575
        $region56: #{tpu_custom_call.1} parent=23 // pred_fallthru
          _
        // Predicated region
        $region57: #{tpu_custom_call.1} parent=23 // pred_check
          %p588 = pneg %p268
        $region58: #{tpu_custom_call.1} parent=23 // pred_check_branch
          %590 = sbr.rel (%p588) target = $region60
        $region59: #{tpu_custom_call.1} parent=23 // pred_region
          %s591 = sand.u32 %s40, 1
          %s592 = scalar_lea.sflag [#allocation16], %s591
          %s593 = sand.u32 %s258, 1
          %s594 = smul.addr %s593, 256
          %s595 = scalar_lea.vmem [#allocation17], %s594
          %597 = vsyncadd %s592, 0
          %s598 = smul.addr %s40, 64
          %s599 = smul.addr %s598, 4
          %s600 = scalar_lea.hbm %s9, %s599
          %s601 = sshll.u32 %s600, 4
          %s602 = int_to_ptr.hbm [resolvable:$true] %s601
          %s603 = sshll.u32 %s595, 4
          %s604 = int_to_ptr.vmem [resolvable:$true] %s603
          %609 = dma.hbm_to_vmem [thread:$0]  %s602, 4096, %s604, %s592, 256, 256, 16
        $region60: #{tpu_custom_call.1} parent=23 // pred_fallthru
          _
        // Predicated region
        $region61: #{tpu_custom_call.1} parent=23 // pred_check
          %p610 = pneg %p294
        $region62: #{tpu_custom_call.1} parent=23 // pred_check_branch
          %612 = sbr.rel (%p610) target = $region64
        $region63: #{tpu_custom_call.1} parent=23 // pred_region
          %p613 = scmp.lt.s32.totalorder %s40, 1
          %s614 = scalar_select %p613, %s40, 1
          %s615 = smul.addr %s614, 4
          %s616 = scalar_lea.vmem %s10, %s615
        $region64: #{tpu_custom_call.1} parent=23 // pred_fallthru
          _
        // Predicated region
        $region65: #{tpu_custom_call.1} parent=23 // pred_check
          %p617 = pneg %p320
        $region66: #{tpu_custom_call.1} parent=23 // pred_check_branch
          %619 = sbr.rel (%p617) target = $region68
        $region67: #{tpu_custom_call.1} parent=23 // pred_region
          %s620 = sand.u32 %s310, 1
          %s621 = scalar_lea.sflag [#allocation19], %s620
          %s622 = sand.u32 %s310, 1
          %s623 = smul.addr %s622, 256
          %s624 = scalar_lea.vmem [#allocation18], %s623
          %626 = vsyncadd %s621, 0
          %s627 = smul.addr %s40, 64
          %s628 = smul.addr %s627, 4
          %s629 = scalar_lea.hbm %s11, %s628
          %s630 = sshll.u32 %s629, 4
          %s631 = int_to_ptr.hbm [resolvable:$true] %s630
          %s632 = sshll.u32 %s624, 4
          %s633 = int_to_ptr.vmem [resolvable:$true] %s632
          %638 = dma.hbm_to_vmem [thread:$0]  %s631, 4096, %s633, %s621, 64, 64, 4
        $region68: #{tpu_custom_call.1} parent=23 // pred_fallthru
          _
        // Predicated region
        $region69: #{tpu_custom_call.1} parent=23 // pred_check
          %p639 = pneg %p346
        $region70: #{tpu_custom_call.1} parent=23 // pred_check_branch
          %641 = sbr.rel (%p639) target = $region72
        $region71: #{tpu_custom_call.1} parent=23 // pred_region
          %p642 = scmp.lt.s32.totalorder %s40, 1
          %s643 = scalar_select %p642, %s40, 1
          %s644 = scalar_lea.vmem %s12, %s643
        $region72: #{tpu_custom_call.1} parent=23 // pred_fallthru
          _
      $region24: #{tpu_custom_call.1} parent=5 // pred_fallthru
        _
      %p645 = scmp.le.s32.totalorder 1, %s40
      %p646 = scmp.lt.s32.totalorder %s40, 3
      %p647 = pnand %p645, %p646
      %p648 = pneg %p647
      // Predicated region
      $region73: #{tpu_custom_call.1} parent=5 // pred_check
        _
      $region74: #{tpu_custom_call.1} parent=5 // pred_check_branch
        %650 = sbr.rel (%p647) target = $region76
      $region75: #{tpu_custom_call.1} parent=5 // pred_region
        %s651 = ssub.s32 %s40, 1
        %s652 = sand.u32 %s53, 1
        %s653 = scalar_lea.sflag [#allocation4], %s652
        %s654 = sand.u32 %s53, 1
        %s655 = scalar_lea.vmem [#allocation3], %s654
        // Predicated region
        $region77: #{tpu_custom_call.1} parent=75 // pred_check
          %p656 = pneg %p66
        $region78: #{tpu_custom_call.1} parent=75 // pred_check_branch
          %658 = sbr.rel (%p656) target = $region80
        $region79: #{tpu_custom_call.1} parent=75 // pred_region
          %660 = dma.done %s653, 16
        $region80: #{tpu_custom_call.1} parent=75 // pred_fallthru
          _
        %s661 = sand.u32 %s45, 1
        %s662 = scalar_lea.sflag [#allocation7], %s661
        %s663 = sand.u32 %s79, 1
        %s664 = scalar_lea.vmem [#allocation6], %s663
        // Predicated region
        $region81: #{tpu_custom_call.1} parent=75 // pred_check
          %p665 = pneg %p92
        $region82: #{tpu_custom_call.1} parent=75 // pred_check_branch
          %667 = sbr.rel (%p665) target = $region84
        $region83: #{tpu_custom_call.1} parent=75 // pred_region
          %669 = dma.done %s662, 16
        $region84: #{tpu_custom_call.1} parent=75 // pred_fallthru
          _
        %s670 = sand.u32 %s45, 1
        %s671 = scalar_lea.sflag [#allocation7], %s670
        %s672 = sand.u32 %s105, 1
        %s673 = smul.addr %s672, 192
        %s674 = scalar_lea.vmem [#allocation8], %s673
        // Predicated region
        $region85: #{tpu_custom_call.1} parent=75 // pred_check
          %p675 = pneg %p118
        $region86: #{tpu_custom_call.1} parent=75 // pred_check_branch
          %677 = sbr.rel (%p675) target = $region88
        $region87: #{tpu_custom_call.1} parent=75 // pred_region
          %679 = dma.done %s671, 3072
        $region88: #{tpu_custom_call.1} parent=75 // pred_fallthru
          _
        %s680 = sand.u32 %s45, 1
        %s681 = scalar_lea.sflag [#allocation10], %s680
        %s682 = sand.u32 %s131, 1
        %s683 = smul.addr %s682, 3
        %s684 = scalar_lea.vmem [#allocation9], %s683
        // Predicated region
        $region89: #{tpu_custom_call.1} parent=75 // pred_check
          %p685 = pneg %p144
        $region90: #{tpu_custom_call.1} parent=75 // pred_check_branch
          %687 = sbr.rel (%p685) target = $region92
        $region91: #{tpu_custom_call.1} parent=75 // pred_region
          %689 = dma.done %s681, 48
        $region92: #{tpu_custom_call.1} parent=75 // pred_fallthru
          _
        %s690 = sand.u32 %s45, 1
        %s691 = scalar_lea.sflag [#allocation10], %s690
        %s692 = sand.u32 %s157, 1
        %s693 = smul.addr %s692, 64
        %s694 = scalar_lea.vmem [#allocation11], %s693
        // Predicated region
        $region93: #{tpu_custom_call.1} parent=75 // pred_check
          %p695 = pneg %p170
        $region94: #{tpu_custom_call.1} parent=75 // pred_check_branch
          %697 = sbr.rel (%p695) target = $region96
        $region95: #{tpu_custom_call.1} parent=75 // pred_region
          %699 = dma.done %s691, 1024
        $region96: #{tpu_custom_call.1} parent=75 // pred_fallthru
          _
        %s700 = sand.u32 %s45, 1
        %s701 = scalar_lea.sflag [#allocation13], %s700
        %s702 = sand.u32 %s183, 1
        %s703 = scalar_lea.vmem [#allocation12], %s702
        // Predicated region
        $region97: #{tpu_custom_call.1} parent=75 // pred_check
          %p704 = pneg %p196
        $region98: #{tpu_custom_call.1} parent=75 // pred_check_branch
          %706 = sbr.rel (%p704) target = $region100
        $region99: #{tpu_custom_call.1} parent=75 // pred_region
          %708 = dma.done %s701, 16
        $region100: #{tpu_custom_call.1} parent=75 // pred_fallthru
          _
        %s709 = sand.u32 %s45, 1
        %s710 = scalar_lea.sflag [#allocation13], %s709
        %s711 = sand.u32 %s209, 1
        %s712 = scalar_lea.vmem [#allocation14], %s711
        // Predicated region
        $region101: #{tpu_custom_call.1} parent=75 // pred_check
          %p713 = pneg %p222
        $region102: #{tpu_custom_call.1} parent=75 // pred_check_branch
          %715 = sbr.rel (%p713) target = $region104
        $region103: #{tpu_custom_call.1} parent=75 // pred_region
          %717 = dma.done %s710, 16
        $region104: #{tpu_custom_call.1} parent=75 // pred_fallthru
          _
        %s718 = sand.u32 %s45, 1
        %s719 = scalar_lea.sflag [#allocation16], %s718
        %s720 = sand.u32 %s235, 1
        %s721 = scalar_lea.vmem [#allocation15], %s720
        // Predicated region
        $region105: #{tpu_custom_call.1} parent=75 // pred_check
          %p722 = pneg %p248
        $region106: #{tpu_custom_call.1} parent=75 // pred_check_branch
          %724 = sbr.rel (%p722) target = $region108
        $region107: #{tpu_custom_call.1} parent=75 // pred_region
          %726 = dma.done %s719, 16
        $region108: #{tpu_custom_call.1} parent=75 // pred_fallthru
          _
        %s727 = sand.u32 %s45, 1
        %s728 = scalar_lea.sflag [#allocation16], %s727
        %s729 = sand.u32 %s261, 1
        %s730 = smul.addr %s729, 256
        %s731 = scalar_lea.vmem [#allocation17], %s730
        // Predicated region
        $region109: #{tpu_custom_call.1} parent=75 // pred_check
          %p732 = pneg %p274
        $region110: #{tpu_custom_call.1} parent=75 // pred_check_branch
          %734 = sbr.rel (%p732) target = $region112
        $region111: #{tpu_custom_call.1} parent=75 // pred_region
          %736 = dma.done %s728, 4096
        $region112: #{tpu_custom_call.1} parent=75 // pred_fallthru
          _
        %s737 = sand.u32 %s313, 1
        %s738 = scalar_lea.sflag [#allocation19], %s737
        %s739 = sand.u32 %s313, 1
        %s740 = smul.addr %s739, 256
        %s741 = scalar_lea.vmem [#allocation18], %s740
        // Predicated region
        $region113: #{tpu_custom_call.1} parent=75 // pred_check
          %p742 = pneg %p326
        $region114: #{tpu_custom_call.1} parent=75 // pred_check_branch
          %744 = sbr.rel (%p742) target = $region116
        $region115: #{tpu_custom_call.1} parent=75 // pred_region
          %746 = dma.done %s738, 4096
        $region116: #{tpu_custom_call.1} parent=75 // pred_fallthru
          _
        %s747 = sand.u32 %s53, 1
        %s748 = scalar_lea.sflag [#allocation4], %s747
        %s749 = sand.u32 %s53, 1
        %s750 = scalar_lea.vmem [#allocation3], %s749
        %p751 = pneg %p66
        %p752 = pneg %p63
        %s753 = sand.u32 %s45, 1
        %s754 = scalar_lea.sflag [#allocation7], %s753
        %s755 = sand.u32 %s79, 1
        %s756 = scalar_lea.vmem [#allocation6], %s755
        %p757 = pneg %p92
        %p758 = pneg %p89
        %s759 = sand.u32 %s45, 1
        %s760 = scalar_lea.sflag [#allocation7], %s759
        %s761 = sand.u32 %s105, 1
        %s762 = smul.addr %s761, 192
        %s763 = scalar_lea.vmem [#allocation8], %s762
        %p764 = pneg %p118
        %p765 = pneg %p115
        %s766 = sand.u32 %s45, 1
        %s767 = scalar_lea.sflag [#allocation10], %s766
        %s768 = sand.u32 %s131, 1
        %s769 = smul.addr %s768, 3
        %s770 = scalar_lea.vmem [#allocation9], %s769
        %p771 = pneg %p144
        %p772 = pneg %p141
        %s773 = sand.u32 %s45, 1
        %s774 = scalar_lea.sflag [#allocation10], %s773
        %s775 = sand.u32 %s157, 1
        %s776 = smul.addr %s775, 64
        %s777 = scalar_lea.vmem [#allocation11], %s776
        %p778 = pneg %p170
        %p779 = pneg %p167
        %s780 = sand.u32 %s45, 1
        %s781 = scalar_lea.sflag [#allocation13], %s780
        %s782 = sand.u32 %s183, 1
        %s783 = scalar_lea.vmem [#allocation12], %s782
        %p784 = pneg %p196
        %p785 = pneg %p193
        %s786 = sand.u32 %s45, 1
        %s787 = scalar_lea.sflag [#allocation13], %s786
        %s788 = sand.u32 %s209, 1
        %s789 = scalar_lea.vmem [#allocation14], %s788
        %p790 = pneg %p222
        %p791 = pneg %p219
        %s792 = sand.u32 %s45, 1
        %s793 = scalar_lea.sflag [#allocation16], %s792
        %s794 = sand.u32 %s235, 1
        %s795 = scalar_lea.vmem [#allocation15], %s794
        %p796 = pneg %p248
        %p797 = pneg %p245
        %s798 = sand.u32 %s45, 1
        %s799 = scalar_lea.sflag [#allocation16], %s798
        %s800 = sand.u32 %s261, 1
        %s801 = smul.addr %s800, 256
        %s802 = scalar_lea.vmem [#allocation17], %s801
        %p803 = pneg %p274
        %p804 = pneg %p271
        %p805 = scmp.lt.s32.totalorder %s45, 1
        %s806 = scalar_select %p805, %s45, 1
        %s807 = smul.addr %s806, 4
        %s808 = scalar_lea.vmem %s10, %s807
        %p809 = pneg %p300
        %p810 = pneg %p297
        %s811 = sand.u32 %s313, 1
        %s812 = scalar_lea.sflag [#allocation19], %s811
        %s813 = sand.u32 %s313, 1
        %s814 = smul.addr %s813, 256
        %s815 = scalar_lea.vmem [#allocation18], %s814
        %p816 = pneg %p326
        %p817 = pneg %p323
        %p818 = scmp.lt.s32.totalorder %s45, 1
        %s819 = scalar_select %p818, %s45, 1
        %s820 = scalar_lea.vmem %s12, %s819
        %p821 = pneg %p352
        %p822 = pneg %p349
        %p823 = pneg %p373
        %p824 = pneg %p370
        %p825 = pneg %p394
        %p826 = pneg %p391
        %p827 = pneg %p415
        %p828 = pneg %p412
        %p829 = scmp.lt.s32.totalorder %s45, 1
        %s830 = scalar_select %p829, %s45, 1
        %s831 = smul.addr %s830, 4
        %s832 = scalar_lea.vmem %s10, %s831
        %p833 = scmp.lt.s32.totalorder %s45, 1
        %s834 = scalar_select %p833, %s45, 1
        %s835 = scalar_lea.vmem %s12, %s834
        %p837 = scmp.eq.s32.totalorder %s45, 0
        // Predicated region
        $region117: #{tpu_custom_call.1} parent=75 // pred_check
          %p838 = pneg %p837
        $region118: #{tpu_custom_call.1} parent=75 // pred_check_branch
          %840 = sbr.rel (%p838) target = $region120
        $region119: #{tpu_custom_call.1} parent=75 // pred_region
          $region121: #{tpu_custom_call.1} parent=119
            #allocation21 [shape = 's32[1]{0}', space=sflag, size = 0x4, scoped, tag = 'scoped memory for tpu_custom_call.1']
            // Predicated region
            $region122: #{tpu_custom_call.1} parent=121 // pred_check
              _
            $region123: #{tpu_custom_call.1} parent=121 // pred_check_branch
              %842 = sbr.rel target = $region125
            $region124: #{tpu_custom_call.1} parent=121 // pred_region
              %843 = sst [smem:[#allocation24]] [#allocation23]
              %844 = sst [smem:[#allocation25]] [#allocation22]
            $region125: #{tpu_custom_call.1} parent=121 // pred_fallthru
              _
            %846 = shalt.err (0)
            %s848 = sshll.u32 %s0, 4
            %s849 = int_to_ptr.hbm [resolvable:$true] %s848
            %s850 = sshll.u32 [#allocation2], 4
            %s851 = int_to_ptr.vmem [resolvable:$true] %s850
            %853 = dma.hbm_to_vmem [thread:$0]  %s849, 512, %s851, [#allocation21]
            %s854 = smul.u32 2, 16
            %s855 = smul.u32 %s854, 1
            %s856 = sshll.u32 %s855, 4
            %857 = dma.done [#allocation21], %s856
        $region120: #{tpu_custom_call.1} parent=75 // pred_fallthru
          _
        %v858 = vld [vmem:[#allocation2] sm:$0xff]
        %v859 = vld [vmem:[#allocation2 + $0x8] sm:$0xff]
        %v860 = vld [vmem:[#allocation2 + $0x10] sm:$0xff]
        %v861 = vld [vmem:[#allocation2 + $0x18] sm:$0xff]
        %v862 = vld [vmem:[%s655] sm:$0x1]
        %v863 = vld [vmem:[%s664] sm:$0x1]
        %864 = vadd.xlane.f32.xlu0 %v858
        %v865 = vpop.xlane.xlu0 %864
        %866 = vadd.xlane.f32.xlu0 %v859
        %v867 = vpop.xlane.xlu0 %866
        %868 = vadd.xlane.f32.xlu0 %v860
        %v869 = vpop.xlane.xlu0 %868
        %870 = vadd.xlane.f32.xlu0 %v861
        %v871 = vpop.xlane.xlu0 %870
        %v872 = vrcp.pop 128.0
        %v873 = vmul.f32 128.0, %v872
        %v874 = vsub.f32 1.0, %v873
        %v875 = vmul.f32 %v872, %v874
        %v876 = vadd.f32 %v872, %v875
        %vm877 = vweird.f32 %v872
        %v878 = vsel %vm877, %v872, %v876
        %v879 = vmul.f32 %v865, %v878
        %v880 = vmul.f32 %v867, %v878
        %v881 = vmul.f32 %v869, %v878
        %v882 = vmul.f32 %v871, %v878
        %v883 = vsub.f32 %v858, %v879
        %v884 = vsub.f32 %v859, %v880
        %v885 = vsub.f32 %v860, %v881
        %v886 = vsub.f32 %v861, %v882
        %v887 = vmul.f32 %v883, %v883
        %v888 = vmul.f32 %v884, %v884
        %v889 = vmul.f32 %v885, %v885
        %v890 = vmul.f32 %v886, %v886
        %891 = vadd.xlane.f32.xlu0 %v887
        %v892 = vpop.xlane.xlu0 %891
        %893 = vadd.xlane.f32.xlu0 %v888
        %v894 = vpop.xlane.xlu0 %893
        %895 = vadd.xlane.f32.xlu0 %v889
        %v896 = vpop.xlane.xlu0 %895
        %897 = vadd.xlane.f32.xlu0 %v890
        %v898 = vpop.xlane.xlu0 %897
        %v899 = vmul.f32 %v892, %v878
        %v900 = vmul.f32 %v894, %v878
        %v901 = vmul.f32 %v896, %v878
        %v902 = vmul.f32 %v898, %v878
        %v903 = vadd.f32 %v899, 1e-05
        %v904 = vadd.f32 %v900, 1e-05
        %v905 = vadd.f32 %v901, 1e-05
        %v906 = vadd.f32 %v902, 1e-05
        %v907 = vrsqrt.pop %v903
        %v908 = vmul.f32 %v907, %v903
        %v909 = vmul.f32 %v908, %v907
        %v910 = vmul.f32 0.5, %v909
        %v911 = vsub.f32 1.5, %v910
        %v912 = vmul.f32 %v907, %v911
        %vm913 = vweird.f32 %v903
        %vm914 = vweird.f32 %v907
        %vm915 = vmor %vm913, %vm914
        %v916 = vsel %vm915, %v907, %v912
        %v917 = vrsqrt.pop %v904
        %v918 = vmul.f32 %v917, %v904
        %v919 = vmul.f32 %v918, %v917
        %v920 = vmul.f32 0.5, %v919
        %v921 = vsub.f32 1.5, %v920
        %v922 = vmul.f32 %v917, %v921
        %vm923 = vweird.f32 %v904
        %vm924 = vweird.f32 %v917
        %vm925 = vmor %vm923, %vm924
        %v926 = vsel %vm925, %v917, %v922
        %v927 = vrsqrt.pop %v905
        %v928 = vmul.f32 %v927, %v905
        %v929 = vmul.f32 %v928, %v927
        %v930 = vmul.f32 0.5, %v929
        %v931 = vsub.f32 1.5, %v930
        %v932 = vmul.f32 %v927, %v931
        %vm933 = vweird.f32 %v905
        %vm934 = vweird.f32 %v927
        %vm935 = vmor %vm933, %vm934
        %v936 = vsel %vm935, %v927, %v932
        %v937 = vrsqrt.pop %v906
        %v938 = vmul.f32 %v937, %v906
        %v939 = vmul.f32 %v938, %v937
        %v940 = vmul.f32 0.5, %v939
        %v941 = vsub.f32 1.5, %v940
        %v942 = vmul.f32 %v937, %v941
        %vm943 = vweird.f32 %v906
        %vm944 = vweird.f32 %v937
        %vm945 = vmor %vm943, %vm944
        %v946 = vsel %vm945, %v937, %v942
        %v947 = vmul.f32 %v883, %v916
        %v948 = vmul.f32 %v884, %v926
        %v949 = vmul.f32 %v885, %v936
        %v950 = vmul.f32 %v886, %v946
        %v952 = vperm.slane %v862, 0
        %v954 = vmul.f32 %v947, %v952
        %v955 = vmul.f32 %v948, %v952
        %v956 = vmul.f32 %v949, %v952
        %v957 = vmul.f32 %v950, %v952
        %v959 = vperm.slane %v863, 0
        %v961 = vadd.f32 %v954, %v959
        %v962 = vadd.f32 %v955, %v959
        %v963 = vadd.f32 %v956, %v959
        %v964 = vadd.f32 %v957, %v959
        %v965 = vpack.c.bf16 %v962, %v961
        %v966 = vpack.c.bf16 %v964, %v963
        %v967 = vld [vmem:[%s674] sm:$0xff]
        %v968 = vld [vmem:[%s674 + $0x8] sm:$0xf]
        %v969 = vld [vmem:[%s674 + $0xc] sm:$0xff]
        %v970 = vld [vmem:[%s674 + $0x14] sm:$0xf]
        %v971 = vld [vmem:[%s674 + $0x18] sm:$0xff]
        %v972 = vld [vmem:[%s674 + $0x20] sm:$0xf]
        %v973 = vld [vmem:[%s674 + $0x24] sm:$0xff]
        %v974 = vld [vmem:[%s674 + $0x2c] sm:$0xf]
        %v975 = vld [vmem:[%s674 + $0x30] sm:$0xff]
        %v976 = vld [vmem:[%s674 + $0x38] sm:$0xf]
        %v977 = vld [vmem:[%s674 + $0x3c] sm:$0xff]
        %v978 = vld [vmem:[%s674 + $0x44] sm:$0xf]
        %v979 = vld [vmem:[%s674 + $0x48] sm:$0xff]
        %v980 = vld [vmem:[%s674 + $0x50] sm:$0xf]
        %v981 = vld [vmem:[%s674 + $0x54] sm:$0xff]
        %v982 = vld [vmem:[%s674 + $0x5c] sm:$0xf]
        %v983 = vld [vmem:[%s674 + $0x60] sm:$0xff]
        %v984 = vld [vmem:[%s674 + $0x68] sm:$0xf]
        %v985 = vld [vmem:[%s674 + $0x6c] sm:$0xff]
        %v986 = vld [vmem:[%s674 + $0x74] sm:$0xf]
        %v987 = vld [vmem:[%s674 + $0x78] sm:$0xff]
        %v988 = vld [vmem:[%s674 + $0x80] sm:$0xf]
        %v989 = vld [vmem:[%s674 + $0x84] sm:$0xff]
        %v990 = vld [vmem:[%s674 + $0x8c] sm:$0xf]
        %v991 = vld [vmem:[%s674 + $0x90] sm:$0xff]
        %v992 = vld [vmem:[%s674 + $0x98] sm:$0xf]
        %v993 = vld [vmem:[%s674 + $0x9c] sm:$0xff]
        %v994 = vld [vmem:[%s674 + $0xa4] sm:$0xf]
        %v995 = vld [vmem:[%s674 + $0xa8] sm:$0xff]
        %v996 = vld [vmem:[%s674 + $0xb0] sm:$0xf]
        %v997 = vld [vmem:[%s674 + $0xb4] sm:$0xff]
        %v998 = vld [vmem:[%s674 + $0xbc] sm:$0xf]
        %v999 = vld [vmem:[%s684] sm:$0x7]
        %v1001 = vperm.slane %v999, 0
        %v1002 = vperm.slane %v999, 1
        %v1003 = vperm.slane %v999, 2
        %v1039 = vunpack.c.l.b16 %v967
        %v1040 = vunpack.c.h.b16 %v967
        %v1041 = vunpack.c.l.b16 %v968
        %v1042 = vunpack.c.l.b16 %v969
        %v1043 = vunpack.c.h.b16 %v969
        %v1044 = vunpack.c.l.b16 %v970
        %v1045 = vunpack.c.l.b16 %v971
        %v1046 = vunpack.c.h.b16 %v971
        %v1047 = vunpack.c.l.b16 %v972
        %v1048 = vunpack.c.l.b16 %v973
        %v1049 = vunpack.c.h.b16 %v973
        %v1050 = vunpack.c.l.b16 %v974
        %v1051 = vunpack.c.l.b16 %v975
        %v1052 = vunpack.c.h.b16 %v975
        %v1053 = vunpack.c.l.b16 %v976
        %v1054 = vunpack.c.l.b16 %v977
        %v1055 = vunpack.c.h.b16 %v977
        %v1056 = vunpack.c.l.b16 %v978
        %v1057 = vunpack.c.l.b16 %v979
        %v1058 = vunpack.c.h.b16 %v979
        %v1059 = vunpack.c.l.b16 %v980
        %v1060 = vunpack.c.l.b16 %v981
        %v1061 = vunpack.c.h.b16 %v981
        %v1062 = vunpack.c.l.b16 %v982
        %v1063 = vunpack.c.l.b16 %v983
        %v1064 = vunpack.c.h.b16 %v983
        %v1065 = vunpack.c.l.b16 %v984
        %v1066 = vunpack.c.l.b16 %v985
        %v1067 = vunpack.c.h.b16 %v985
        %v1068 = vunpack.c.l.b16 %v986
        %v1069 = vunpack.c.l.b16 %v987
        %v1070 = vunpack.c.h.b16 %v987
        %v1071 = vunpack.c.l.b16 %v988
        %v1072 = vunpack.c.l.b16 %v989
        %v1073 = vunpack.c.h.b16 %v989
        %v1074 = vunpack.c.l.b16 %v990
        %v1075 = vunpack.c.l.b16 %v991
        %v1076 = vunpack.c.h.b16 %v991
        %v1077 = vunpack.c.l.b16 %v992
        %v1078 = vunpack.c.l.b16 %v993
        %v1079 = vunpack.c.h.b16 %v993
        %v1080 = vunpack.c.l.b16 %v994
        %v1081 = vunpack.c.l.b16 %v995
        %v1082 = vunpack.c.h.b16 %v995
        %v1083 = vunpack.c.l.b16 %v996
        %v1084 = vunpack.c.l.b16 %v997
        %v1085 = vunpack.c.h.b16 %v997
        %v1086 = vunpack.c.l.b16 %v998
        %v1087 = vpack.c.b16 %v1042, %v1039
        %v1088 = vpack.c.b16 %v1043, %v1040
        %v1089 = vpack.c.b16 %v1044, %v1041
        %v1090 = vpack.c.b16 %v1048, %v1045
        %v1091 = vpack.c.b16 %v1049, %v1046
        %v1092 = vpack.c.b16 %v1050, %v1047
        %v1093 = vpack.c.b16 %v1054, %v1051
        %v1094 = vpack.c.b16 %v1055, %v1052
        %v1095 = vpack.c.b16 %v1056, %v1053
        %v1096 = vpack.c.b16 %v1060, %v1057
        %v1097 = vpack.c.b16 %v1061, %v1058
        %v1098 = vpack.c.b16 %v1062, %v1059
        %v1099 = vpack.c.b16 %v1066, %v1063
        %v1100 = vpack.c.b16 %v1067, %v1064
        %v1101 = vpack.c.b16 %v1068, %v1065
        %v1102 = vpack.c.b16 %v1072, %v1069
        %v1103 = vpack.c.b16 %v1073, %v1070
        %v1104 = vpack.c.b16 %v1074, %v1071
        %v1105 = vpack.c.b16 %v1078, %v1075
        %v1106 = vpack.c.b16 %v1079, %v1076
        %v1107 = vpack.c.b16 %v1080, %v1077
        %v1108 = vpack.c.b16 %v1084, %v1081
        %v1109 = vpack.c.b16 %v1085, %v1082
        %v1110 = vpack.c.b16 %v1086, %v1083
        %1135 = vmatpush.bf16.msra.mxu0 %v1108
        %1136 = vmatpush.bf16.msra.mxu0 %v1105
        %1137 = vmatpush.bf16.msra.mxu0 %v1102
        %1138 = vmatpush.bf16.msra.mxu0 %v1099
        %1139 = vmatpush.bf16.msra.mxu0 %v1096
        %1140 = vmatpush.bf16.msra.mxu0 %v1093
        %1141 = vmatpush.bf16.msra.mxu0 %v1090
        %1142 = vmatpush.bf16.msra.mxu0 %v1087
        %1143 = vmatmul.bf16.gmra.mxu0 %v965
        %v1144 = vpop.f32.mrf.mxu0
        %v1145 = vadd.f32 %v1001, %v1144
        %v1146 = vpop.f32.mrf.mxu0
        %v1147 = vadd.f32 %v1001, %v1146
        %1148 = vmatmul.bf16.gmra.mxu0 %v966
        %v1149 = vpop.f32.mrf.mxu0
        %v1150 = vadd.f32 %v1001, %v1149
        %v1151 = vpop.f32.mrf.mxu0
        %v1152 = vadd.f32 %v1001, %v1151
        %1153 = vdwg.mxu0
        %1154 = vmatpush.bf16.msra.mxu0 %v1109
        %1155 = vmatpush.bf16.msra.mxu0 %v1106
        %1156 = vmatpush.bf16.msra.mxu0 %v1103
        %1157 = vmatpush.bf16.msra.mxu0 %v1100
        %1158 = vmatpush.bf16.msra.mxu0 %v1097
        %1159 = vmatpush.bf16.msra.mxu0 %v1094
        %1160 = vmatpush.bf16.msra.mxu0 %v1091
        %1161 = vmatpush.bf16.msra.mxu0 %v1088
        %1162 = vmatmul.bf16.gmra.mxu0 %v965
        %v1163 = vpop.f32.mrf.mxu0
        %v1164 = vadd.f32 %v1002, %v1163
        %v1165 = vpop.f32.mrf.mxu0
        %v1166 = vadd.f32 %v1002, %v1165
        %1167 = vmatmul.bf16.gmra.mxu0 %v966
        %v1168 = vpop.f32.mrf.mxu0
        %v1169 = vadd.f32 %v1002, %v1168
        %v1170 = vpop.f32.mrf.mxu0
        %v1171 = vadd.f32 %v1002, %v1170
        %1172 = vdwg.mxu0
        %1173 = vmatpush.bf16.msra.mxu0 %v1110
        %1174 = vmatpush.bf16.msra.mxu0 %v1107
        %1175 = vmatpush.bf16.msra.mxu0 %v1104
        %1176 = vmatpush.bf16.msra.mxu0 %v1101
        %1177 = vmatpush.bf16.msra.mxu0 %v1098
        %1178 = vmatpush.bf16.msra.mxu0 %v1095
        %1179 = vmatpush.bf16.msra.mxu0 %v1092
        %1180 = vmatpush.bf16.msra.mxu0 %v1089
        %1181 = vmatmul.bf16.gmra.mxu0 %v965
        %v1182 = vpop.f32.mrf.mxu0
        %v1183 = vadd.f32 %v1003, %v1182
        %v1184 = vpop.f32.mrf.mxu0
        %v1185 = vadd.f32 %v1003, %v1184
        %1186 = vmatmul.bf16.gmra.mxu0 %v966
        %v1187 = vpop.f32.mrf.mxu0
        %v1188 = vadd.f32 %v1003, %v1187
        %v1189 = vpop.f32.mrf.mxu0
        %v1190 = vadd.f32 %v1003, %v1189
        %1191 = vdwg.mxu0
        %1196 = vrot.lane.b32.xlu0 %v1145, 64
        %v1197 = vpop.permute.xlu0 %1196
        %1198 = vrot.lane.b32.xlu0 %v1147, 64
        %v1199 = vpop.permute.xlu0 %1198
        %1200 = vrot.lane.b32.xlu0 %v1150, 64
        %v1201 = vpop.permute.xlu0 %1200
        %1202 = vrot.lane.b32.xlu0 %v1152, 64
        %v1203 = vpop.permute.xlu0 %1202
        %v1208 = vmul.f32 %v1145, 0.125
        %v1209 = vmul.f32 %v1147, 0.125
        %v1210 = vmul.f32 %v1150, 0.125
        %v1211 = vmul.f32 %v1152, 0.125
        %v1212 = vmul.f32 %v1197, 0.125
        %v1213 = vmul.f32 %v1199, 0.125
        %v1214 = vmul.f32 %v1201, 0.125
        %v1215 = vmul.f32 %v1203, 0.125
        %v1216 = vpack.c.bf16 %v1208, %v1208
        %v1217 = vpack.c.bf16 %v1209, %v1209
        %v1218 = vpack.c.bf16 %v1210, %v1210
        %v1219 = vpack.c.bf16 %v1211, %v1211
        %v1220 = vpack.c.bf16 %v1212, %v1212
        %v1221 = vpack.c.bf16 %v1213, %v1213
        %v1222 = vpack.c.bf16 %v1214, %v1214
        %v1223 = vpack.c.bf16 %v1215, %v1215
        %1228 = vrot.lane.b32.xlu0 %v1164, 64
        %v1229 = vpop.permute.xlu0 %1228
        %1230 = vrot.lane.b32.xlu0 %v1166, 64
        %v1231 = vpop.permute.xlu0 %1230
        %1232 = vrot.lane.b32.xlu0 %v1169, 64
        %v1233 = vpop.permute.xlu0 %1232
        %1234 = vrot.lane.b32.xlu0 %v1171, 64
        %v1235 = vpop.permute.xlu0 %1234
        %v1240 = vpack.c.bf16 %v1164, %v1164
        %v1241 = vpack.c.bf16 %v1166, %v1166
        %v1242 = vpack.c.bf16 %v1169, %v1169
        %v1243 = vpack.c.bf16 %v1171, %v1171
        %v1244 = vpack.c.bf16 %v1229, %v1229
        %v1245 = vpack.c.bf16 %v1231, %v1231
        %v1246 = vpack.c.bf16 %v1233, %v1233
        %v1247 = vpack.c.bf16 %v1235, %v1235
        %1252 = vrot.lane.b32.xlu0 %v1183, 64
        %v1253 = vpop.permute.xlu0 %1252
        %1254 = vrot.lane.b32.xlu0 %v1185, 64
        %v1255 = vpop.permute.xlu0 %1254
        %1256 = vrot.lane.b32.xlu0 %v1188, 64
        %v1257 = vpop.permute.xlu0 %1256
        %1258 = vrot.lane.b32.xlu0 %v1190, 64
        %v1259 = vpop.permute.xlu0 %1258
        %v1264 = vpack.c.bf16 %v1183, %v1183
        %v1265 = vpack.c.bf16 %v1185, %v1185
        %v1266 = vpack.c.bf16 %v1188, %v1188
        %v1267 = vpack.c.bf16 %v1190, %v1190
        %v1268 = vpack.c.bf16 %v1253, %v1253
        %v1269 = vpack.c.bf16 %v1255, %v1255
        %v1270 = vpack.c.bf16 %v1257, %v1257
        %v1271 = vpack.c.bf16 %v1259, %v1259
        %v1272 = vlaneseq
        %v1273 = vshrl.u32 %v1272, 7
        %v1274 = vadd.s32 %v1273, 8
        %v1275 = vlaneseq
        %v1276 = vand.u32 %v1275, 127
        %vm1277 = vcmp.le.s32.totalorder %v1276, %v1273
        %vm1278 = vcmp.le.s32.totalorder %v1276, %v1274
        %v1281 = vunpack.c.l.b16 %v1216
        %v1282 = vunpack.c.l.b16 %v1217
        %v1283 = vpack.c.b16 %v1282, %v1281
        %v1286 = vunpack.c.l.b16 %v1240
        %v1287 = vunpack.c.l.b16 %v1241
        %v1288 = vpack.c.b16 %v1287, %v1286
        %vm1289 = vcmask 523264
        %v1291 = vsel %vm1289, %v1283, 0
        %v1294 = vsel %vm1289, %v1288, 0
        %1296 = vmatpush.bf16.xpose.msra.mxu0 0
        %1297 = vmatpush.bf16.xpose.msra.mxu0 0
        %1298 = vmatpush.bf16.xpose.msra.mxu0 0
        %1299 = vmatpush.bf16.xpose.msra.mxu0 0
        %1300 = vmatpush.bf16.xpose.msra.mxu0 0
        %1301 = vmatpush.bf16.xpose.msra.mxu0 0
        %1302 = vmatpush.bf16.xpose.msra.mxu0 0
        %1303 = vmatpush.bf16.xpose.msra.mxu0 %v1294
        %1304 = vmatmul.bf16.gmra.mxu0 %v1291
        %v1305 = vpop.f32.mrf.mxu0
        %v1306 = vadd.f32 0.0, %v1305
        %v1307 = vpop.f32.mrf.mxu0
        %v1308 = vadd.f32 0.0, %v1307
        %1309 = vdwg.mxu0
        %v1312 = vunpack.c.l.b16 %v1218
        %v1313 = vunpack.c.l.b16 %v1219
        %v1314 = vpack.c.b16 %v1313, %v1312
        %v1317 = vunpack.c.l.b16 %v1242
        %v1318 = vunpack.c.l.b16 %v1243
        %v1319 = vpack.c.b16 %v1318, %v1317
        %v1321 = vsel %vm1289, %v1314, 0
        %v1324 = vsel %vm1289, %v1319, 0
        %1326 = vmatpush.bf16.xpose.msra.mxu0 0
        %1327 = vmatpush.bf16.xpose.msra.mxu0 0
        %1328 = vmatpush.bf16.xpose.msra.mxu0 0
        %1329 = vmatpush.bf16.xpose.msra.mxu0 0
        %1330 = vmatpush.bf16.xpose.msra.mxu0 0
        %1331 = vmatpush.bf16.xpose.msra.mxu0 0
        %1332 = vmatpush.bf16.xpose.msra.mxu0 0
        %1333 = vmatpush.bf16.xpose.msra.mxu0 %v1324
        %1334 = vmatmul.bf16.gmra.mxu0 %v1321
        %v1335 = vpop.f32.mrf.mxu0
        %v1336 = vadd.f32 0.0, %v1335
        %v1337 = vpop.f32.mrf.mxu0
        %v1338 = vadd.f32 0.0, %v1337
        %1339 = vdwg.mxu0
        %v1342 = vunpack.c.l.b16 %v1220
        %v1343 = vunpack.c.l.b16 %v1221
        %v1344 = vpack.c.b16 %v1343, %v1342
        %v1347 = vunpack.c.l.b16 %v1244
        %v1348 = vunpack.c.l.b16 %v1245
        %v1349 = vpack.c.b16 %v1348, %v1347
        %v1351 = vsel %vm1289, %v1344, 0
        %v1354 = vsel %vm1289, %v1349, 0
        %1356 = vmatpush.bf16.xpose.msra.mxu0 0
        %1357 = vmatpush.bf16.xpose.msra.mxu0 0
        %1358 = vmatpush.bf16.xpose.msra.mxu0 0
        %1359 = vmatpush.bf16.xpose.msra.mxu0 0
        %1360 = vmatpush.bf16.xpose.msra.mxu0 0
        %1361 = vmatpush.bf16.xpose.msra.mxu0 0
        %1362 = vmatpush.bf16.xpose.msra.mxu0 0
        %1363 = vmatpush.bf16.xpose.msra.mxu0 %v1354
        %1364 = vmatmul.bf16.gmra.mxu0 %v1351
        %v1365 = vpop.f32.mrf.mxu0
        %v1366 = vadd.f32 0.0, %v1365
        %v1367 = vpop.f32.mrf.mxu0
        %v1368 = vadd.f32 0.0, %v1367
        %1369 = vdwg.mxu0
        %v1372 = vunpack.c.l.b16 %v1222
        %v1373 = vunpack.c.l.b16 %v1223
        %v1374 = vpack.c.b16 %v1373, %v1372
        %v1377 = vunpack.c.l.b16 %v1246
        %v1378 = vunpack.c.l.b16 %v1247
        %v1379 = vpack.c.b16 %v1378, %v1377
        %v1381 = vsel %vm1289, %v1374, 0
        %v1384 = vsel %vm1289, %v1379, 0
        %1386 = vmatpush.bf16.xpose.msra.mxu0 0
        %1387 = vmatpush.bf16.xpose.msra.mxu0 0
        %1388 = vmatpush.bf16.xpose.msra.mxu0 0
        %1389 = vmatpush.bf16.xpose.msra.mxu0 0
        %1390 = vmatpush.bf16.xpose.msra.mxu0 0
        %1391 = vmatpush.bf16.xpose.msra.mxu0 0
        %1392 = vmatpush.bf16.xpose.msra.mxu0 0
        %1393 = vmatpush.bf16.xpose.msra.mxu0 %v1384
        %1394 = vmatmul.bf16.gmra.mxu0 %v1381
        %v1395 = vpop.f32.mrf.mxu0
        %v1396 = vadd.f32 0.0, %v1395
        %v1397 = vpop.f32.mrf.mxu0
        %v1398 = vadd.f32 0.0, %v1397
        %1399 = vdwg.mxu0
        %v1400 = vsel %vm1277, 1, 0
        %v1401 = vsel %vm1278, 1, 0
        %vm1402 = vcmp.eq.s32.totalorder %v1400, 1
        %vm1403 = vcmp.eq.s32.totalorder %v1401, 1
        %v1404 = vsel %vm1402, %v1306, -1e+30
        %v1405 = vsel %vm1403, %v1308, -1e+30
        %v1406 = vsel %vm1402, %v1336, -1e+30
        %v1407 = vsel %vm1403, %v1338, -1e+30
        %v1408 = vsel %vm1402, %v1366, -1e+30
        %v1409 = vsel %vm1403, %v1368, -1e+30
        %v1410 = vsel %vm1402, %v1396, -1e+30
        %v1411 = vsel %vm1403, %v1398, -1e+30
        %vm1412 = vcmask 130048
        %v1413 = vsel %vm1412, %v1404, -inf
        %1414 = vmax.xlane.f32.xlu0 %v1413
        %v1415 = vpop.xlane.xlu0 %1414
        %v1416 = vsel %vm1412, %v1405, -inf
        %1417 = vmax.xlane.f32.xlu0 %v1416
        %v1418 = vpop.xlane.xlu0 %1417
        %v1419 = vsel %vm1412, %v1406, -inf
        %1420 = vmax.xlane.f32.xlu0 %v1419
        %v1421 = vpop.xlane.xlu0 %1420
        %v1422 = vsel %vm1412, %v1407, -inf
        %1423 = vmax.xlane.f32.xlu0 %v1422
        %v1424 = vpop.xlane.xlu0 %1423
        %v1425 = vsel %vm1412, %v1408, -inf
        %1426 = vmax.xlane.f32.xlu0 %v1425
        %v1427 = vpop.xlane.xlu0 %1426
        %v1428 = vsel %vm1412, %v1409, -inf
        %1429 = vmax.xlane.f32.xlu0 %v1428
        %v1430 = vpop.xlane.xlu0 %1429
        %v1431 = vsel %vm1412, %v1410, -inf
        %1432 = vmax.xlane.f32.xlu0 %v1431
        %v1433 = vpop.xlane.xlu0 %1432
        %v1434 = vsel %vm1412, %v1411, -inf
        %1435 = vmax.xlane.f32.xlu0 %v1434
        %v1436 = vpop.xlane.xlu0 %1435
        %v1437 = vsub.f32 %v1404, %v1415
        %v1438 = vsub.f32 %v1405, %v1418
        %v1439 = vsub.f32 %v1406, %v1421
        %v1440 = vsub.f32 %v1407, %v1424
        %v1441 = vsub.f32 %v1408, %v1427
        %v1442 = vsub.f32 %v1409, %v1430
        %v1443 = vsub.f32 %v1410, %v1433
        %v1444 = vsub.f32 %v1411, %v1436
        %v1445 = vmul.f32 %v1437, 1.442695
        %v1446 = vpow.pop %v1445
        %v1447 = vmul.f32 %v1438, 1.442695
        %v1448 = vpow.pop %v1447
        %v1449 = vmul.f32 %v1439, 1.442695
        %v1450 = vpow.pop %v1449
        %v1451 = vmul.f32 %v1440, 1.442695
        %v1452 = vpow.pop %v1451
        %v1453 = vmul.f32 %v1441, 1.442695
        %v1454 = vpow.pop %v1453
        %v1455 = vmul.f32 %v1442, 1.442695
        %v1456 = vpow.pop %v1455
        %v1457 = vmul.f32 %v1443, 1.442695
        %v1458 = vpow.pop %v1457
        %v1459 = vmul.f32 %v1444, 1.442695
        %v1460 = vpow.pop %v1459
        %v1461 = vsel %vm1412, %v1446, 0.0
        %1462 = vadd.xlane.f32.xlu0 %v1461
        %v1463 = vpop.xlane.xlu0 %1462
        %v1464 = vsel %vm1412, %v1448, 0.0
        %1465 = vadd.xlane.f32.xlu0 %v1464
        %v1466 = vpop.xlane.xlu0 %1465
        %v1467 = vsel %vm1412, %v1450, 0.0
        %1468 = vadd.xlane.f32.xlu0 %v1467
        %v1469 = vpop.xlane.xlu0 %1468
        %v1470 = vsel %vm1412, %v1452, 0.0
        %1471 = vadd.xlane.f32.xlu0 %v1470
        %v1472 = vpop.xlane.xlu0 %1471
        %v1473 = vsel %vm1412, %v1454, 0.0
        %1474 = vadd.xlane.f32.xlu0 %v1473
        %v1475 = vpop.xlane.xlu0 %1474
        %v1476 = vsel %vm1412, %v1456, 0.0
        %1477 = vadd.xlane.f32.xlu0 %v1476
        %v1478 = vpop.xlane.xlu0 %1477
        %v1479 = vsel %vm1412, %v1458, 0.0
        %1480 = vadd.xlane.f32.xlu0 %v1479
        %v1481 = vpop.xlane.xlu0 %1480
        %v1482 = vsel %vm1412, %v1460, 0.0
        %1483 = vadd.xlane.f32.xlu0 %v1482
        %v1484 = vpop.xlane.xlu0 %1483
        %v1485 = vrcp.pop %v1463
        %v1486 = vrcp.pop %v1466
        %v1487 = vrcp.pop %v1469
        %v1488 = vrcp.pop %v1472
        %v1489 = vrcp.pop %v1475
        %v1490 = vrcp.pop %v1478
        %v1491 = vrcp.pop %v1481
        %v1492 = vrcp.pop %v1484
        %v1493 = vmul.f32 %v1446, %v1485
        %v1494 = vmul.f32 %v1448, %v1486
        %v1495 = vmul.f32 %v1450, %v1487
        %v1496 = vmul.f32 %v1452, %v1488
        %v1497 = vmul.f32 %v1454, %v1489
        %v1498 = vmul.f32 %v1456, %v1490
        %v1499 = vmul.f32 %v1458, %v1491
        %v1500 = vmul.f32 %v1460, %v1492
        %v1501 = vpack.c.bf16 %v1493, %v1493
        %v1502 = vpack.c.bf16 %v1494, %v1494
        %v1503 = vpack.c.bf16 %v1495, %v1495
        %v1504 = vpack.c.bf16 %v1496, %v1496
        %v1505 = vpack.c.bf16 %v1497, %v1497
        %v1506 = vpack.c.bf16 %v1498, %v1498
        %v1507 = vpack.c.bf16 %v1499, %v1499
        %v1508 = vpack.c.bf16 %v1500, %v1500
        %v1511 = vunpack.c.l.b16 %v1501
        %v1512 = vunpack.c.l.b16 %v1502
        %v1513 = vpack.c.b16 %v1512, %v1511
        %v1516 = vunpack.c.l.b16 %v1264
        %v1517 = vunpack.c.l.b16 %v1265
        %v1518 = vpack.c.b16 %v1517, %v1516
        %v1521 = vsel %vm1412, %v1513, 0
        %1523 = vmatpush.bf16.msra.mxu0 0
        %1524 = vmatpush.bf16.msra.mxu0 0
        %1525 = vmatpush.bf16.msra.mxu0 0
        %1526 = vmatpush.bf16.msra.mxu0 0
        %1527 = vmatpush.bf16.msra.mxu0 0
        %1528 = vmatpush.bf16.msra.mxu0 0
        %1529 = vmatpush.bf16.msra.mxu0 0
        %1530 = vmatpush.bf16.msra.mxu0 %v1518
        %1531 = vmatmul.bf16.gmra.mxu0 %v1521
        %v1532 = vpop.f32.mrf.mxu0
        %v1533 = vadd.f32 0.0, %v1532
        %v1534 = vpop.f32.mrf.mxu0
        %v1535 = vadd.f32 0.0, %v1534
        %1536 = vdwg.mxu0
        %v1539 = vunpack.c.l.b16 %v1503
        %v1540 = vunpack.c.l.b16 %v1504
        %v1541 = vpack.c.b16 %v1540, %v1539
        %v1544 = vunpack.c.l.b16 %v1266
        %v1545 = vunpack.c.l.b16 %v1267
        %v1546 = vpack.c.b16 %v1545, %v1544
        %v1549 = vsel %vm1412, %v1541, 0
        %1551 = vmatpush.bf16.msra.mxu0 0
        %1552 = vmatpush.bf16.msra.mxu0 0
        %1553 = vmatpush.bf16.msra.mxu0 0
        %1554 = vmatpush.bf16.msra.mxu0 0
        %1555 = vmatpush.bf16.msra.mxu0 0
        %1556 = vmatpush.bf16.msra.mxu0 0
        %1557 = vmatpush.bf16.msra.mxu0 0
        %1558 = vmatpush.bf16.msra.mxu0 %v1546
        %1559 = vmatmul.bf16.gmra.mxu0 %v1549
        %v1560 = vpop.f32.mrf.mxu0
        %v1561 = vadd.f32 0.0, %v1560
        %v1562 = vpop.f32.mrf.mxu0
        %v1563 = vadd.f32 0.0, %v1562
        %1564 = vdwg.mxu0
        %v1567 = vunpack.c.l.b16 %v1505
        %v1568 = vunpack.c.l.b16 %v1506
        %v1569 = vpack.c.b16 %v1568, %v1567
        %v1572 = vunpack.c.l.b16 %v1268
        %v1573 = vunpack.c.l.b16 %v1269
        %v1574 = vpack.c.b16 %v1573, %v1572
        %v1577 = vsel %vm1412, %v1569, 0
        %1579 = vmatpush.bf16.msra.mxu0 0
        %1580 = vmatpush.bf16.msra.mxu0 0
        %1581 = vmatpush.bf16.msra.mxu0 0
        %1582 = vmatpush.bf16.msra.mxu0 0
        %1583 = vmatpush.bf16.msra.mxu0 0
        %1584 = vmatpush.bf16.msra.mxu0 0
        %1585 = vmatpush.bf16.msra.mxu0 0
        %1586 = vmatpush.bf16.msra.mxu0 %v1574
        %1587 = vmatmul.bf16.gmra.mxu0 %v1577
        %v1588 = vpop.f32.mrf.mxu0
        %v1589 = vadd.f32 0.0, %v1588
        %v1590 = vpop.f32.mrf.mxu0
        %v1591 = vadd.f32 0.0, %v1590
        %1592 = vdwg.mxu0
        %v1595 = vunpack.c.l.b16 %v1507
        %v1596 = vunpack.c.l.b16 %v1508
        %v1597 = vpack.c.b16 %v1596, %v1595
        %v1600 = vunpack.c.l.b16 %v1270
        %v1601 = vunpack.c.l.b16 %v1271
        %v1602 = vpack.c.b16 %v1601, %v1600
        %v1605 = vsel %vm1412, %v1597, 0
        %1607 = vmatpush.bf16.msra.mxu0 0
        %1608 = vmatpush.bf16.msra.mxu0 0
        %1609 = vmatpush.bf16.msra.mxu0 0
        %1610 = vmatpush.bf16.msra.mxu0 0
        %1611 = vmatpush.bf16.msra.mxu0 0
        %1612 = vmatpush.bf16.msra.mxu0 0
        %1613 = vmatpush.bf16.msra.mxu0 0
        %1614 = vmatpush.bf16.msra.mxu0 %v1602
        %1615 = vmatmul.bf16.gmra.mxu0 %v1605
        %v1616 = vpop.f32.mrf.mxu0
        %v1617 = vadd.f32 0.0, %v1616
        %v1618 = vpop.f32.mrf.mxu0
        %v1619 = vadd.f32 0.0, %v1618
        %1620 = vdwg.mxu0
        %1625 = vrot.lane.b32.xlu0 %v1589, 64
        %v1626 = vpop.permute.xlu0 %1625
        %1627 = vrot.lane.b32.xlu0 %v1591, 64
        %v1628 = vpop.permute.xlu0 %1627
        %1629 = vrot.lane.b32.xlu0 %v1617, 64
        %v1630 = vpop.permute.xlu0 %1629
        %1631 = vrot.lane.b32.xlu0 %v1619, 64
        %v1632 = vpop.permute.xlu0 %1631
        %v1637 = vsel %vm1289, %v1533, %v1626
        %v1638 = vsel %vm1289, %v1535, %v1628
        %v1639 = vsel %vm1289, %v1561, %v1630
        %v1640 = vsel %vm1289, %v1563, %v1632
        %v1641 = vpack.c.bf16 %v1638, %v1637
        %v1642 = vpack.c.bf16 %v1640, %v1639
        %v1643 = vld [vmem:[%s694] sm:$0xf]
        %v1644 = vld [vmem:[%s694 + $0x4] sm:$0xf]
        %v1645 = vld [vmem:[%s694 + $0x8] sm:$0xf]
        %v1646 = vld [vmem:[%s694 + $0xc] sm:$0xf]
        %v1647 = vld [vmem:[%s694 + $0x10] sm:$0xf]
        %v1648 = vld [vmem:[%s694 + $0x14] sm:$0xf]
        %v1649 = vld [vmem:[%s694 + $0x18] sm:$0xf]
        %v1650 = vld [vmem:[%s694 + $0x1c] sm:$0xf]
        %v1651 = vld [vmem:[%s694 + $0x20] sm:$0xf]
        %v1652 = vld [vmem:[%s694 + $0x24] sm:$0xf]
        %v1653 = vld [vmem:[%s694 + $0x28] sm:$0xf]
        %v1654 = vld [vmem:[%s694 + $0x2c] sm:$0xf]
        %v1655 = vld [vmem:[%s694 + $0x30] sm:$0xf]
        %v1656 = vld [vmem:[%s694 + $0x34] sm:$0xf]
        %v1657 = vld [vmem:[%s694 + $0x38] sm:$0xf]
        %v1658 = vld [vmem:[%s694 + $0x3c] sm:$0xf]
        %v1659 = vld [vmem:[%s703] sm:$0x1]
        %v1661 = vperm.slane %v1659, 0
        %v1679 = vunpack.c.l.b16 %v1643
        %v1680 = vunpack.c.l.b16 %v1644
        %v1681 = vunpack.c.l.b16 %v1645
        %v1682 = vunpack.c.l.b16 %v1646
        %v1683 = vunpack.c.l.b16 %v1647
        %v1684 = vunpack.c.l.b16 %v1648
        %v1685 = vunpack.c.l.b16 %v1649
        %v1686 = vunpack.c.l.b16 %v1650
        %v1687 = vunpack.c.l.b16 %v1651
        %v1688 = vunpack.c.l.b16 %v1652
        %v1689 = vunpack.c.l.b16 %v1653
        %v1690 = vunpack.c.l.b16 %v1654
        %v1691 = vunpack.c.l.b16 %v1655
        %v1692 = vunpack.c.l.b16 %v1656
        %v1693 = vunpack.c.l.b16 %v1657
        %v1694 = vunpack.c.l.b16 %v1658
        %v1695 = vpack.c.b16 %v1680, %v1679
        %v1696 = vpack.c.b16 %v1682, %v1681
        %v1697 = vpack.c.b16 %v1684, %v1683
        %v1698 = vpack.c.b16 %v1686, %v1685
        %v1699 = vpack.c.b16 %v1688, %v1687
        %v1700 = vpack.c.b16 %v1690, %v1689
        %v1701 = vpack.c.b16 %v1692, %v1691
        %v1702 = vpack.c.b16 %v1694, %v1693
        %1711 = vmatpush.bf16.msra.mxu0 %v1702
        %1712 = vmatpush.bf16.msra.mxu0 %v1701
        %1713 = vmatpush.bf16.msra.mxu0 %v1700
        %1714 = vmatpush.bf16.msra.mxu0 %v1699
        %1715 = vmatpush.bf16.msra.mxu0 %v1698
        %1716 = vmatpush.bf16.msra.mxu0 %v1697
        %1717 = vmatpush.bf16.msra.mxu0 %v1696
        %1718 = vmatpush.bf16.msra.mxu0 %v1695
        %1719 = vmatmul.bf16.gmra.mxu0 %v1641
        %v1720 = vpop.f32.mrf.mxu0
        %v1721 = vadd.f32 %v1661, %v1720
        %v1722 = vpop.f32.mrf.mxu0
        %v1723 = vadd.f32 %v1661, %v1722
        %1724 = vmatmul.bf16.gmra.mxu0 %v1642
        %v1725 = vpop.f32.mrf.mxu0
        %v1726 = vadd.f32 %v1661, %v1725
        %v1727 = vpop.f32.mrf.mxu0
        %v1728 = vadd.f32 %v1661, %v1727
        %1729 = vdwg.mxu0
        %v1730 = vadd.f32 %v858, %v1721
        %v1731 = vadd.f32 %v859, %v1723
        %v1732 = vadd.f32 %v860, %v1726
        %v1733 = vadd.f32 %v861, %v1728
        %v1734 = vld [vmem:[%s712] sm:$0x1]
        %v1735 = vld [vmem:[%s721] sm:$0x1]
        %1736 = vadd.xlane.f32.xlu0 %v1730
        %v1737 = vpop.xlane.xlu0 %1736
        %1738 = vadd.xlane.f32.xlu0 %v1731
        %v1739 = vpop.xlane.xlu0 %1738
        %1740 = vadd.xlane.f32.xlu0 %v1732
        %v1741 = vpop.xlane.xlu0 %1740
        %1742 = vadd.xlane.f32.xlu0 %v1733
        %v1743 = vpop.xlane.xlu0 %1742
        %v1744 = vmul.f32 %v1737, %v878
        %v1745 = vmul.f32 %v1739, %v878
        %v1746 = vmul.f32 %v1741, %v878
        %v1747 = vmul.f32 %v1743, %v878
        %v1748 = vsub.f32 %v1730, %v1744
        %v1749 = vsub.f32 %v1731, %v1745
        %v1750 = vsub.f32 %v1732, %v1746
        %v1751 = vsub.f32 %v1733, %v1747
        %v1752 = vmul.f32 %v1748, %v1748
        %v1753 = vmul.f32 %v1749, %v1749
        %v1754 = vmul.f32 %v1750, %v1750
        %v1755 = vmul.f32 %v1751, %v1751
        %1756 = vadd.xlane.f32.xlu0 %v1752
        %v1757 = vpop.xlane.xlu0 %1756
        %1758 = vadd.xlane.f32.xlu0 %v1753
        %v1759 = vpop.xlane.xlu0 %1758
        %1760 = vadd.xlane.f32.xlu0 %v1754
        %v1761 = vpop.xlane.xlu0 %1760
        %1762 = vadd.xlane.f32.xlu0 %v1755
        %v1763 = vpop.xlane.xlu0 %1762
        %v1764 = vmul.f32 %v1757, %v878
        %v1765 = vmul.f32 %v1759, %v878
        %v1766 = vmul.f32 %v1761, %v878
        %v1767 = vmul.f32 %v1763, %v878
        %v1768 = vadd.f32 %v1764, 1e-05
        %v1769 = vadd.f32 %v1765, 1e-05
        %v1770 = vadd.f32 %v1766, 1e-05
        %v1771 = vadd.f32 %v1767, 1e-05
        %v1772 = vrsqrt.pop %v1768
        %v1773 = vmul.f32 %v1772, %v1768
        %v1774 = vmul.f32 %v1773, %v1772
        %v1775 = vmul.f32 0.5, %v1774
        %v1776 = vsub.f32 1.5, %v1775
        %v1777 = vmul.f32 %v1772, %v1776
        %vm1778 = vweird.f32 %v1768
        %vm1779 = vweird.f32 %v1772
        %vm1780 = vmor %vm1778, %vm1779
        %v1781 = vsel %vm1780, %v1772, %v1777
        %v1782 = vrsqrt.pop %v1769
        %v1783 = vmul.f32 %v1782, %v1769
        %v1784 = vmul.f32 %v1783, %v1782
        %v1785 = vmul.f32 0.5, %v1784
        %v1786 = vsub.f32 1.5, %v1785
        %v1787 = vmul.f32 %v1782, %v1786
        %vm1788 = vweird.f32 %v1769
        %vm1789 = vweird.f32 %v1782
        %vm1790 = vmor %vm1788, %vm1789
        %v1791 = vsel %vm1790, %v1782, %v1787
        %v1792 = vrsqrt.pop %v1770
        %v1793 = vmul.f32 %v1792, %v1770
        %v1794 = vmul.f32 %v1793, %v1792
        %v1795 = vmul.f32 0.5, %v1794
        %v1796 = vsub.f32 1.5, %v1795
        %v1797 = vmul.f32 %v1792, %v1796
        %vm1798 = vweird.f32 %v1770
        %vm1799 = vweird.f32 %v1792
        %vm1800 = vmor %vm1798, %vm1799
        %v1801 = vsel %vm1800, %v1792, %v1797
        %v1802 = vrsqrt.pop %v1771
        %v1803 = vmul.f32 %v1802, %v1771
        %v1804 = vmul.f32 %v1803, %v1802
        %v1805 = vmul.f32 0.5, %v1804
        %v1806 = vsub.f32 1.5, %v1805
        %v1807 = vmul.f32 %v1802, %v1806
        %vm1808 = vweird.f32 %v1771
        %vm1809 = vweird.f32 %v1802
        %vm1810 = vmor %vm1808, %vm1809
        %v1811 = vsel %vm1810, %v1802, %v1807
        %v1812 = vmul.f32 %v1748, %v1781
        %v1813 = vmul.f32 %v1749, %v1791
        %v1814 = vmul.f32 %v1750, %v1801
        %v1815 = vmul.f32 %v1751, %v1811
        %v1817 = vperm.slane %v1734, 0
        %v1819 = vmul.f32 %v1812, %v1817
        %v1820 = vmul.f32 %v1813, %v1817
        %v1821 = vmul.f32 %v1814, %v1817
        %v1822 = vmul.f32 %v1815, %v1817
        %v1824 = vperm.slane %v1735, 0
        %v1826 = vadd.f32 %v1819, %v1824
        %v1827 = vadd.f32 %v1820, %v1824
        %v1828 = vadd.f32 %v1821, %v1824
        %v1829 = vadd.f32 %v1822, %v1824
        %v1830 = vpack.c.bf16 %v1827, %v1826
        %v1831 = vpack.c.bf16 %v1829, %v1828
        %v1832 = vld [vmem:[%s731] sm:$0xff]
        %v1833 = vld [vmem:[%s731 + $0x8] sm:$0xff]
        %v1834 = vld [vmem:[%s731 + $0x10] sm:$0xff]
        %v1835 = vld [vmem:[%s731 + $0x18] sm:$0xff]
        %v1836 = vld [vmem:[%s731 + $0x20] sm:$0xff]
        %v1837 = vld [vmem:[%s731 + $0x28] sm:$0xff]
        %v1838 = vld [vmem:[%s731 + $0x30] sm:$0xff]
        %v1839 = vld [vmem:[%s731 + $0x38] sm:$0xff]
        %v1840 = vld [vmem:[%s731 + $0x40] sm:$0xff]
        %v1841 = vld [vmem:[%s731 + $0x48] sm:$0xff]
        %v1842 = vld [vmem:[%s731 + $0x50] sm:$0xff]
        %v1843 = vld [vmem:[%s731 + $0x58] sm:$0xff]
        %v1844 = vld [vmem:[%s731 + $0x60] sm:$0xff]
        %v1845 = vld [vmem:[%s731 + $0x68] sm:$0xff]
        %v1846 = vld [vmem:[%s731 + $0x70] sm:$0xff]
        %v1847 = vld [vmem:[%s731 + $0x78] sm:$0xff]
        %v1848 = vld [vmem:[%s731 + $0x80] sm:$0xff]
        %v1849 = vld [vmem:[%s731 + $0x88] sm:$0xff]
        %v1850 = vld [vmem:[%s731 + $0x90] sm:$0xff]
        %v1851 = vld [vmem:[%s731 + $0x98] sm:$0xff]
        %v1852 = vld [vmem:[%s731 + $0xa0] sm:$0xff]
        %v1853 = vld [vmem:[%s731 + $0xa8] sm:$0xff]
        %v1854 = vld [vmem:[%s731 + $0xb0] sm:$0xff]
        %v1855 = vld [vmem:[%s731 + $0xb8] sm:$0xff]
        %v1856 = vld [vmem:[%s731 + $0xc0] sm:$0xff]
        %v1857 = vld [vmem:[%s731 + $0xc8] sm:$0xff]
        %v1858 = vld [vmem:[%s731 + $0xd0] sm:$0xff]
        %v1859 = vld [vmem:[%s731 + $0xd8] sm:$0xff]
        %v1860 = vld [vmem:[%s731 + $0xe0] sm:$0xff]
        %v1861 = vld [vmem:[%s731 + $0xe8] sm:$0xff]
        %v1862 = vld [vmem:[%s731 + $0xf0] sm:$0xff]
        %v1863 = vld [vmem:[%s731 + $0xf8] sm:$0xff]
        %v1864 = vld [vmem:[%s832] sm:$0xf]
        %v1866 = vperm.slane %v1864, 0
        %v1867 = vperm.slane %v1864, 1
        %v1868 = vperm.slane %v1864, 2
        %v1869 = vperm.slane %v1864, 3
        %v1906 = vunpack.c.l.b16 %v1832
        %v1907 = vunpack.c.h.b16 %v1832
        %v1908 = vunpack.c.l.b16 %v1833
        %v1909 = vunpack.c.h.b16 %v1833
        %v1910 = vunpack.c.l.b16 %v1834
        %v1911 = vunpack.c.h.b16 %v1834
        %v1912 = vunpack.c.l.b16 %v1835
        %v1913 = vunpack.c.h.b16 %v1835
        %v1914 = vunpack.c.l.b16 %v1836
        %v1915 = vunpack.c.h.b16 %v1836
        %v1916 = vunpack.c.l.b16 %v1837
        %v1917 = vunpack.c.h.b16 %v1837
        %v1918 = vunpack.c.l.b16 %v1838
        %v1919 = vunpack.c.h.b16 %v1838
        %v1920 = vunpack.c.l.b16 %v1839
        %v1921 = vunpack.c.h.b16 %v1839
        %v1922 = vunpack.c.l.b16 %v1840
        %v1923 = vunpack.c.h.b16 %v1840
        %v1924 = vunpack.c.l.b16 %v1841
        %v1925 = vunpack.c.h.b16 %v1841
        %v1926 = vunpack.c.l.b16 %v1842
        %v1927 = vunpack.c.h.b16 %v1842
        %v1928 = vunpack.c.l.b16 %v1843
        %v1929 = vunpack.c.h.b16 %v1843
        %v1930 = vunpack.c.l.b16 %v1844
        %v1931 = vunpack.c.h.b16 %v1844
        %v1932 = vunpack.c.l.b16 %v1845
        %v1933 = vunpack.c.h.b16 %v1845
        %v1934 = vunpack.c.l.b16 %v1846
        %v1935 = vunpack.c.h.b16 %v1846
        %v1936 = vunpack.c.l.b16 %v1847
        %v1937 = vunpack.c.h.b16 %v1847
        %v1938 = vunpack.c.l.b16 %v1848
        %v1939 = vunpack.c.h.b16 %v1848
        %v1940 = vunpack.c.l.b16 %v1849
        %v1941 = vunpack.c.h.b16 %v1849
        %v1942 = vunpack.c.l.b16 %v1850
        %v1943 = vunpack.c.h.b16 %v1850
        %v1944 = vunpack.c.l.b16 %v1851
        %v1945 = vunpack.c.h.b16 %v1851
        %v1946 = vunpack.c.l.b16 %v1852
        %v1947 = vunpack.c.h.b16 %v1852
        %v1948 = vunpack.c.l.b16 %v1853
        %v1949 = vunpack.c.h.b16 %v1853
        %v1950 = vunpack.c.l.b16 %v1854
        %v1951 = vunpack.c.h.b16 %v1854
        %v1952 = vunpack.c.l.b16 %v1855
        %v1953 = vunpack.c.h.b16 %v1855
        %v1954 = vunpack.c.l.b16 %v1856
        %v1955 = vunpack.c.h.b16 %v1856
        %v1956 = vunpack.c.l.b16 %v1857
        %v1957 = vunpack.c.h.b16 %v1857
        %v1958 = vunpack.c.l.b16 %v1858
        %v1959 = vunpack.c.h.b16 %v1858
        %v1960 = vunpack.c.l.b16 %v1859
        %v1961 = vunpack.c.h.b16 %v1859
        %v1962 = vunpack.c.l.b16 %v1860
        %v1963 = vunpack.c.h.b16 %v1860
        %v1964 = vunpack.c.l.b16 %v1861
        %v1965 = vunpack.c.h.b16 %v1861
        %v1966 = vunpack.c.l.b16 %v1862
        %v1967 = vunpack.c.h.b16 %v1862
        %v1968 = vunpack.c.l.b16 %v1863
        %v1969 = vunpack.c.h.b16 %v1863
        %v1970 = vpack.c.b16 %v1910, %v1906
        %v1971 = vpack.c.b16 %v1911, %v1907
        %v1972 = vpack.c.b16 %v1912, %v1908
        %v1973 = vpack.c.b16 %v1913, %v1909
        %v1974 = vpack.c.b16 %v1918, %v1914
        %v1975 = vpack.c.b16 %v1919, %v1915
        %v1976 = vpack.c.b16 %v1920, %v1916
        %v1977 = vpack.c.b16 %v1921, %v1917
        %v1978 = vpack.c.b16 %v1926, %v1922
        %v1979 = vpack.c.b16 %v1927, %v1923
        %v1980 = vpack.c.b16 %v1928, %v1924
        %v1981 = vpack.c.b16 %v1929, %v1925
        %v1982 = vpack.c.b16 %v1934, %v1930
        %v1983 = vpack.c.b16 %v1935, %v1931
        %v1984 = vpack.c.b16 %v1936, %v1932
        %v1985 = vpack.c.b16 %v1937, %v1933
        %v1986 = vpack.c.b16 %v1942, %v1938
        %v1987 = vpack.c.b16 %v1943, %v1939
        %v1988 = vpack.c.b16 %v1944, %v1940
        %v1989 = vpack.c.b16 %v1945, %v1941
        %v1990 = vpack.c.b16 %v1950, %v1946
        %v1991 = vpack.c.b16 %v1951, %v1947
        %v1992 = vpack.c.b16 %v1952, %v1948
        %v1993 = vpack.c.b16 %v1953, %v1949
        %v1994 = vpack.c.b16 %v1958, %v1954
        %v1995 = vpack.c.b16 %v1959, %v1955
        %v1996 = vpack.c.b16 %v1960, %v1956
        %v1997 = vpack.c.b16 %v1961, %v1957
        %v1998 = vpack.c.b16 %v1966, %v1962
        %v1999 = vpack.c.b16 %v1967, %v1963
        %v2000 = vpack.c.b16 %v1968, %v1964
        %v2001 = vpack.c.b16 %v1969, %v1965
        %2034 = vmatpush.bf16.msra.mxu0 %v1998
        %2035 = vmatpush.bf16.msra.mxu0 %v1994
        %2036 = vmatpush.bf16.msra.mxu0 %v1990
        %2037 = vmatpush.bf16.msra.mxu0 %v1986
        %2038 = vmatpush.bf16.msra.mxu0 %v1982
        %2039 = vmatpush.bf16.msra.mxu0 %v1978
        %2040 = vmatpush.bf16.msra.mxu0 %v1974
        %2041 = vmatpush.bf16.msra.mxu0 %v1970
        %2042 = vmatmul.bf16.gmra.mxu0 %v1830
        %v2043 = vpop.f32.mrf.mxu0
        %v2044 = vadd.f32 %v1866, %v2043
        %v2045 = vpop.f32.mrf.mxu0
        %v2046 = vadd.f32 %v1866, %v2045
        %2047 = vmatmul.bf16.gmra.mxu0 %v1831
        %v2048 = vpop.f32.mrf.mxu0
        %v2049 = vadd.f32 %v1866, %v2048
        %v2050 = vpop.f32.mrf.mxu0
        %v2051 = vadd.f32 %v1866, %v2050
        %2052 = vdwg.mxu0
        %2053 = vmatpush.bf16.msra.mxu0 %v1999
        %2054 = vmatpush.bf16.msra.mxu0 %v1995
        %2055 = vmatpush.bf16.msra.mxu0 %v1991
        %2056 = vmatpush.bf16.msra.mxu0 %v1987
        %2057 = vmatpush.bf16.msra.mxu0 %v1983
        %2058 = vmatpush.bf16.msra.mxu0 %v1979
        %2059 = vmatpush.bf16.msra.mxu0 %v1975
        %2060 = vmatpush.bf16.msra.mxu0 %v1971
        %2061 = vmatmul.bf16.gmra.mxu0 %v1830
        %v2062 = vpop.f32.mrf.mxu0
        %v2063 = vadd.f32 %v1867, %v2062
        %v2064 = vpop.f32.mrf.mxu0
        %v2065 = vadd.f32 %v1867, %v2064
        %2066 = vmatmul.bf16.gmra.mxu0 %v1831
        %v2067 = vpop.f32.mrf.mxu0
        %v2068 = vadd.f32 %v1867, %v2067
        %v2069 = vpop.f32.mrf.mxu0
        %v2070 = vadd.f32 %v1867, %v2069
        %2071 = vdwg.mxu0
        %2072 = vmatpush.bf16.msra.mxu0 %v2000
        %2073 = vmatpush.bf16.msra.mxu0 %v1996
        %2074 = vmatpush.bf16.msra.mxu0 %v1992
        %2075 = vmatpush.bf16.msra.mxu0 %v1988
        %2076 = vmatpush.bf16.msra.mxu0 %v1984
        %2077 = vmatpush.bf16.msra.mxu0 %v1980
        %2078 = vmatpush.bf16.msra.mxu0 %v1976
        %2079 = vmatpush.bf16.msra.mxu0 %v1972
        %2080 = vmatmul.bf16.gmra.mxu0 %v1830
        %v2081 = vpop.f32.mrf.mxu0
        %v2082 = vadd.f32 %v1868, %v2081
        %v2083 = vpop.f32.mrf.mxu0
        %v2084 = vadd.f32 %v1868, %v2083
        %2085 = vmatmul.bf16.gmra.mxu0 %v1831
        %v2086 = vpop.f32.mrf.mxu0
        %v2087 = vadd.f32 %v1868, %v2086
        %v2088 = vpop.f32.mrf.mxu0
        %v2089 = vadd.f32 %v1868, %v2088
        %2090 = vdwg.mxu0
        %2091 = vmatpush.bf16.msra.mxu0 %v2001
        %2092 = vmatpush.bf16.msra.mxu0 %v1997
        %2093 = vmatpush.bf16.msra.mxu0 %v1993
        %2094 = vmatpush.bf16.msra.mxu0 %v1989
        %2095 = vmatpush.bf16.msra.mxu0 %v1985
        %2096 = vmatpush.bf16.msra.mxu0 %v1981
        %2097 = vmatpush.bf16.msra.mxu0 %v1977
        %2098 = vmatpush.bf16.msra.mxu0 %v1973
        %2099 = vmatmul.bf16.gmra.mxu0 %v1830
        %v2100 = vpop.f32.mrf.mxu0
        %v2101 = vadd.f32 %v1869, %v2100
        %v2102 = vpop.f32.mrf.mxu0
        %v2103 = vadd.f32 %v1869, %v2102
        %2104 = vmatmul.bf16.gmra.mxu0 %v1831
        %v2105 = vpop.f32.mrf.mxu0
        %v2106 = vadd.f32 %v1869, %v2105
        %v2107 = vpop.f32.mrf.mxu0
        %v2108 = vadd.f32 %v1869, %v2107
        %2109 = vdwg.mxu0
        %v2110 = vmul.f32 %v2044, 0.5
        %v2111 = vmul.f32 %v2063, 0.5
        %v2112 = vmul.f32 %v2082, 0.5
        %v2113 = vmul.f32 %v2101, 0.5
        %v2114 = vmul.f32 %v2046, 0.5
        %v2115 = vmul.f32 %v2065, 0.5
        %v2116 = vmul.f32 %v2084, 0.5
        %v2117 = vmul.f32 %v2103, 0.5
        %v2118 = vmul.f32 %v2049, 0.5
        %v2119 = vmul.f32 %v2068, 0.5
        %v2120 = vmul.f32 %v2087, 0.5
        %v2121 = vmul.f32 %v2106, 0.5
        %v2122 = vmul.f32 %v2051, 0.5
        %v2123 = vmul.f32 %v2070, 0.5
        %v2124 = vmul.f32 %v2089, 0.5
        %v2125 = vmul.f32 %v2108, 0.5
        %v2126 = vmul.f32 %v2044, 0.044715
        %v2127 = vmul.f32 %v2063, 0.044715
        %v2128 = vmul.f32 %v2082, 0.044715
        %v2129 = vmul.f32 %v2101, 0.044715
        %v2130 = vmul.f32 %v2046, 0.044715
        %v2131 = vmul.f32 %v2065, 0.044715
        %v2132 = vmul.f32 %v2084, 0.044715
        %v2133 = vmul.f32 %v2103, 0.044715
        %v2134 = vmul.f32 %v2049, 0.044715
        %v2135 = vmul.f32 %v2068, 0.044715
        %v2136 = vmul.f32 %v2087, 0.044715
        %v2137 = vmul.f32 %v2106, 0.044715
        %v2138 = vmul.f32 %v2051, 0.044715
        %v2139 = vmul.f32 %v2070, 0.044715
        %v2140 = vmul.f32 %v2089, 0.044715
        %v2141 = vmul.f32 %v2108, 0.044715
        %v2142 = vmul.f32 %v2126, %v2044
        %v2143 = vmul.f32 %v2127, %v2063
        %v2144 = vmul.f32 %v2128, %v2082
        %v2145 = vmul.f32 %v2129, %v2101
        %v2146 = vmul.f32 %v2130, %v2046
        %v2147 = vmul.f32 %v2131, %v2065
        %v2148 = vmul.f32 %v2132, %v2084
        %v2149 = vmul.f32 %v2133, %v2103
        %v2150 = vmul.f32 %v2134, %v2049
        %v2151 = vmul.f32 %v2135, %v2068
        %v2152 = vmul.f32 %v2136, %v2087
        %v2153 = vmul.f32 %v2137, %v2106
        %v2154 = vmul.f32 %v2138, %v2051
        %v2155 = vmul.f32 %v2139, %v2070
        %v2156 = vmul.f32 %v2140, %v2089
        %v2157 = vmul.f32 %v2141, %v2108
        %v2158 = vmul.f32 %v2142, %v2044
        %v2159 = vmul.f32 %v2143, %v2063
        %v2160 = vmul.f32 %v2144, %v2082
        %v2161 = vmul.f32 %v2145, %v2101
        %v2162 = vmul.f32 %v2146, %v2046
        %v2163 = vmul.f32 %v2147, %v2065
        %v2164 = vmul.f32 %v2148, %v2084
        %v2165 = vmul.f32 %v2149, %v2103
        %v2166 = vmul.f32 %v2150, %v2049
        %v2167 = vmul.f32 %v2151, %v2068
        %v2168 = vmul.f32 %v2152, %v2087
        %v2169 = vmul.f32 %v2153, %v2106
        %v2170 = vmul.f32 %v2154, %v2051
        %v2171 = vmul.f32 %v2155, %v2070
        %v2172 = vmul.f32 %v2156, %v2089
        %v2173 = vmul.f32 %v2157, %v2108
        %v2174 = vadd.f32 %v2044, %v2158
        %v2175 = vadd.f32 %v2063, %v2159
        %v2176 = vadd.f32 %v2082, %v2160
        %v2177 = vadd.f32 %v2101, %v2161
        %v2178 = vadd.f32 %v2046, %v2162
        %v2179 = vadd.f32 %v2065, %v2163
        %v2180 = vadd.f32 %v2084, %v2164
        %v2181 = vadd.f32 %v2103, %v2165
        %v2182 = vadd.f32 %v2049, %v2166
        %v2183 = vadd.f32 %v2068, %v2167
        %v2184 = vadd.f32 %v2087, %v2168
        %v2185 = vadd.f32 %v2106, %v2169
        %v2186 = vadd.f32 %v2051, %v2170
        %v2187 = vadd.f32 %v2070, %v2171
        %v2188 = vadd.f32 %v2089, %v2172
        %v2189 = vadd.f32 %v2108, %v2173
        %v2190 = vmul.f32 %v2174, 0.7978846
        %v2191 = vmul.f32 %v2175, 0.7978846
        %v2192 = vmul.f32 %v2176, 0.7978846
        %v2193 = vmul.f32 %v2177, 0.7978846
        %v2194 = vmul.f32 %v2178, 0.7978846
        %v2195 = vmul.f32 %v2179, 0.7978846
        %v2196 = vmul.f32 %v2180, 0.7978846
        %v2197 = vmul.f32 %v2181, 0.7978846
        %v2198 = vmul.f32 %v2182, 0.7978846
        %v2199 = vmul.f32 %v2183, 0.7978846
        %v2200 = vmul.f32 %v2184, 0.7978846
        %v2201 = vmul.f32 %v2185, 0.7978846
        %v2202 = vmul.f32 %v2186, 0.7978846
        %v2203 = vmul.f32 %v2187, 0.7978846
        %v2204 = vmul.f32 %v2188, 0.7978846
        %v2205 = vmul.f32 %v2189, 0.7978846
        %v2206 = vtanh.pop %v2190
        %v2207 = vtanh.pop %v2191
        %v2208 = vtanh.pop %v2192
        %v2209 = vtanh.pop %v2193
        %v2210 = vtanh.pop %v2194
        %v2211 = vtanh.pop %v2195
        %v2212 = vtanh.pop %v2196
        %v2213 = vtanh.pop %v2197
        %v2214 = vtanh.pop %v2198
        %v2215 = vtanh.pop %v2199
        %v2216 = vtanh.pop %v2200
        %v2217 = vtanh.pop %v2201
        %v2218 = vtanh.pop %v2202
        %v2219 = vtanh.pop %v2203
        %v2220 = vtanh.pop %v2204
        %v2221 = vtanh.pop %v2205
        %v2222 = vadd.f32 %v2206, 1.0
        %v2223 = vadd.f32 %v2207, 1.0
        %v2224 = vadd.f32 %v2208, 1.0
        %v2225 = vadd.f32 %v2209, 1.0
        %v2226 = vadd.f32 %v2210, 1.0
        %v2227 = vadd.f32 %v2211, 1.0
        %v2228 = vadd.f32 %v2212, 1.0
        %v2229 = vadd.f32 %v2213, 1.0
        %v2230 = vadd.f32 %v2214, 1.0
        %v2231 = vadd.f32 %v2215, 1.0
        %v2232 = vadd.f32 %v2216, 1.0
        %v2233 = vadd.f32 %v2217, 1.0
        %v2234 = vadd.f32 %v2218, 1.0
        %v2235 = vadd.f32 %v2219, 1.0
        %v2236 = vadd.f32 %v2220, 1.0
        %v2237 = vadd.f32 %v2221, 1.0
        %v2238 = vmul.f32 %v2110, %v2222
        %v2239 = vmul.f32 %v2111, %v2223
        %v2240 = vmul.f32 %v2112, %v2224
        %v2241 = vmul.f32 %v2113, %v2225
        %v2242 = vmul.f32 %v2114, %v2226
        %v2243 = vmul.f32 %v2115, %v2227
        %v2244 = vmul.f32 %v2116, %v2228
        %v2245 = vmul.f32 %v2117, %v2229
        %v2246 = vmul.f32 %v2118, %v2230
        %v2247 = vmul.f32 %v2119, %v2231
        %v2248 = vmul.f32 %v2120, %v2232
        %v2249 = vmul.f32 %v2121, %v2233
        %v2250 = vmul.f32 %v2122, %v2234
        %v2251 = vmul.f32 %v2123, %v2235
        %v2252 = vmul.f32 %v2124, %v2236
        %v2253 = vmul.f32 %v2125, %v2237
        %v2254 = vpack.c.bf16 %v2242, %v2238
        %v2255 = vpack.c.bf16 %v2243, %v2239
        %v2256 = vpack.c.bf16 %v2244, %v2240
        %v2257 = vpack.c.bf16 %v2245, %v2241
        %v2258 = vpack.c.bf16 %v2250, %v2246
        %v2259 = vpack.c.bf16 %v2251, %v2247
        %v2260 = vpack.c.bf16 %v2252, %v2248
        %v2261 = vpack.c.bf16 %v2253, %v2249
        %v2262 = vld [vmem:[%s741] sm:$0xf]
        %v2263 = vld [vmem:[%s741 + $0x4] sm:$0xf]
        %v2264 = vld [vmem:[%s741 + $0x8] sm:$0xf]
        %v2265 = vld [vmem:[%s741 + $0xc] sm:$0xf]
        %v2266 = vld [vmem:[%s741 + $0x10] sm:$0xf]
        %v2267 = vld [vmem:[%s741 + $0x14] sm:$0xf]
        %v2268 = vld [vmem:[%s741 + $0x18] sm:$0xf]
        %v2269 = vld [vmem:[%s741 + $0x1c] sm:$0xf]
        %v2270 = vld [vmem:[%s741 + $0x20] sm:$0xf]
        %v2271 = vld [vmem:[%s741 + $0x24] sm:$0xf]
        %v2272 = vld [vmem:[%s741 + $0x28] sm:$0xf]
        %v2273 = vld [vmem:[%s741 + $0x2c] sm:$0xf]
        %v2274 = vld [vmem:[%s741 + $0x30] sm:$0xf]
        %v2275 = vld [vmem:[%s741 + $0x34] sm:$0xf]
        %v2276 = vld [vmem:[%s741 + $0x38] sm:$0xf]
        %v2277 = vld [vmem:[%s741 + $0x3c] sm:$0xf]
        %v2278 = vld [vmem:[%s741 + $0x40] sm:$0xf]
        %v2279 = vld [vmem:[%s741 + $0x44] sm:$0xf]
        %v2280 = vld [vmem:[%s741 + $0x48] sm:$0xf]
        %v2281 = vld [vmem:[%s741 + $0x4c] sm:$0xf]
        %v2282 = vld [vmem:[%s741 + $0x50] sm:$0xf]
        %v2283 = vld [vmem:[%s741 + $0x54] sm:$0xf]
        %v2284 = vld [vmem:[%s741 + $0x58] sm:$0xf]
        %v2285 = vld [vmem:[%s741 + $0x5c] sm:$0xf]
        %v2286 = vld [vmem:[%s741 + $0x60] sm:$0xf]
        %v2287 = vld [vmem:[%s741 + $0x64] sm:$0xf]
        %v2288 = vld [vmem:[%s741 + $0x68] sm:$0xf]
        %v2289 = vld [vmem:[%s741 + $0x6c] sm:$0xf]
        %v2290 = vld [vmem:[%s741 + $0x70] sm:$0xf]
        %v2291 = vld [vmem:[%s741 + $0x74] sm:$0xf]
        %v2292 = vld [vmem:[%s741 + $0x78] sm:$0xf]
        %v2293 = vld [vmem:[%s741 + $0x7c] sm:$0xf]
        %v2294 = vld [vmem:[%s741 + $0x80] sm:$0xf]
        %v2295 = vld [vmem:[%s741 + $0x84] sm:$0xf]
        %v2296 = vld [vmem:[%s741 + $0x88] sm:$0xf]
        %v2297 = vld [vmem:[%s741 + $0x8c] sm:$0xf]
        %v2298 = vld [vmem:[%s741 + $0x90] sm:$0xf]
        %v2299 = vld [vmem:[%s741 + $0x94] sm:$0xf]
        %v2300 = vld [vmem:[%s741 + $0x98] sm:$0xf]
        %v2301 = vld [vmem:[%s741 + $0x9c] sm:$0xf]
        %v2302 = vld [vmem:[%s741 + $0xa0] sm:$0xf]
        %v2303 = vld [vmem:[%s741 + $0xa4] sm:$0xf]
        %v2304 = vld [vmem:[%s741 + $0xa8] sm:$0xf]
        %v2305 = vld [vmem:[%s741 + $0xac] sm:$0xf]
        %v2306 = vld [vmem:[%s741 + $0xb0] sm:$0xf]
        %v2307 = vld [vmem:[%s741 + $0xb4] sm:$0xf]
        %v2308 = vld [vmem:[%s741 + $0xb8] sm:$0xf]
        %v2309 = vld [vmem:[%s741 + $0xbc] sm:$0xf]
        %v2310 = vld [vmem:[%s741 + $0xc0] sm:$0xf]
        %v2311 = vld [vmem:[%s741 + $0xc4] sm:$0xf]
        %v2312 = vld [vmem:[%s741 + $0xc8] sm:$0xf]
        %v2313 = vld [vmem:[%s741 + $0xcc] sm:$0xf]
        %v2314 = vld [vmem:[%s741 + $0xd0] sm:$0xf]
        %v2315 = vld [vmem:[%s741 + $0xd4] sm:$0xf]
        %v2316 = vld [vmem:[%s741 + $0xd8] sm:$0xf]
        %v2317 = vld [vmem:[%s741 + $0xdc] sm:$0xf]
        %v2318 = vld [vmem:[%s741 + $0xe0] sm:$0xf]
        %v2319 = vld [vmem:[%s741 + $0xe4] sm:$0xf]
        %v2320 = vld [vmem:[%s741 + $0xe8] sm:$0xf]
        %v2321 = vld [vmem:[%s741 + $0xec] sm:$0xf]
        %v2322 = vld [vmem:[%s741 + $0xf0] sm:$0xf]
        %v2323 = vld [vmem:[%s741 + $0xf4] sm:$0xf]
        %v2324 = vld [vmem:[%s741 + $0xf8] sm:$0xf]
        %v2325 = vld [vmem:[%s741 + $0xfc] sm:$0xf]
        %v2326 = vld [vmem:[%s835] sm:$0x1]
        %v2328 = vperm.slane %v2326, 0
        %v2394 = vunpack.c.l.b16 %v2262
        %v2395 = vunpack.c.l.b16 %v2263
        %v2396 = vunpack.c.l.b16 %v2264
        %v2397 = vunpack.c.l.b16 %v2265
        %v2398 = vunpack.c.l.b16 %v2266
        %v2399 = vunpack.c.l.b16 %v2267
        %v2400 = vunpack.c.l.b16 %v2268
        %v2401 = vunpack.c.l.b16 %v2269
        %v2402 = vunpack.c.l.b16 %v2270
        %v2403 = vunpack.c.l.b16 %v2271
        %v2404 = vunpack.c.l.b16 %v2272
        %v2405 = vunpack.c.l.b16 %v2273
        %v2406 = vunpack.c.l.b16 %v2274
        %v2407 = vunpack.c.l.b16 %v2275
        %v2408 = vunpack.c.l.b16 %v2276
        %v2409 = vunpack.c.l.b16 %v2277
        %v2410 = vunpack.c.l.b16 %v2278
        %v2411 = vunpack.c.l.b16 %v2279
        %v2412 = vunpack.c.l.b16 %v2280
        %v2413 = vunpack.c.l.b16 %v2281
        %v2414 = vunpack.c.l.b16 %v2282
        %v2415 = vunpack.c.l.b16 %v2283
        %v2416 = vunpack.c.l.b16 %v2284
        %v2417 = vunpack.c.l.b16 %v2285
        %v2418 = vunpack.c.l.b16 %v2286
        %v2419 = vunpack.c.l.b16 %v2287
        %v2420 = vunpack.c.l.b16 %v2288
        %v2421 = vunpack.c.l.b16 %v2289
        %v2422 = vunpack.c.l.b16 %v2290
        %v2423 = vunpack.c.l.b16 %v2291
        %v2424 = vunpack.c.l.b16 %v2292
        %v2425 = vunpack.c.l.b16 %v2293
        %v2426 = vunpack.c.l.b16 %v2294
        %v2427 = vunpack.c.l.b16 %v2295
        %v2428 = vunpack.c.l.b16 %v2296
        %v2429 = vunpack.c.l.b16 %v2297
        %v2430 = vunpack.c.l.b16 %v2298
        %v2431 = vunpack.c.l.b16 %v2299
        %v2432 = vunpack.c.l.b16 %v2300
        %v2433 = vunpack.c.l.b16 %v2301
        %v2434 = vunpack.c.l.b16 %v2302
        %v2435 = vunpack.c.l.b16 %v2303
        %v2436 = vunpack.c.l.b16 %v2304
        %v2437 = vunpack.c.l.b16 %v2305
        %v2438 = vunpack.c.l.b16 %v2306
        %v2439 = vunpack.c.l.b16 %v2307
        %v2440 = vunpack.c.l.b16 %v2308
        %v2441 = vunpack.c.l.b16 %v2309
        %v2442 = vunpack.c.l.b16 %v2310
        %v2443 = vunpack.c.l.b16 %v2311
        %v2444 = vunpack.c.l.b16 %v2312
        %v2445 = vunpack.c.l.b16 %v2313
        %v2446 = vunpack.c.l.b16 %v2314
        %v2447 = vunpack.c.l.b16 %v2315
        %v2448 = vunpack.c.l.b16 %v2316
        %v2449 = vunpack.c.l.b16 %v2317
        %v2450 = vunpack.c.l.b16 %v2318
        %v2451 = vunpack.c.l.b16 %v2319
        %v2452 = vunpack.c.l.b16 %v2320
        %v2453 = vunpack.c.l.b16 %v2321
        %v2454 = vunpack.c.l.b16 %v2322
        %v2455 = vunpack.c.l.b16 %v2323
        %v2456 = vunpack.c.l.b16 %v2324
        %v2457 = vunpack.c.l.b16 %v2325
        %v2458 = vpack.c.b16 %v2395, %v2394
        %v2459 = vpack.c.b16 %v2397, %v2396
        %v2460 = vpack.c.b16 %v2399, %v2398
        %v2461 = vpack.c.b16 %v2401, %v2400
        %v2462 = vpack.c.b16 %v2403, %v2402
        %v2463 = vpack.c.b16 %v2405, %v2404
        %v2464 = vpack.c.b16 %v2407, %v2406
        %v2465 = vpack.c.b16 %v2409, %v2408
        %v2466 = vpack.c.b16 %v2411, %v2410
        %v2467 = vpack.c.b16 %v2413, %v2412
        %v2468 = vpack.c.b16 %v2415, %v2414
        %v2469 = vpack.c.b16 %v2417, %v2416
        %v2470 = vpack.c.b16 %v2419, %v2418
        %v2471 = vpack.c.b16 %v2421, %v2420
        %v2472 = vpack.c.b16 %v2423, %v2422
        %v2473 = vpack.c.b16 %v2425, %v2424
        %v2474 = vpack.c.b16 %v2427, %v2426
        %v2475 = vpack.c.b16 %v2429, %v2428
        %v2476 = vpack.c.b16 %v2431, %v2430
        %v2477 = vpack.c.b16 %v2433, %v2432
        %v2478 = vpack.c.b16 %v2435, %v2434
        %v2479 = vpack.c.b16 %v2437, %v2436
        %v2480 = vpack.c.b16 %v2439, %v2438
        %v2481 = vpack.c.b16 %v2441, %v2440
        %v2482 = vpack.c.b16 %v2443, %v2442
        %v2483 = vpack.c.b16 %v2445, %v2444
        %v2484 = vpack.c.b16 %v2447, %v2446
        %v2485 = vpack.c.b16 %v2449, %v2448
        %v2486 = vpack.c.b16 %v2451, %v2450
        %v2487 = vpack.c.b16 %v2453, %v2452
        %v2488 = vpack.c.b16 %v2455, %v2454
        %v2489 = vpack.c.b16 %v2457, %v2456
        %2522 = vmatpush.bf16.msra.mxu0 %v2465
        %2523 = vmatpush.bf16.msra.mxu0 %v2464
        %2524 = vmatpush.bf16.msra.mxu0 %v2463
        %2525 = vmatpush.bf16.msra.mxu0 %v2462
        %2526 = vmatpush.bf16.msra.mxu0 %v2461
        %2527 = vmatpush.bf16.msra.mxu0 %v2460
        %2528 = vmatpush.bf16.msra.mxu0 %v2459
        %2529 = vmatpush.bf16.msra.mxu0 %v2458
        %2530 = vmatmul.bf16.gmra.mxu0 %v2254
        %v2531 = vpop.f32.mrf.mxu0
        %v2532 = vadd.f32 %v2328, %v2531
        %v2533 = vpop.f32.mrf.mxu0
        %v2534 = vadd.f32 %v2328, %v2533
        %2535 = vmatmul.bf16.gmra.mxu0 %v2258
        %v2536 = vpop.f32.mrf.mxu0
        %v2537 = vadd.f32 %v2328, %v2536
        %v2538 = vpop.f32.mrf.mxu0
        %v2539 = vadd.f32 %v2328, %v2538
        %2540 = vdwg.mxu0
        %2541 = vmatpush.bf16.msra.mxu0 %v2473
        %2542 = vmatpush.bf16.msra.mxu0 %v2472
        %2543 = vmatpush.bf16.msra.mxu0 %v2471
        %2544 = vmatpush.bf16.msra.mxu0 %v2470
        %2545 = vmatpush.bf16.msra.mxu0 %v2469
        %2546 = vmatpush.bf16.msra.mxu0 %v2468
        %2547 = vmatpush.bf16.msra.mxu0 %v2467
        %2548 = vmatpush.bf16.msra.mxu0 %v2466
        %2549 = vmatmul.bf16.gmra.mxu0 %v2255
        %v2550 = vpop.f32.mrf.mxu0
        %v2551 = vadd.f32 %v2532, %v2550
        %v2552 = vpop.f32.mrf.mxu0
        %v2553 = vadd.f32 %v2534, %v2552
        %2554 = vmatmul.bf16.gmra.mxu0 %v2259
        %v2555 = vpop.f32.mrf.mxu0
        %v2556 = vadd.f32 %v2537, %v2555
        %v2557 = vpop.f32.mrf.mxu0
        %v2558 = vadd.f32 %v2539, %v2557
        %2559 = vdwg.mxu0
        %2560 = vmatpush.bf16.msra.mxu0 %v2481
        %2561 = vmatpush.bf16.msra.mxu0 %v2480
        %2562 = vmatpush.bf16.msra.mxu0 %v2479
        %2563 = vmatpush.bf16.msra.mxu0 %v2478
        %2564 = vmatpush.bf16.msra.mxu0 %v2477
        %2565 = vmatpush.bf16.msra.mxu0 %v2476
        %2566 = vmatpush.bf16.msra.mxu0 %v2475
        %2567 = vmatpush.bf16.msra.mxu0 %v2474
        %2568 = vmatmul.bf16.gmra.mxu0 %v2256
        %v2569 = vpop.f32.mrf.mxu0
        %v2570 = vadd.f32 %v2551, %v2569
        %v2571 = vpop.f32.mrf.mxu0
        %v2572 = vadd.f32 %v2553, %v2571
        %2573 = vmatmul.bf16.gmra.mxu0 %v2260
        %v2574 = vpop.f32.mrf.mxu0
        %v2575 = vadd.f32 %v2556, %v2574
        %v2576 = vpop.f32.mrf.mxu0
        %v2577 = vadd.f32 %v2558, %v2576
        %2578 = vdwg.mxu0
        %2579 = vmatpush.bf16.msra.mxu0 %v2489
        %2580 = vmatpush.bf16.msra.mxu0 %v2488
        %2581 = vmatpush.bf16.msra.mxu0 %v2487
        %2582 = vmatpush.bf16.msra.mxu0 %v2486
        %2583 = vmatpush.bf16.msra.mxu0 %v2485
        %2584 = vmatpush.bf16.msra.mxu0 %v2484
        %2585 = vmatpush.bf16.msra.mxu0 %v2483
        %2586 = vmatpush.bf16.msra.mxu0 %v2482
        %2587 = vmatmul.bf16.gmra.mxu0 %v2257
        %v2588 = vpop.f32.mrf.mxu0
        %v2589 = vadd.f32 %v2570, %v2588
        %v2590 = vpop.f32.mrf.mxu0
        %v2591 = vadd.f32 %v2572, %v2590
        %2592 = vmatmul.bf16.gmra.mxu0 %v2261
        %v2593 = vpop.f32.mrf.mxu0
        %v2594 = vadd.f32 %v2575, %v2593
        %v2595 = vpop.f32.mrf.mxu0
        %v2596 = vadd.f32 %v2577, %v2595
        %2597 = vdwg.mxu0
        %v2598 = vadd.f32 %v1730, %v2589
        %v2599 = vadd.f32 %v1731, %v2591
        %v2600 = vadd.f32 %v1732, %v2594
        %v2601 = vadd.f32 %v1733, %v2596
        %2602 = vst [vmem:[#allocation2] sm:$0xff] %v2598
        %2603 = vst [vmem:[#allocation2 + $0x8] sm:$0xff] %v2599
        %2604 = vst [vmem:[#allocation2 + $0x10] sm:$0xff] %v2600
        %2605 = vst [vmem:[#allocation2 + $0x18] sm:$0xff] %v2601
        %p2606 = scmp.eq.s32.totalorder %s45, 1
        // Predicated region
        $region126: #{tpu_custom_call.1} parent=75 // pred_check
          %p2607 = pneg %p2606
        $region127: #{tpu_custom_call.1} parent=75 // pred_check_branch
          %2609 = sbr.rel (%p2607) target = $region129
        $region128: #{tpu_custom_call.1} parent=75 // pred_region
          %v2610 = vld [vmem:[%s13] sm:$0x1]
          %v2611 = vld [vmem:[%s14] sm:$0x1]
          %2612 = vadd.xlane.f32.xlu0 %v2598
          %v2613 = vpop.xlane.xlu0 %2612
          %2614 = vadd.xlane.f32.xlu0 %v2599
          %v2615 = vpop.xlane.xlu0 %2614
          %2616 = vadd.xlane.f32.xlu0 %v2600
          %v2617 = vpop.xlane.xlu0 %2616
          %2618 = vadd.xlane.f32.xlu0 %v2601
          %v2619 = vpop.xlane.xlu0 %2618
          %v2620 = vmul.f32 %v2613, %v878
          %v2621 = vmul.f32 %v2615, %v878
          %v2622 = vmul.f32 %v2617, %v878
          %v2623 = vmul.f32 %v2619, %v878
          %v2624 = vsub.f32 %v2598, %v2620
          %v2625 = vsub.f32 %v2599, %v2621
          %v2626 = vsub.f32 %v2600, %v2622
          %v2627 = vsub.f32 %v2601, %v2623
          %v2628 = vmul.f32 %v2624, %v2624
          %v2629 = vmul.f32 %v2625, %v2625
          %v2630 = vmul.f32 %v2626, %v2626
          %v2631 = vmul.f32 %v2627, %v2627
          %2632 = vadd.xlane.f32.xlu0 %v2628
          %v2633 = vpop.xlane.xlu0 %2632
          %2634 = vadd.xlane.f32.xlu0 %v2629
          %v2635 = vpop.xlane.xlu0 %2634
          %2636 = vadd.xlane.f32.xlu0 %v2630
          %v2637 = vpop.xlane.xlu0 %2636
          %2638 = vadd.xlane.f32.xlu0 %v2631
          %v2639 = vpop.xlane.xlu0 %2638
          %v2640 = vmul.f32 %v2633, %v878
          %v2641 = vmul.f32 %v2635, %v878
          %v2642 = vmul.f32 %v2637, %v878
          %v2643 = vmul.f32 %v2639, %v878
          %v2644 = vadd.f32 %v2640, 1e-05
          %v2645 = vadd.f32 %v2641, 1e-05
          %v2646 = vadd.f32 %v2642, 1e-05
          %v2647 = vadd.f32 %v2643, 1e-05
          %v2648 = vrsqrt.pop %v2644
          %v2649 = vmul.f32 %v2648, %v2644
          %v2650 = vmul.f32 %v2649, %v2648
          %v2651 = vmul.f32 0.5, %v2650
          %v2652 = vsub.f32 1.5, %v2651
          %v2653 = vmul.f32 %v2648, %v2652
          %vm2654 = vweird.f32 %v2644
          %vm2655 = vweird.f32 %v2648
          %vm2656 = vmor %vm2654, %vm2655
          %v2657 = vsel %vm2656, %v2648, %v2653
          %v2658 = vrsqrt.pop %v2645
          %v2659 = vmul.f32 %v2658, %v2645
          %v2660 = vmul.f32 %v2659, %v2658
          %v2661 = vmul.f32 0.5, %v2660
          %v2662 = vsub.f32 1.5, %v2661
          %v2663 = vmul.f32 %v2658, %v2662
          %vm2664 = vweird.f32 %v2645
          %vm2665 = vweird.f32 %v2658
          %vm2666 = vmor %vm2664, %vm2665
          %v2667 = vsel %vm2666, %v2658, %v2663
          %v2668 = vrsqrt.pop %v2646
          %v2669 = vmul.f32 %v2668, %v2646
          %v2670 = vmul.f32 %v2669, %v2668
          %v2671 = vmul.f32 0.5, %v2670
          %v2672 = vsub.f32 1.5, %v2671
          %v2673 = vmul.f32 %v2668, %v2672
          %vm2674 = vweird.f32 %v2646
          %vm2675 = vweird.f32 %v2668
          %vm2676 = vmor %vm2674, %vm2675
          %v2677 = vsel %vm2676, %v2668, %v2673
          %v2678 = vrsqrt.pop %v2647
          %v2679 = vmul.f32 %v2678, %v2647
          %v2680 = vmul.f32 %v2679, %v2678
          %v2681 = vmul.f32 0.5, %v2680
          %v2682 = vsub.f32 1.5, %v2681
          %v2683 = vmul.f32 %v2678, %v2682
          %vm2684 = vweird.f32 %v2647
          %vm2685 = vweird.f32 %v2678
          %vm2686 = vmor %vm2684, %vm2685
          %v2687 = vsel %vm2686, %v2678, %v2683
          %v2688 = vmul.f32 %v2624, %v2657
          %v2689 = vmul.f32 %v2625, %v2667
          %v2690 = vmul.f32 %v2626, %v2677
          %v2691 = vmul.f32 %v2627, %v2687
          %v2693 = vperm.slane %v2610, 0
          %v2695 = vmul.f32 %v2688, %v2693
          %v2696 = vmul.f32 %v2689, %v2693
          %v2697 = vmul.f32 %v2690, %v2693
          %v2698 = vmul.f32 %v2691, %v2693
          %v2700 = vperm.slane %v2611, 0
          %v2702 = vadd.f32 %v2695, %v2700
          %v2703 = vadd.f32 %v2696, %v2700
          %v2704 = vadd.f32 %v2697, %v2700
          %v2705 = vadd.f32 %v2698, %v2700
          %2706 = vst [vmem:[#allocation20] sm:$0xff] %v2702
          %2707 = vst [vmem:[#allocation20 + $0x8] sm:$0xff] %v2703
          %2708 = vst [vmem:[#allocation20 + $0x10] sm:$0xff] %v2704
          %2709 = vst [vmem:[#allocation20 + $0x18] sm:$0xff] %v2705
        $region129: #{tpu_custom_call.1} parent=75 // pred_fallthru
          _
        // Predicated region
        $region130: #{tpu_custom_call.1} parent=75 // pred_check
          %p2710 = pneg %p412
        $region131: #{tpu_custom_call.1} parent=75 // pred_check_branch
          %2712 = sbr.rel (%p2710) target = $region133
        $region132: #{tpu_custom_call.1} parent=75 // pred_region
          %2714 = vsyncadd [#allocation5], 0
          %s2715 = sshll.u32 [#allocation20], 4
          %s2716 = int_to_ptr.vmem [resolvable:$true] %s2715
          %s2717 = sshll.u32 %s15, 4
          %s2718 = int_to_ptr.hbm [resolvable:$true] %s2717
          %2723 = dma.vmem_to_hbm [thread:$0]  %s2716, 512, %s2718, [#allocation5], 128, 128, 8
        $region133: #{tpu_custom_call.1} parent=75 // pred_fallthru
          _
        // Predicated region
        $region134: #{tpu_custom_call.1} parent=75 // pred_check
          %p2724 = pneg %p412
        $region135: #{tpu_custom_call.1} parent=75 // pred_check_branch
          %2726 = sbr.rel (%p2724) target = $region137
        $region136: #{tpu_custom_call.1} parent=75 // pred_region
          %2728 = dma.done [#allocation5], 512
        $region137: #{tpu_custom_call.1} parent=75 // pred_fallthru
          _
      $region76: #{tpu_custom_call.1} parent=5 // pred_fallthru
        _
      %p2729 = scmp.le.s32.totalorder 2, %s40
      // Predicated region
      $region138: #{tpu_custom_call.1} parent=5 // pred_check
        %p2730 = pneg %p2729
      $region139: #{tpu_custom_call.1} parent=5 // pred_check_branch
        %2732 = sbr.rel (%p2730) target = $region141
      $region140: #{tpu_custom_call.1} parent=5 // pred_region
        %s2733 = ssub.s32 %s40, 2
      $region141: #{tpu_custom_call.1} parent=5 // pred_fallthru
        _
    $region6: #{tpu_custom_call.1} parent=1 // loop_footer
      %s44 = sadd.s32 1, %s40
    $region7: #{tpu_custom_call.1} parent=1 // loop_footer_branch
      %39 = sbr.rel target = $region3
    $region8: #{tpu_custom_call.1} parent=1 // loop_exit
      _
    %2734 = vsyncpa [#allocation4], 1
    %s2735 = scalar_lea.sflag [#allocation4], 1
    %2736 = vsyncpa %s2735, 1
    %2737 = vsyncpa [#allocation7], 1
    %s2738 = scalar_lea.sflag [#allocation7], 1
    %2739 = vsyncpa %s2738, 1
    %2740 = vsyncpa [#allocation10], 1
    %s2741 = scalar_lea.sflag [#allocation10], 1
    %2742 = vsyncpa %s2741, 1
    %2743 = vsyncpa [#allocation13], 1
    %s2744 = scalar_lea.sflag [#allocation13], 1
    %2745 = vsyncpa %s2744, 1
    %2746 = vsyncpa [#allocation16], 1
    %s2747 = scalar_lea.sflag [#allocation16], 1
    %2748 = vsyncpa %s2747, 1
    %2749 = vsyncpa [#allocation19], 1
    %s2750 = scalar_lea.sflag [#allocation19], 1
    %2751 = vsyncpa %s2750, 1
    %2752 = vsyncpa [#allocation5], 1
    %s2753 = scalar_lea.sflag [#allocation5], 1
    %2754 = vsyncpa %s2753, 1

</llo_original>
